<compile_context>
chip_gen: v5e
topology: v5e:2x2
jax: 0.10.0
libtpu: 0.0.40
codegen_flags: <defaults>
</compile_context>

<pallas_src>
from functools import partial

import jax
import jax.numpy as jnp
from jax.experimental import pallas as pl
from jax.experimental.pallas import tpu as pltpu


def pos_embedding_kernel(xt_ref, out_ref, *, freqs, d):
    # xt_ref:  (D, TB)          input tile, batch on lanes (lane-dense)
    # out_ref: (D*(1+2k), TB)   output tile, batch on lanes
    x = xt_ref[...]                                # (D, TB), compute in f32
    out_ref[0:d, :] = x.astype(out_ref.dtype)
    for j, f in enumerate(freqs):                  # static unroll; k is small
        fx = f * x                                 # f is a static power of two
        out_ref[(2 * j + 1) * d:(2 * j + 2) * d, :] = jnp.sin(fx).astype(out_ref.dtype)
        out_ref[(2 * j + 2) * d:(2 * j + 3) * d, :] = jnp.cos(fx).astype(out_ref.dtype)


def pos_embedding(x, k, *, tile_b=2048, out_dtype=None):
    """Pallas TPU positional embedding. x: (B, D) -> (B, D + 2*D*k)."""
    B, D = x.shape
    out_dtype = x.dtype if out_dtype is None else out_dtype
    # torch.linspace(0, k-1, k) == [0, 1, ..., k-1]  ->  freqs = 2**i
    freqs = tuple(float(2.0 ** i) for i in range(k))
    out_dim = D * (1 + 2 * k)

    # Lane-dense batch tile: a multiple of 128, no bigger than needed for B.
    tb = max(128, min(tile_b, pl.cdiv(B, 128) * 128))

    xt = x.T                                       # (D, B): batch on lanes
    out_t = pl.pallas_call(
        partial(pos_embedding_kernel, freqs=freqs, d=D),
        out_shape=jax.ShapeDtypeStruct((out_dim, B), out_dtype),
        grid_spec=pltpu.PrefetchScalarGridSpec(
            num_scalar_prefetch=0,
            grid=(pl.cdiv(B, tb),),                # remainder block is padded
            # first dims equal the full array dims, last dims are multiples of 128
            in_specs=[pl.BlockSpec((D, tb), lambda i: (0, i))],
            out_specs=pl.BlockSpec((out_dim, tb), lambda i: (0, i)),
        ),
        compiler_params=pltpu.CompilerParams(
            dimension_semantics=("parallel",)),    # megacore sharding on v7x
    )(xt)
    return out_t.T                                 # (B, out_dim), PyTorch layout


def pos_embedding_ref(x, k):
    """Pure-JAX reference mirroring the PyTorch forward exactly."""
    out = [x]
    for i in range(k):
        f = 2.0 ** i
        out.append(jnp.sin(f * x))
        out.append(jnp.cos(f * x))
    return jnp.concatenate(out, axis=-1)


if __name__ == "__main__":
    k = 4            # number of frequency bands
    B, D = 1000, 3   # batch of 3-D points; non-multiple of 128 exercises padding

    key = jax.random.PRNGKey(0)
    x = jax.random.normal(key, (B, D), dtype=jnp.float32)

    fn = jax.jit(lambda v: pos_embedding(v, k))
    out = jax.block_until_ready(fn(x))

    ref = pos_embedding_ref(x, k)
    assert out.shape == (B, D + 2 * D * k), out.shape
    assert jnp.allclose(out, ref, atol=2e-5, rtol=2e-5), "mismatch vs reference"

    print("KERNEL_OK")
</pallas_src>

<mosaic_0001>
module attributes {stable_mosaic.version = 11 : i64} {
  func.func @pos_embedding_kernel(%arg0: i32, %arg1: memref<3x1024xf32, #tpu.memory_space<vmem>>, %arg2: memref<27x1024xf32, #tpu.memory_space<vmem>>) attributes {dimension_semantics = [#tpu.dimension_semantics<parallel>], iteration_bounds = array<i64: 1>, scalar_prefetch = 0 : i64, scratch_operands = 0 : i64, tpu.core_type = #tpu.core_type<tc>, window_params = [{transform_indices = @transform_0, window_bounds = array<i64: 3, 1024>}, {transform_indices = @transform_1, window_bounds = array<i64: 27, 1024>}]} {
    %c0 = arith.constant 0 : index
    %c0_0 = arith.constant 0 : index
    %0 = vector.load %arg1[%c0, %c0_0] : memref<3x1024xf32, #tpu.memory_space<vmem>>, vector<3x1024xf32>
    %c0_1 = arith.constant 0 : index
    %c0_2 = arith.constant 0 : index
    %1 = vector.load %arg2[%c0_1, %c0_2] : memref<27x1024xf32, #tpu.memory_space<vmem>>, vector<3x1024xf32>
    tpu.vector_store %arg2[%c0_1, %c0_2], %0 {strides = array<i32>} : memref<27x1024xf32, #tpu.memory_space<vmem>>, vector<3x1024xf32>,
    %cst = arith.constant 1.000000e+00 : f32
    %2 = vector.broadcast %cst : f32 to vector<3x1024xf32>
    %3 = arith.mulf %2, %0 : vector<3x1024xf32>
    %4 = math.sin %3 : vector<3x1024xf32>
    %c3 = arith.constant 3 : index
    %c0_3 = arith.constant 0 : index
    %5 = vector.load %arg2[%c3, %c0_3] : memref<27x1024xf32, #tpu.memory_space<vmem>>, vector<3x1024xf32>
    tpu.vector_store %arg2[%c3, %c0_3], %4 {strides = array<i32>} : memref<27x1024xf32, #tpu.memory_space<vmem>>, vector<3x1024xf32>,
    %6 = math.cos %3 : vector<3x1024xf32>
    %c6 = arith.constant 6 : index
    %c0_4 = arith.constant 0 : index
    %7 = vector.load %arg2[%c6, %c0_4] : memref<27x1024xf32, #tpu.memory_space<vmem>>, vector<3x1024xf32>
    tpu.vector_store %arg2[%c6, %c0_4], %6 {strides = array<i32>} : memref<27x1024xf32, #tpu.memory_space<vmem>>, vector<3x1024xf32>,
    %cst_5 = arith.constant 2.000000e+00 : f32
    %8 = vector.broadcast %cst_5 : f32 to vector<3x1024xf32>
    %9 = arith.mulf %8, %0 : vector<3x1024xf32>
    %10 = math.sin %9 : vector<3x1024xf32>
    %c9 = arith.constant 9 : index
    %c0_6 = arith.constant 0 : index
    %11 = vector.load %arg2[%c9, %c0_6] : memref<27x1024xf32, #tpu.memory_space<vmem>>, vector<3x1024xf32>
    tpu.vector_store %arg2[%c9, %c0_6], %10 {strides = array<i32>} : memref<27x1024xf32, #tpu.memory_space<vmem>>, vector<3x1024xf32>,
    %12 = math.cos %9 : vector<3x1024xf32>
    %c12 = arith.constant 12 : index
    %c0_7 = arith.constant 0 : index
    %13 = vector.load %arg2[%c12, %c0_7] : memref<27x1024xf32, #tpu.memory_space<vmem>>, vector<3x1024xf32>
    tpu.vector_store %arg2[%c12, %c0_7], %12 {strides = array<i32>} : memref<27x1024xf32, #tpu.memory_space<vmem>>, vector<3x1024xf32>,
    %cst_8 = arith.constant 4.000000e+00 : f32
    %14 = vector.broadcast %cst_8 : f32 to vector<3x1024xf32>
    %15 = arith.mulf %14, %0 : vector<3x1024xf32>
    %16 = math.sin %15 : vector<3x1024xf32>
    %c15 = arith.constant 15 : index
    %c0_9 = arith.constant 0 : index
    %17 = vector.load %arg2[%c15, %c0_9] : memref<27x1024xf32, #tpu.memory_space<vmem>>, vector<3x1024xf32>
    tpu.vector_store %arg2[%c15, %c0_9], %16 {strides = array<i32>} : memref<27x1024xf32, #tpu.memory_space<vmem>>, vector<3x1024xf32>,
    %18 = math.cos %15 : vector<3x1024xf32>
    %c18 = arith.constant 18 : index
    %c0_10 = arith.constant 0 : index
    %19 = vector.load %arg2[%c18, %c0_10] : memref<27x1024xf32, #tpu.memory_space<vmem>>, vector<3x1024xf32>
    tpu.vector_store %arg2[%c18, %c0_10], %18 {strides = array<i32>} : memref<27x1024xf32, #tpu.memory_space<vmem>>, vector<3x1024xf32>,
    %cst_11 = arith.constant 8.000000e+00 : f32
    %20 = vector.broadcast %cst_11 : f32 to vector<3x1024xf32>
    %21 = arith.mulf %20, %0 : vector<3x1024xf32>
    %22 = math.sin %21 : vector<3x1024xf32>
    %c21 = arith.constant 21 : index
    %c0_12 = arith.constant 0 : index
    %23 = vector.load %arg2[%c21, %c0_12] : memref<27x1024xf32, #tpu.memory_space<vmem>>, vector<3x1024xf32>
    tpu.vector_store %arg2[%c21, %c0_12], %22 {strides = array<i32>} : memref<27x1024xf32, #tpu.memory_space<vmem>>, vector<3x1024xf32>,
    %24 = math.cos %21 : vector<3x1024xf32>
    %c24 = arith.constant 24 : index
    %c0_13 = arith.constant 0 : index
    %25 = vector.load %arg2[%c24, %c0_13] : memref<27x1024xf32, #tpu.memory_space<vmem>>, vector<3x1024xf32>
    tpu.vector_store %arg2[%c24, %c0_13], %24 {strides = array<i32>} : memref<27x1024xf32, #tpu.memory_space<vmem>>, vector<3x1024xf32>,
    return
  }
  func.func @transform_0(%arg0: i32) -> (i32, i32) {
    %c0_i32 = arith.constant 0 : i32
    %c0_i32_0 = arith.constant 0 : i32
    return %c0_i32, %arg0 : i32, i32
  }
  func.func @transform_1(%arg0: i32) -> (i32, i32) {
    %c0_i32 = arith.constant 0 : i32
    %c0_i32_0 = arith.constant 0 : i32
    return %c0_i32, %arg0 : i32, i32
  }
}

</mosaic_0001>

<llo_original>
// kernel: _lambda_.1
$region0: #{_lambda_.1}
  #allocation0 [shape = 'u32[]', space=smem, size = 0x4, offset = 0x4, fixed_abs, tag = 'smem constant byte address 0x4 - core index']
  #allocation1 [shape = 'u32[72,128]{1,0:T(1,128)}', space=vmem, size = 0x9000, scoped, tag = 'internal scratch']
  %s0 = inlined_call_operand.hbm [shape: f32[3,1000], index: 0, kind: input, shape index: {}]
  %s1 = inlined_call_operand.hbm [shape: f32[27,1000], index: 1, kind: output, shape index: {}]
  %s2 = sld [smem:[#allocation0]]
  $region18: #{_lambda_.1} parent=0
    _
  %s4 = ssub.s32 1, %s2
  %s5 = scalar_select 0, %s4, %s2
  $region1: #{_lambda_.1} parent=0
    #allocation2 [shape = 'u8[16384]{0}', space=vmem, size = 0x4000, scoped, tag = 'input window, operand 0, single buffered']
    #allocation3 [shape = 's32[1]{0}', space=sflag, size = 0x4, scoped, tag = 'scoped memory for _lambda_.1']
    #allocation4 [shape = 's32[1]{0}', space=sflag, size = 0x4, scoped, tag = 'scoped memory for _lambda_.1']
    #allocation5 [shape = 'u8[131072]{0}', space=vmem, size = 0x20000, scoped, tag = 'output window, operand 0, single buffered']
    %6 = vsyncpa [#allocation3], 0
    %7 = vsyncpa [#allocation4], 0
    // Predicated region
    $region2: #{_lambda_.1} parent=1 // pred_check
      _
    $region3: #{_lambda_.1} parent=1 // pred_check_branch
      %9 = sbr.rel (0) target = $region5
    $region4: #{_lambda_.1} parent=1 // pred_region
      %11 = vsyncadd [#allocation3], 0
      %s13 = sshll.u32 %s0, 4
      %s14 = int_to_ptr.hbm [resolvable:$true] %s13
      %s15 = sshll.u32 [#allocation2], 4
      %s16 = int_to_ptr.vmem [resolvable:$true] %s15
      %18 = dma.hbm_to_vmem [thread:$0]  %s14, 512, %s16, [#allocation3]
    $region5: #{_lambda_.1} parent=1 // pred_fallthru
      _
    // Predicated region
    $region6: #{_lambda_.1} parent=1 // pred_check
      _
    $region7: #{_lambda_.1} parent=1 // pred_check_branch
      %20 = sbr.rel (0) target = $region9
    $region8: #{_lambda_.1} parent=1 // pred_region
      %22 = dma.done [#allocation3], 512
    $region9: #{_lambda_.1} parent=1 // pred_fallthru
      _
    %v23 = vld [vmem:[#allocation2] sm:$0x77]
    %v24 = vld [vmem:[#allocation2 + $0x8] sm:$0x77]
    %v25 = vld [vmem:[#allocation2 + $0x10] sm:$0x77]
    %v26 = vld [vmem:[#allocation2 + $0x18] sm:$0x77]
    %31 = vst [vmem:[#allocation1] ss:$2 sm:$0xff] %v23
    %s32 = scalar_lea.vmem [#allocation1], 16
    %33 = vst [vmem:[%s32] ss:$2 sm:$0xff] %v24
    %s34 = scalar_lea.vmem [#allocation1], 32
    %35 = vst [vmem:[%s34] ss:$2 sm:$0xff] %v25
    %s36 = scalar_lea.vmem [#allocation1], 48
    %37 = vst [vmem:[%s36] ss:$2 sm:$0xff] %v26
    %v38 = vld.sshfl [vmem:[#allocation1] sm:$0xff pattern:$0x75316420]
    %v39 = vld.sshfl [vmem:[#allocation1 + $0x8] sm:$0xff pattern:$0x75316420]
    %v40 = vld.sshfl [vmem:[#allocation1 + $0x10] sm:$0xff pattern:$0x75316420]
    %v41 = vld.sshfl [vmem:[#allocation1 + $0x18] sm:$0xff pattern:$0x75316420]
    %v42 = vld.sshfl [vmem:[#allocation1 + $0x20] sm:$0xff pattern:$0x75316420]
    %v43 = vld.sshfl [vmem:[#allocation1 + $0x28] sm:$0xff pattern:$0x75316420]
    %v44 = vld.sshfl [vmem:[#allocation1 + $0x30] sm:$0xff pattern:$0x75316420]
    %v45 = vld.sshfl [vmem:[#allocation1 + $0x38] sm:$0xff pattern:$0x75316420]
    %54 = vst [vmem:[#allocation5] sm:$0x7] %v38
    %55 = vst [vmem:[#allocation5 + $0x8] sm:$0x7] %v39
    %56 = vst [vmem:[#allocation5 + $0x10] sm:$0x7] %v40
    %57 = vst [vmem:[#allocation5 + $0x18] sm:$0x7] %v41
    %58 = vst [vmem:[#allocation5 + $0x20] sm:$0x7] %v42
    %59 = vst [vmem:[#allocation5 + $0x28] sm:$0x7] %v43
    %60 = vst [vmem:[#allocation5 + $0x30] sm:$0x7] %v44
    %61 = vst [vmem:[#allocation5 + $0x38] sm:$0x7] %v45
    %v62 = vand.u32 2147483647, %v23
    %vm63 = vcmp.le.f32.partialorder %v62, 0.7853982
    %vm64 = vcmp.lt.s32.totalorder %v23, 0
    %v65 = vand.u32 %v23, 2139095040
    %v66 = vshrl.u32 %v65, 23
    %v67 = vsub.s32 %v66, 127
    %v68 = vand.u32 2147483647, %v23
    %v69 = vand.u32 %v68, 8388607
    %v70 = vor.u32 %v69, 8388608
    %v71 = vsub.s32 0, %v70
    %v72 = vadd.s32 %v67, 1
    %vm73 = vcmp.gt.s32.totalorder %v72, 0
    %v74 = vsel %vm73, %v72, 0
    %v75 = vshrl.u32 %v74, 5
    %v76 = vand.u32 %v74, 31
    %v77 = vsub.s32 32, %v76
    %v78 = vshrl.u32 683565275, %v77
    %v79 = vshll.u32 683565275, %v76
    %v80 = vshrl.u32 2475754826, %v77
    %v81 = vor.u32 %v79, %v80
    %v82 = vshll.u32 2475754826, %v76
    %v83 = vshrl.u32 2131351028, %v77
    %v84 = vor.u32 %v82, %v83
    %v85 = vshll.u32 2131351028, %v76
    %v86 = vshrl.u32 2102212464, %v77
    %v87 = vor.u32 %v85, %v86
    %v88 = vshll.u32 2102212464, %v76
    %v89 = vshrl.u32 920167782, %v77
    %v90 = vor.u32 %v88, %v89
    %v91 = vshll.u32 920167782, %v76
    %v92 = vshrl.u32 1326507024, %v77
    %v93 = vor.u32 %v91, %v92
    %vm94 = vcmp.lt.s32.totalorder %v75, 1
    %vm95 = vcmp.lt.s32.totalorder %v75, 2
    %vm96 = vcmp.lt.s32.totalorder %v75, 3
    %vm97 = vcmp.lt.s32.totalorder %v75, 4
    %v98 = vsel %vm94, %v78, %v81
    %v99 = vsel %vm97, %v87, 2102212464
    %v100 = vsel %vm96, %v84, %v99
    %v101 = vsel %vm95, %v98, %v100
    %v102 = vsel %vm94, %v81, %v84
    %v103 = vsel %vm97, %v90, 920167782
    %v104 = vsel %vm96, %v87, %v103
    %v105 = vsel %vm95, %v102, %v104
    %v106 = vsel %vm94, %v84, %v87
    %v107 = vsel %vm97, %v93, 1326507024
    %v108 = vsel %vm96, %v90, %v107
    %v109 = vsel %vm95, %v106, %v108
    %v110 = vshll.u32 %v70, 8
    %v111 = vand.u32 %v110, 65535
    %v112 = vshrl.u32 %v110, 16
    %v113 = vand.u32 %v109, 65535
    %v114 = vshrl.u32 %v109, 16
    %v115 = vmul.u32 %v111, %v113
    %v116 = vmul.u32 %v111, %v114
    %v117 = vmul.u32 %v112, %v113
    %v118 = vmul.u32 %v112, %v114
    %v119 = vshll.u32 %v116, 16
    %v120 = vshrl.u32 %v116, 16
    %v121 = vshll.u32 %v117, 16
    %v122 = vshrl.u32 %v117, 16
    %vm123 = vc.u32 %v115, %v119
    %v124 = vsel %vm123, 1, 0
    %v125 = vadd.s32 %v115, %v119
    %v126 = vadd.s32 %v118, %v124
    %vm127 = vc.u32 %v125, %v121
    %v128 = vsel %vm127, 1, 0
    %v129 = vadd.s32 %v125, %v121
    %v130 = vadd.s32 %v126, %v128
    %v131 = vadd.s32 %v130, %v120
    %v132 = vadd.s32 %v131, %v122
    %v133 = vand.u32 %v110, 65535
    %v134 = vshrl.u32 %v110, 16
    %v135 = vand.u32 %v105, 65535
    %v136 = vshrl.u32 %v105, 16
    %v137 = vmul.u32 %v133, %v135
    %v138 = vmul.u32 %v133, %v136
    %v139 = vmul.u32 %v134, %v135
    %v140 = vmul.u32 %v134, %v136
    %v141 = vshll.u32 %v138, 16
    %v142 = vshrl.u32 %v138, 16
    %v143 = vshll.u32 %v139, 16
    %v144 = vshrl.u32 %v139, 16
    %vm145 = vc.u32 %v137, %v141
    %v146 = vsel %vm145, 1, 0
    %v147 = vadd.s32 %v137, %v141
    %v148 = vadd.s32 %v140, %v146
    %vm149 = vc.u32 %v147, %v143
    %v150 = vsel %vm149, 1, 0
    %v151 = vadd.s32 %v147, %v143
    %v152 = vadd.s32 %v148, %v150
    %v153 = vadd.s32 %v152, %v142
    %v154 = vadd.s32 %v153, %v144
    %v155 = vmul.u32 %v110, %v101
    %v156 = vadd.s32 %v132, %v151
    %vm157 = vc.u32 %v132, %v151
    %v158 = vadd.s32 %v154, 1
    %v159 = vsel %vm157, %v158, %v154
    %v160 = vadd.s32 %v155, %v159
    %v161 = vadd.s32 %v160, 536870912
    %v162 = vshrl.u32 %v161, 30
    %v163 = vshll.u32 %v162, 30
    %v164 = vsub.s32 %v160, %v163
    %vm165 = vcmp.lt.s32.totalorder %v164, 0
    %v166 = vsub.s32 0, %v164
    %v167 = vsel %vm165, %v166, %v164
    %v168 = vclz %v167
    %v169 = vsub.s32 %v168, 2
    %vm170 = vcmp.gt.s32.totalorder 0, %v169
    %v171 = vsel %vm170, 0, %v169
    %v172 = vsub.s32 32, %v171
    %v173 = vshll.u32 %v164, %v171
    %v174 = vshrl.u32 %v156, %v172
    %v175 = vor.u32 %v173, %v174
    %v176 = vsub.s32 4294967266, %v171
    %v177 = vadd.s32 %v176, 127
    %v178 = vshll.u32 %v177, 23
    %v179 = vor.u32 4788187, %v178
    %v180 = vand.u32 2147483647, %v179
    %v182 = vcvt.s32.f32 %v175
    %v183 = vmul.f32 %v182, %v180
    %v184 = vxor.u32 %v183, 2147483648
    %v185 = vsel %vm64, %v184, %v183
    %v186 = vsub.s32 4, %v162
    %v187 = vsel %vm64, %v186, %v162
    %v188 = vsel %vm63, %v23, %v185
    %v189 = vsel %vm63, 0, %v187
    %v190 = vmul.f32 %v188, %v188
    %v191 = vmul.f32 %v190, -0.001358992
    %v192 = vadd.f32 %v191, 0.041655596
    %v193 = vmul.f32 %v190, %v192
    %v194 = vadd.f32 %v193, -0.4999988
    %v195 = vmul.f32 %v190, %v194
    %v196 = vadd.f32 1.0, %v195
    %v197 = vmul.f32 %v188, %v188
    %v198 = vmul.f32 %v197, -0.00019511016
    %v199 = vadd.f32 %v198, 0.008332121
    %v200 = vmul.f32 %v197, %v199
    %v201 = vadd.f32 %v200, -0.16666654
    %v202 = vmul.f32 %v197, %v201
    %v203 = vadd.f32 %v202, 1.0
    %v204 = vmul.f32 %v203, %v188
    %vm205 = vweird.f32 %v23
    %v206 = vadd.s32 %v189, 3
    %v207 = vand.u32 %v206, 3
    %vm208 = vcmp.lt.s32.totalorder %v207, 2
    %vm209 = vcmp.eq.s32.totalorder %v207, 0
    %v210 = vxor.u32 %v204, 2147483648
    %v211 = vsel %vm209, %v196, %v210
    %vm212 = vcmp.eq.s32.totalorder %v207, 2
    %v213 = vxor.u32 %v196, 2147483648
    %v214 = vsel %vm212, %v213, %v204
    %v215 = vsel %vm208, %v211, %v214
    %v216 = vsel %vm205, nan, %v215
    %v217 = vand.u32 2147483647, %v24
    %vm218 = vcmp.le.f32.partialorder %v217, 0.7853982
    %vm219 = vcmp.lt.s32.totalorder %v24, 0
    %v220 = vand.u32 %v24, 2139095040
    %v221 = vshrl.u32 %v220, 23
    %v222 = vsub.s32 %v221, 127
    %v223 = vand.u32 2147483647, %v24
    %v224 = vand.u32 %v223, 8388607
    %v225 = vor.u32 %v224, 8388608
    %v226 = vsub.s32 0, %v225
    %v227 = vadd.s32 %v222, 1
    %vm228 = vcmp.gt.s32.totalorder %v227, 0
    %v229 = vsel %vm228, %v227, 0
    %v230 = vshrl.u32 %v229, 5
    %v231 = vand.u32 %v229, 31
    %v232 = vsub.s32 32, %v231
    %v233 = vshrl.u32 683565275, %v232
    %v234 = vshll.u32 683565275, %v231
    %v235 = vshrl.u32 2475754826, %v232
    %v236 = vor.u32 %v234, %v235
    %v237 = vshll.u32 2475754826, %v231
    %v238 = vshrl.u32 2131351028, %v232
    %v239 = vor.u32 %v237, %v238
    %v240 = vshll.u32 2131351028, %v231
    %v241 = vshrl.u32 2102212464, %v232
    %v242 = vor.u32 %v240, %v241
    %v243 = vshll.u32 2102212464, %v231
    %v244 = vshrl.u32 920167782, %v232
    %v245 = vor.u32 %v243, %v244
    %v246 = vshll.u32 920167782, %v231
    %v247 = vshrl.u32 1326507024, %v232
    %v248 = vor.u32 %v246, %v247
    %vm249 = vcmp.lt.s32.totalorder %v230, 1
    %vm250 = vcmp.lt.s32.totalorder %v230, 2
    %vm251 = vcmp.lt.s32.totalorder %v230, 3
    %vm252 = vcmp.lt.s32.totalorder %v230, 4
    %v253 = vsel %vm249, %v233, %v236
    %v254 = vsel %vm252, %v242, 2102212464
    %v255 = vsel %vm251, %v239, %v254
    %v256 = vsel %vm250, %v253, %v255
    %v257 = vsel %vm249, %v236, %v239
    %v258 = vsel %vm252, %v245, 920167782
    %v259 = vsel %vm251, %v242, %v258
    %v260 = vsel %vm250, %v257, %v259
    %v261 = vsel %vm249, %v239, %v242
    %v262 = vsel %vm252, %v248, 1326507024
    %v263 = vsel %vm251, %v245, %v262
    %v264 = vsel %vm250, %v261, %v263
    %v265 = vshll.u32 %v225, 8
    %v266 = vand.u32 %v265, 65535
    %v267 = vshrl.u32 %v265, 16
    %v268 = vand.u32 %v264, 65535
    %v269 = vshrl.u32 %v264, 16
    %v270 = vmul.u32 %v266, %v268
    %v271 = vmul.u32 %v266, %v269
    %v272 = vmul.u32 %v267, %v268
    %v273 = vmul.u32 %v267, %v269
    %v274 = vshll.u32 %v271, 16
    %v275 = vshrl.u32 %v271, 16
    %v276 = vshll.u32 %v272, 16
    %v277 = vshrl.u32 %v272, 16
    %vm278 = vc.u32 %v270, %v274
    %v279 = vsel %vm278, 1, 0
    %v280 = vadd.s32 %v270, %v274
    %v281 = vadd.s32 %v273, %v279
    %vm282 = vc.u32 %v280, %v276
    %v283 = vsel %vm282, 1, 0
    %v284 = vadd.s32 %v280, %v276
    %v285 = vadd.s32 %v281, %v283
    %v286 = vadd.s32 %v285, %v275
    %v287 = vadd.s32 %v286, %v277
    %v288 = vand.u32 %v265, 65535
    %v289 = vshrl.u32 %v265, 16
    %v290 = vand.u32 %v260, 65535
    %v291 = vshrl.u32 %v260, 16
    %v292 = vmul.u32 %v288, %v290
    %v293 = vmul.u32 %v288, %v291
    %v294 = vmul.u32 %v289, %v290
    %v295 = vmul.u32 %v289, %v291
    %v296 = vshll.u32 %v293, 16
    %v297 = vshrl.u32 %v293, 16
    %v298 = vshll.u32 %v294, 16
    %v299 = vshrl.u32 %v294, 16
    %vm300 = vc.u32 %v292, %v296
    %v301 = vsel %vm300, 1, 0
    %v302 = vadd.s32 %v292, %v296
    %v303 = vadd.s32 %v295, %v301
    %vm304 = vc.u32 %v302, %v298
    %v305 = vsel %vm304, 1, 0
    %v306 = vadd.s32 %v302, %v298
    %v307 = vadd.s32 %v303, %v305
    %v308 = vadd.s32 %v307, %v297
    %v309 = vadd.s32 %v308, %v299
    %v310 = vmul.u32 %v265, %v256
    %v311 = vadd.s32 %v287, %v306
    %vm312 = vc.u32 %v287, %v306
    %v313 = vadd.s32 %v309, 1
    %v314 = vsel %vm312, %v313, %v309
    %v315 = vadd.s32 %v310, %v314
    %v316 = vadd.s32 %v315, 536870912
    %v317 = vshrl.u32 %v316, 30
    %v318 = vshll.u32 %v317, 30
    %v319 = vsub.s32 %v315, %v318
    %vm320 = vcmp.lt.s32.totalorder %v319, 0
    %v321 = vsub.s32 0, %v319
    %v322 = vsel %vm320, %v321, %v319
    %v323 = vclz %v322
    %v324 = vsub.s32 %v323, 2
    %vm325 = vcmp.gt.s32.totalorder 0, %v324
    %v326 = vsel %vm325, 0, %v324
    %v327 = vsub.s32 32, %v326
    %v328 = vshll.u32 %v319, %v326
    %v329 = vshrl.u32 %v311, %v327
    %v330 = vor.u32 %v328, %v329
    %v331 = vsub.s32 4294967266, %v326
    %v332 = vadd.s32 %v331, 127
    %v333 = vshll.u32 %v332, 23
    %v334 = vor.u32 4788187, %v333
    %v335 = vand.u32 2147483647, %v334
    %v337 = vcvt.s32.f32 %v330
    %v338 = vmul.f32 %v337, %v335
    %v339 = vxor.u32 %v338, 2147483648
    %v340 = vsel %vm219, %v339, %v338
    %v341 = vsub.s32 4, %v317
    %v342 = vsel %vm219, %v341, %v317
    %v343 = vsel %vm218, %v24, %v340
    %v344 = vsel %vm218, 0, %v342
    %v345 = vmul.f32 %v343, %v343
    %v346 = vmul.f32 %v345, -0.001358992
    %v347 = vadd.f32 %v346, 0.041655596
    %v348 = vmul.f32 %v345, %v347
    %v349 = vadd.f32 %v348, -0.4999988
    %v350 = vmul.f32 %v345, %v349
    %v351 = vadd.f32 1.0, %v350
    %v352 = vmul.f32 %v343, %v343
    %v353 = vmul.f32 %v352, -0.00019511016
    %v354 = vadd.f32 %v353, 0.008332121
    %v355 = vmul.f32 %v352, %v354
    %v356 = vadd.f32 %v355, -0.16666654
    %v357 = vmul.f32 %v352, %v356
    %v358 = vadd.f32 %v357, 1.0
    %v359 = vmul.f32 %v358, %v343
    %vm360 = vweird.f32 %v24
    %v361 = vadd.s32 %v344, 3
    %v362 = vand.u32 %v361, 3
    %vm363 = vcmp.lt.s32.totalorder %v362, 2
    %vm364 = vcmp.eq.s32.totalorder %v362, 0
    %v365 = vxor.u32 %v359, 2147483648
    %v366 = vsel %vm364, %v351, %v365
    %vm367 = vcmp.eq.s32.totalorder %v362, 2
    %v368 = vxor.u32 %v351, 2147483648
    %v369 = vsel %vm367, %v368, %v359
    %v370 = vsel %vm363, %v366, %v369
    %v371 = vsel %vm360, nan, %v370
    %v372 = vand.u32 2147483647, %v25
    %vm373 = vcmp.le.f32.partialorder %v372, 0.7853982
    %vm374 = vcmp.lt.s32.totalorder %v25, 0
    %v375 = vand.u32 %v25, 2139095040
    %v376 = vshrl.u32 %v375, 23
    %v377 = vsub.s32 %v376, 127
    %v378 = vand.u32 2147483647, %v25
    %v379 = vand.u32 %v378, 8388607
    %v380 = vor.u32 %v379, 8388608
    %v381 = vsub.s32 0, %v380
    %v382 = vadd.s32 %v377, 1
    %vm383 = vcmp.gt.s32.totalorder %v382, 0
    %v384 = vsel %vm383, %v382, 0
    %v385 = vshrl.u32 %v384, 5
    %v386 = vand.u32 %v384, 31
    %v387 = vsub.s32 32, %v386
    %v388 = vshrl.u32 683565275, %v387
    %v389 = vshll.u32 683565275, %v386
    %v390 = vshrl.u32 2475754826, %v387
    %v391 = vor.u32 %v389, %v390
    %v392 = vshll.u32 2475754826, %v386
    %v393 = vshrl.u32 2131351028, %v387
    %v394 = vor.u32 %v392, %v393
    %v395 = vshll.u32 2131351028, %v386
    %v396 = vshrl.u32 2102212464, %v387
    %v397 = vor.u32 %v395, %v396
    %v398 = vshll.u32 2102212464, %v386
    %v399 = vshrl.u32 920167782, %v387
    %v400 = vor.u32 %v398, %v399
    %v401 = vshll.u32 920167782, %v386
    %v402 = vshrl.u32 1326507024, %v387
    %v403 = vor.u32 %v401, %v402
    %vm404 = vcmp.lt.s32.totalorder %v385, 1
    %vm405 = vcmp.lt.s32.totalorder %v385, 2
    %vm406 = vcmp.lt.s32.totalorder %v385, 3
    %vm407 = vcmp.lt.s32.totalorder %v385, 4
    %v408 = vsel %vm404, %v388, %v391
    %v409 = vsel %vm407, %v397, 2102212464
    %v410 = vsel %vm406, %v394, %v409
    %v411 = vsel %vm405, %v408, %v410
    %v412 = vsel %vm404, %v391, %v394
    %v413 = vsel %vm407, %v400, 920167782
    %v414 = vsel %vm406, %v397, %v413
    %v415 = vsel %vm405, %v412, %v414
    %v416 = vsel %vm404, %v394, %v397
    %v417 = vsel %vm407, %v403, 1326507024
    %v418 = vsel %vm406, %v400, %v417
    %v419 = vsel %vm405, %v416, %v418
    %v420 = vshll.u32 %v380, 8
    %v421 = vand.u32 %v420, 65535
    %v422 = vshrl.u32 %v420, 16
    %v423 = vand.u32 %v419, 65535
    %v424 = vshrl.u32 %v419, 16
    %v425 = vmul.u32 %v421, %v423
    %v426 = vmul.u32 %v421, %v424
    %v427 = vmul.u32 %v422, %v423
    %v428 = vmul.u32 %v422, %v424
    %v429 = vshll.u32 %v426, 16
    %v430 = vshrl.u32 %v426, 16
    %v431 = vshll.u32 %v427, 16
    %v432 = vshrl.u32 %v427, 16
    %vm433 = vc.u32 %v425, %v429
    %v434 = vsel %vm433, 1, 0
    %v435 = vadd.s32 %v425, %v429
    %v436 = vadd.s32 %v428, %v434
    %vm437 = vc.u32 %v435, %v431
    %v438 = vsel %vm437, 1, 0
    %v439 = vadd.s32 %v435, %v431
    %v440 = vadd.s32 %v436, %v438
    %v441 = vadd.s32 %v440, %v430
    %v442 = vadd.s32 %v441, %v432
    %v443 = vand.u32 %v420, 65535
    %v444 = vshrl.u32 %v420, 16
    %v445 = vand.u32 %v415, 65535
    %v446 = vshrl.u32 %v415, 16
    %v447 = vmul.u32 %v443, %v445
    %v448 = vmul.u32 %v443, %v446
    %v449 = vmul.u32 %v444, %v445
    %v450 = vmul.u32 %v444, %v446
    %v451 = vshll.u32 %v448, 16
    %v452 = vshrl.u32 %v448, 16
    %v453 = vshll.u32 %v449, 16
    %v454 = vshrl.u32 %v449, 16
    %vm455 = vc.u32 %v447, %v451
    %v456 = vsel %vm455, 1, 0
    %v457 = vadd.s32 %v447, %v451
    %v458 = vadd.s32 %v450, %v456
    %vm459 = vc.u32 %v457, %v453
    %v460 = vsel %vm459, 1, 0
    %v461 = vadd.s32 %v457, %v453
    %v462 = vadd.s32 %v458, %v460
    %v463 = vadd.s32 %v462, %v452
    %v464 = vadd.s32 %v463, %v454
    %v465 = vmul.u32 %v420, %v411
    %v466 = vadd.s32 %v442, %v461
    %vm467 = vc.u32 %v442, %v461
    %v468 = vadd.s32 %v464, 1
    %v469 = vsel %vm467, %v468, %v464
    %v470 = vadd.s32 %v465, %v469
    %v471 = vadd.s32 %v470, 536870912
    %v472 = vshrl.u32 %v471, 30
    %v473 = vshll.u32 %v472, 30
    %v474 = vsub.s32 %v470, %v473
    %vm475 = vcmp.lt.s32.totalorder %v474, 0
    %v476 = vsub.s32 0, %v474
    %v477 = vsel %vm475, %v476, %v474
    %v478 = vclz %v477
    %v479 = vsub.s32 %v478, 2
    %vm480 = vcmp.gt.s32.totalorder 0, %v479
    %v481 = vsel %vm480, 0, %v479
    %v482 = vsub.s32 32, %v481
    %v483 = vshll.u32 %v474, %v481
    %v484 = vshrl.u32 %v466, %v482
    %v485 = vor.u32 %v483, %v484
    %v486 = vsub.s32 4294967266, %v481
    %v487 = vadd.s32 %v486, 127
    %v488 = vshll.u32 %v487, 23
    %v489 = vor.u32 4788187, %v488
    %v490 = vand.u32 2147483647, %v489
    %v492 = vcvt.s32.f32 %v485
    %v493 = vmul.f32 %v492, %v490
    %v494 = vxor.u32 %v493, 2147483648
    %v495 = vsel %vm374, %v494, %v493
    %v496 = vsub.s32 4, %v472
    %v497 = vsel %vm374, %v496, %v472
    %v498 = vsel %vm373, %v25, %v495
    %v499 = vsel %vm373, 0, %v497
    %v500 = vmul.f32 %v498, %v498
    %v501 = vmul.f32 %v500, -0.001358992
    %v502 = vadd.f32 %v501, 0.041655596
    %v503 = vmul.f32 %v500, %v502
    %v504 = vadd.f32 %v503, -0.4999988
    %v505 = vmul.f32 %v500, %v504
    %v506 = vadd.f32 1.0, %v505
    %v507 = vmul.f32 %v498, %v498
    %v508 = vmul.f32 %v507, -0.00019511016
    %v509 = vadd.f32 %v508, 0.008332121
    %v510 = vmul.f32 %v507, %v509
    %v511 = vadd.f32 %v510, -0.16666654
    %v512 = vmul.f32 %v507, %v511
    %v513 = vadd.f32 %v512, 1.0
    %v514 = vmul.f32 %v513, %v498
    %vm515 = vweird.f32 %v25
    %v516 = vadd.s32 %v499, 3
    %v517 = vand.u32 %v516, 3
    %vm518 = vcmp.lt.s32.totalorder %v517, 2
    %vm519 = vcmp.eq.s32.totalorder %v517, 0
    %v520 = vxor.u32 %v514, 2147483648
    %v521 = vsel %vm519, %v506, %v520
    %vm522 = vcmp.eq.s32.totalorder %v517, 2
    %v523 = vxor.u32 %v506, 2147483648
    %v524 = vsel %vm522, %v523, %v514
    %v525 = vsel %vm518, %v521, %v524
    %v526 = vsel %vm515, nan, %v525
    %v527 = vand.u32 2147483647, %v26
    %vm528 = vcmp.le.f32.partialorder %v527, 0.7853982
    %vm529 = vcmp.lt.s32.totalorder %v26, 0
    %v530 = vand.u32 %v26, 2139095040
    %v531 = vshrl.u32 %v530, 23
    %v532 = vsub.s32 %v531, 127
    %v533 = vand.u32 2147483647, %v26
    %v534 = vand.u32 %v533, 8388607
    %v535 = vor.u32 %v534, 8388608
    %v536 = vsub.s32 0, %v535
    %v537 = vadd.s32 %v532, 1
    %vm538 = vcmp.gt.s32.totalorder %v537, 0
    %v539 = vsel %vm538, %v537, 0
    %v540 = vshrl.u32 %v539, 5
    %v541 = vand.u32 %v539, 31
    %v542 = vsub.s32 32, %v541
    %v543 = vshrl.u32 683565275, %v542
    %v544 = vshll.u32 683565275, %v541
    %v545 = vshrl.u32 2475754826, %v542
    %v546 = vor.u32 %v544, %v545
    %v547 = vshll.u32 2475754826, %v541
    %v548 = vshrl.u32 2131351028, %v542
    %v549 = vor.u32 %v547, %v548
    %v550 = vshll.u32 2131351028, %v541
    %v551 = vshrl.u32 2102212464, %v542
    %v552 = vor.u32 %v550, %v551
    %v553 = vshll.u32 2102212464, %v541
    %v554 = vshrl.u32 920167782, %v542
    %v555 = vor.u32 %v553, %v554
    %v556 = vshll.u32 920167782, %v541
    %v557 = vshrl.u32 1326507024, %v542
    %v558 = vor.u32 %v556, %v557
    %vm559 = vcmp.lt.s32.totalorder %v540, 1
    %vm560 = vcmp.lt.s32.totalorder %v540, 2
    %vm561 = vcmp.lt.s32.totalorder %v540, 3
    %vm562 = vcmp.lt.s32.totalorder %v540, 4
    %v563 = vsel %vm559, %v543, %v546
    %v564 = vsel %vm562, %v552, 2102212464
    %v565 = vsel %vm561, %v549, %v564
    %v566 = vsel %vm560, %v563, %v565
    %v567 = vsel %vm559, %v546, %v549
    %v568 = vsel %vm562, %v555, 920167782
    %v569 = vsel %vm561, %v552, %v568
    %v570 = vsel %vm560, %v567, %v569
    %v571 = vsel %vm559, %v549, %v552
    %v572 = vsel %vm562, %v558, 1326507024
    %v573 = vsel %vm561, %v555, %v572
    %v574 = vsel %vm560, %v571, %v573
    %v575 = vshll.u32 %v535, 8
    %v576 = vand.u32 %v575, 65535
    %v577 = vshrl.u32 %v575, 16
    %v578 = vand.u32 %v574, 65535
    %v579 = vshrl.u32 %v574, 16
    %v580 = vmul.u32 %v576, %v578
    %v581 = vmul.u32 %v576, %v579
    %v582 = vmul.u32 %v577, %v578
    %v583 = vmul.u32 %v577, %v579
    %v584 = vshll.u32 %v581, 16
    %v585 = vshrl.u32 %v581, 16
    %v586 = vshll.u32 %v582, 16
    %v587 = vshrl.u32 %v582, 16
    %vm588 = vc.u32 %v580, %v584
    %v589 = vsel %vm588, 1, 0
    %v590 = vadd.s32 %v580, %v584
    %v591 = vadd.s32 %v583, %v589
    %vm592 = vc.u32 %v590, %v586
    %v593 = vsel %vm592, 1, 0
    %v594 = vadd.s32 %v590, %v586
    %v595 = vadd.s32 %v591, %v593
    %v596 = vadd.s32 %v595, %v585
    %v597 = vadd.s32 %v596, %v587
    %v598 = vand.u32 %v575, 65535
    %v599 = vshrl.u32 %v575, 16
    %v600 = vand.u32 %v570, 65535
    %v601 = vshrl.u32 %v570, 16
    %v602 = vmul.u32 %v598, %v600
    %v603 = vmul.u32 %v598, %v601
    %v604 = vmul.u32 %v599, %v600
    %v605 = vmul.u32 %v599, %v601
    %v606 = vshll.u32 %v603, 16
    %v607 = vshrl.u32 %v603, 16
    %v608 = vshll.u32 %v604, 16
    %v609 = vshrl.u32 %v604, 16
    %vm610 = vc.u32 %v602, %v606
    %v611 = vsel %vm610, 1, 0
    %v612 = vadd.s32 %v602, %v606
    %v613 = vadd.s32 %v605, %v611
    %vm614 = vc.u32 %v612, %v608
    %v615 = vsel %vm614, 1, 0
    %v616 = vadd.s32 %v612, %v608
    %v617 = vadd.s32 %v613, %v615
    %v618 = vadd.s32 %v617, %v607
    %v619 = vadd.s32 %v618, %v609
    %v620 = vmul.u32 %v575, %v566
    %v621 = vadd.s32 %v597, %v616
    %vm622 = vc.u32 %v597, %v616
    %v623 = vadd.s32 %v619, 1
    %v624 = vsel %vm622, %v623, %v619
    %v625 = vadd.s32 %v620, %v624
    %v626 = vadd.s32 %v625, 536870912
    %v627 = vshrl.u32 %v626, 30
    %v628 = vshll.u32 %v627, 30
    %v629 = vsub.s32 %v625, %v628
    %vm630 = vcmp.lt.s32.totalorder %v629, 0
    %v631 = vsub.s32 0, %v629
    %v632 = vsel %vm630, %v631, %v629
    %v633 = vclz %v632
    %v634 = vsub.s32 %v633, 2
    %vm635 = vcmp.gt.s32.totalorder 0, %v634
    %v636 = vsel %vm635, 0, %v634
    %v637 = vsub.s32 32, %v636
    %v638 = vshll.u32 %v629, %v636
    %v639 = vshrl.u32 %v621, %v637
    %v640 = vor.u32 %v638, %v639
    %v641 = vsub.s32 4294967266, %v636
    %v642 = vadd.s32 %v641, 127
    %v643 = vshll.u32 %v642, 23
    %v644 = vor.u32 4788187, %v643
    %v645 = vand.u32 2147483647, %v644
    %v647 = vcvt.s32.f32 %v640
    %v648 = vmul.f32 %v647, %v645
    %v649 = vxor.u32 %v648, 2147483648
    %v650 = vsel %vm529, %v649, %v648
    %v651 = vsub.s32 4, %v627
    %v652 = vsel %vm529, %v651, %v627
    %v653 = vsel %vm528, %v26, %v650
    %v654 = vsel %vm528, 0, %v652
    %v655 = vmul.f32 %v653, %v653
    %v656 = vmul.f32 %v655, -0.001358992
    %v657 = vadd.f32 %v656, 0.041655596
    %v658 = vmul.f32 %v655, %v657
    %v659 = vadd.f32 %v658, -0.4999988
    %v660 = vmul.f32 %v655, %v659
    %v661 = vadd.f32 1.0, %v660
    %v662 = vmul.f32 %v653, %v653
    %v663 = vmul.f32 %v662, -0.00019511016
    %v664 = vadd.f32 %v663, 0.008332121
    %v665 = vmul.f32 %v662, %v664
    %v666 = vadd.f32 %v665, -0.16666654
    %v667 = vmul.f32 %v662, %v666
    %v668 = vadd.f32 %v667, 1.0
    %v669 = vmul.f32 %v668, %v653
    %vm670 = vweird.f32 %v26
    %v671 = vadd.s32 %v654, 3
    %v672 = vand.u32 %v671, 3
    %vm673 = vcmp.lt.s32.totalorder %v672, 2
    %vm674 = vcmp.eq.s32.totalorder %v672, 0
    %v675 = vxor.u32 %v669, 2147483648
    %v676 = vsel %vm674, %v661, %v675
    %vm677 = vcmp.eq.s32.totalorder %v672, 2
    %v678 = vxor.u32 %v661, 2147483648
    %v679 = vsel %vm677, %v678, %v669
    %v680 = vsel %vm673, %v676, %v679
    %v681 = vsel %vm670, nan, %v680
    %686 = vst [vmem:[#allocation1] ss:$2 sm:$0xff] %v216
    %s687 = scalar_lea.vmem [#allocation1], 16
    %688 = vst [vmem:[%s687] ss:$2 sm:$0xff] %v371
    %s689 = scalar_lea.vmem [#allocation1], 32
    %690 = vst [vmem:[%s689] ss:$2 sm:$0xff] %v526
    %s691 = scalar_lea.vmem [#allocation1], 48
    %692 = vst [vmem:[%s691] ss:$2 sm:$0xff] %v681
    %v693 = vld.sshfl [vmem:[#allocation1] sm:$0xff pattern:$0x75316420]
    %v694 = vld.sshfl [vmem:[#allocation1 + $0x8] sm:$0xff pattern:$0x75316420]
    %v695 = vld.sshfl [vmem:[#allocation1 + $0x10] sm:$0xff pattern:$0x75316420]
    %v696 = vld.sshfl [vmem:[#allocation1 + $0x18] sm:$0xff pattern:$0x75316420]
    %v697 = vld.sshfl [vmem:[#allocation1 + $0x20] sm:$0xff pattern:$0x75316420]
    %v698 = vld.sshfl [vmem:[#allocation1 + $0x28] sm:$0xff pattern:$0x75316420]
    %v699 = vld.sshfl [vmem:[#allocation1 + $0x30] sm:$0xff pattern:$0x75316420]
    %v700 = vld.sshfl [vmem:[#allocation1 + $0x38] sm:$0xff pattern:$0x75316420]
    %v701 = vrot.slane %v693, 5
    %v702 = vrot.slane %v694, 5
    %v703 = vrot.slane %v695, 5
    %v704 = vrot.slane %v696, 5
    %v705 = vrot.slane %v697, 5
    %v706 = vrot.slane %v698, 5
    %v707 = vrot.slane %v699, 5
    %v708 = vrot.slane %v700, 5
    %717 = vst [vmem:[#allocation5] sm:$0x38] %v701
    %718 = vst [vmem:[#allocation5 + $0x8] sm:$0x38] %v702
    %719 = vst [vmem:[#allocation5 + $0x10] sm:$0x38] %v703
    %720 = vst [vmem:[#allocation5 + $0x18] sm:$0x38] %v704
    %721 = vst [vmem:[#allocation5 + $0x20] sm:$0x38] %v705
    %722 = vst [vmem:[#allocation5 + $0x28] sm:$0x38] %v706
    %723 = vst [vmem:[#allocation5 + $0x30] sm:$0x38] %v707
    %724 = vst [vmem:[#allocation5 + $0x38] sm:$0x38] %v708
    %v725 = vand.u32 2147483647, %v23
    %vm726 = vcmp.le.f32.partialorder %v725, 0.7853982
    %vm727 = vcmp.lt.s32.totalorder %v23, 0
    %v728 = vand.u32 %v23, 2139095040
    %v729 = vshrl.u32 %v728, 23
    %v730 = vsub.s32 %v729, 127
    %v731 = vand.u32 2147483647, %v23
    %v732 = vand.u32 %v731, 8388607
    %v733 = vor.u32 %v732, 8388608
    %v734 = vsub.s32 0, %v733
    %v735 = vadd.s32 %v730, 1
    %vm736 = vcmp.gt.s32.totalorder %v735, 0
    %v737 = vsel %vm736, %v735, 0
    %v738 = vshrl.u32 %v737, 5
    %v739 = vand.u32 %v737, 31
    %v740 = vsub.s32 32, %v739
    %v741 = vshrl.u32 683565275, %v740
    %v742 = vshll.u32 683565275, %v739
    %v743 = vshrl.u32 2475754826, %v740
    %v744 = vor.u32 %v742, %v743
    %v745 = vshll.u32 2475754826, %v739
    %v746 = vshrl.u32 2131351028, %v740
    %v747 = vor.u32 %v745, %v746
    %v748 = vshll.u32 2131351028, %v739
    %v749 = vshrl.u32 2102212464, %v740
    %v750 = vor.u32 %v748, %v749
    %v751 = vshll.u32 2102212464, %v739
    %v752 = vshrl.u32 920167782, %v740
    %v753 = vor.u32 %v751, %v752
    %v754 = vshll.u32 920167782, %v739
    %v755 = vshrl.u32 1326507024, %v740
    %v756 = vor.u32 %v754, %v755
    %vm757 = vcmp.lt.s32.totalorder %v738, 1
    %vm758 = vcmp.lt.s32.totalorder %v738, 2
    %vm759 = vcmp.lt.s32.totalorder %v738, 3
    %vm760 = vcmp.lt.s32.totalorder %v738, 4
    %v761 = vsel %vm757, %v741, %v744
    %v762 = vsel %vm760, %v750, 2102212464
    %v763 = vsel %vm759, %v747, %v762
    %v764 = vsel %vm758, %v761, %v763
    %v765 = vsel %vm757, %v744, %v747
    %v766 = vsel %vm760, %v753, 920167782
    %v767 = vsel %vm759, %v750, %v766
    %v768 = vsel %vm758, %v765, %v767
    %v769 = vsel %vm757, %v747, %v750
    %v770 = vsel %vm760, %v756, 1326507024
    %v771 = vsel %vm759, %v753, %v770
    %v772 = vsel %vm758, %v769, %v771
    %v773 = vshll.u32 %v733, 8
    %v774 = vand.u32 %v773, 65535
    %v775 = vshrl.u32 %v773, 16
    %v776 = vand.u32 %v772, 65535
    %v777 = vshrl.u32 %v772, 16
    %v778 = vmul.u32 %v774, %v776
    %v779 = vmul.u32 %v774, %v777
    %v780 = vmul.u32 %v775, %v776
    %v781 = vmul.u32 %v775, %v777
    %v782 = vshll.u32 %v779, 16
    %v783 = vshrl.u32 %v779, 16
    %v784 = vshll.u32 %v780, 16
    %v785 = vshrl.u32 %v780, 16
    %vm786 = vc.u32 %v778, %v782
    %v787 = vsel %vm786, 1, 0
    %v788 = vadd.s32 %v778, %v782
    %v789 = vadd.s32 %v781, %v787
    %vm790 = vc.u32 %v788, %v784
    %v791 = vsel %vm790, 1, 0
    %v792 = vadd.s32 %v788, %v784
    %v793 = vadd.s32 %v789, %v791
    %v794 = vadd.s32 %v793, %v783
    %v795 = vadd.s32 %v794, %v785
    %v796 = vand.u32 %v773, 65535
    %v797 = vshrl.u32 %v773, 16
    %v798 = vand.u32 %v768, 65535
    %v799 = vshrl.u32 %v768, 16
    %v800 = vmul.u32 %v796, %v798
    %v801 = vmul.u32 %v796, %v799
    %v802 = vmul.u32 %v797, %v798
    %v803 = vmul.u32 %v797, %v799
    %v804 = vshll.u32 %v801, 16
    %v805 = vshrl.u32 %v801, 16
    %v806 = vshll.u32 %v802, 16
    %v807 = vshrl.u32 %v802, 16
    %vm808 = vc.u32 %v800, %v804
    %v809 = vsel %vm808, 1, 0
    %v810 = vadd.s32 %v800, %v804
    %v811 = vadd.s32 %v803, %v809
    %vm812 = vc.u32 %v810, %v806
    %v813 = vsel %vm812, 1, 0
    %v814 = vadd.s32 %v810, %v806
    %v815 = vadd.s32 %v811, %v813
    %v816 = vadd.s32 %v815, %v805
    %v817 = vadd.s32 %v816, %v807
    %v818 = vmul.u32 %v773, %v764
    %v819 = vadd.s32 %v795, %v814
    %vm820 = vc.u32 %v795, %v814
    %v821 = vadd.s32 %v817, 1
    %v822 = vsel %vm820, %v821, %v817
    %v823 = vadd.s32 %v818, %v822
    %v824 = vadd.s32 %v823, 536870912
    %v825 = vshrl.u32 %v824, 30
    %v826 = vshll.u32 %v825, 30
    %v827 = vsub.s32 %v823, %v826
    %vm828 = vcmp.lt.s32.totalorder %v827, 0
    %v829 = vsub.s32 0, %v827
    %v830 = vsel %vm828, %v829, %v827
    %v831 = vclz %v830
    %v832 = vsub.s32 %v831, 2
    %vm833 = vcmp.gt.s32.totalorder 0, %v832
    %v834 = vsel %vm833, 0, %v832
    %v835 = vsub.s32 32, %v834
    %v836 = vshll.u32 %v827, %v834
    %v837 = vshrl.u32 %v819, %v835
    %v838 = vor.u32 %v836, %v837
    %v839 = vsub.s32 4294967266, %v834
    %v840 = vadd.s32 %v839, 127
    %v841 = vshll.u32 %v840, 23
    %v842 = vor.u32 4788187, %v841
    %v843 = vand.u32 2147483647, %v842
    %v845 = vcvt.s32.f32 %v838
    %v846 = vmul.f32 %v845, %v843
    %v847 = vxor.u32 %v846, 2147483648
    %v848 = vsel %vm727, %v847, %v846
    %v849 = vsub.s32 4, %v825
    %v850 = vsel %vm727, %v849, %v825
    %v851 = vsel %vm726, %v23, %v848
    %v852 = vsel %vm726, 0, %v850
    %v853 = vmul.f32 %v851, %v851
    %v854 = vmul.f32 %v853, -0.001358992
    %v855 = vadd.f32 %v854, 0.041655596
    %v856 = vmul.f32 %v853, %v855
    %v857 = vadd.f32 %v856, -0.4999988
    %v858 = vmul.f32 %v853, %v857
    %v859 = vadd.f32 1.0, %v858
    %v860 = vmul.f32 %v851, %v851
    %v861 = vmul.f32 %v860, -0.00019511016
    %v862 = vadd.f32 %v861, 0.008332121
    %v863 = vmul.f32 %v860, %v862
    %v864 = vadd.f32 %v863, -0.16666654
    %v865 = vmul.f32 %v860, %v864
    %v866 = vadd.f32 %v865, 1.0
    %v867 = vmul.f32 %v866, %v851
    %vm868 = vweird.f32 %v23
    %v869 = vand.u32 %v852, 3
    %vm870 = vcmp.lt.s32.totalorder %v869, 2
    %vm871 = vcmp.eq.s32.totalorder %v869, 0
    %v872 = vxor.u32 %v867, 2147483648
    %v873 = vsel %vm871, %v859, %v872
    %vm874 = vcmp.eq.s32.totalorder %v869, 2
    %v875 = vxor.u32 %v859, 2147483648
    %v876 = vsel %vm874, %v875, %v867
    %v877 = vsel %vm870, %v873, %v876
    %v878 = vsel %vm868, nan, %v877
    %v879 = vand.u32 2147483647, %v24
    %vm880 = vcmp.le.f32.partialorder %v879, 0.7853982
    %vm881 = vcmp.lt.s32.totalorder %v24, 0
    %v882 = vand.u32 %v24, 2139095040
    %v883 = vshrl.u32 %v882, 23
    %v884 = vsub.s32 %v883, 127
    %v885 = vand.u32 2147483647, %v24
    %v886 = vand.u32 %v885, 8388607
    %v887 = vor.u32 %v886, 8388608
    %v888 = vsub.s32 0, %v887
    %v889 = vadd.s32 %v884, 1
    %vm890 = vcmp.gt.s32.totalorder %v889, 0
    %v891 = vsel %vm890, %v889, 0
    %v892 = vshrl.u32 %v891, 5
    %v893 = vand.u32 %v891, 31
    %v894 = vsub.s32 32, %v893
    %v895 = vshrl.u32 683565275, %v894
    %v896 = vshll.u32 683565275, %v893
    %v897 = vshrl.u32 2475754826, %v894
    %v898 = vor.u32 %v896, %v897
    %v899 = vshll.u32 2475754826, %v893
    %v900 = vshrl.u32 2131351028, %v894
    %v901 = vor.u32 %v899, %v900
    %v902 = vshll.u32 2131351028, %v893
    %v903 = vshrl.u32 2102212464, %v894
    %v904 = vor.u32 %v902, %v903
    %v905 = vshll.u32 2102212464, %v893
    %v906 = vshrl.u32 920167782, %v894
    %v907 = vor.u32 %v905, %v906
    %v908 = vshll.u32 920167782, %v893
    %v909 = vshrl.u32 1326507024, %v894
    %v910 = vor.u32 %v908, %v909
    %vm911 = vcmp.lt.s32.totalorder %v892, 1
    %vm912 = vcmp.lt.s32.totalorder %v892, 2
    %vm913 = vcmp.lt.s32.totalorder %v892, 3
    %vm914 = vcmp.lt.s32.totalorder %v892, 4
    %v915 = vsel %vm911, %v895, %v898
    %v916 = vsel %vm914, %v904, 2102212464
    %v917 = vsel %vm913, %v901, %v916
    %v918 = vsel %vm912, %v915, %v917
    %v919 = vsel %vm911, %v898, %v901
    %v920 = vsel %vm914, %v907, 920167782
    %v921 = vsel %vm913, %v904, %v920
    %v922 = vsel %vm912, %v919, %v921
    %v923 = vsel %vm911, %v901, %v904
    %v924 = vsel %vm914, %v910, 1326507024
    %v925 = vsel %vm913, %v907, %v924
    %v926 = vsel %vm912, %v923, %v925
    %v927 = vshll.u32 %v887, 8
    %v928 = vand.u32 %v927, 65535
    %v929 = vshrl.u32 %v927, 16
    %v930 = vand.u32 %v926, 65535
    %v931 = vshrl.u32 %v926, 16
    %v932 = vmul.u32 %v928, %v930
    %v933 = vmul.u32 %v928, %v931
    %v934 = vmul.u32 %v929, %v930
    %v935 = vmul.u32 %v929, %v931
    %v936 = vshll.u32 %v933, 16
    %v937 = vshrl.u32 %v933, 16
    %v938 = vshll.u32 %v934, 16
    %v939 = vshrl.u32 %v934, 16
    %vm940 = vc.u32 %v932, %v936
    %v941 = vsel %vm940, 1, 0
    %v942 = vadd.s32 %v932, %v936
    %v943 = vadd.s32 %v935, %v941
    %vm944 = vc.u32 %v942, %v938
    %v945 = vsel %vm944, 1, 0
    %v946 = vadd.s32 %v942, %v938
    %v947 = vadd.s32 %v943, %v945
    %v948 = vadd.s32 %v947, %v937
    %v949 = vadd.s32 %v948, %v939
    %v950 = vand.u32 %v927, 65535
    %v951 = vshrl.u32 %v927, 16
    %v952 = vand.u32 %v922, 65535
    %v953 = vshrl.u32 %v922, 16
    %v954 = vmul.u32 %v950, %v952
    %v955 = vmul.u32 %v950, %v953
    %v956 = vmul.u32 %v951, %v952
    %v957 = vmul.u32 %v951, %v953
    %v958 = vshll.u32 %v955, 16
    %v959 = vshrl.u32 %v955, 16
    %v960 = vshll.u32 %v956, 16
    %v961 = vshrl.u32 %v956, 16
    %vm962 = vc.u32 %v954, %v958
    %v963 = vsel %vm962, 1, 0
    %v964 = vadd.s32 %v954, %v958
    %v965 = vadd.s32 %v957, %v963
    %vm966 = vc.u32 %v964, %v960
    %v967 = vsel %vm966, 1, 0
    %v968 = vadd.s32 %v964, %v960
    %v969 = vadd.s32 %v965, %v967
    %v970 = vadd.s32 %v969, %v959
    %v971 = vadd.s32 %v970, %v961
    %v972 = vmul.u32 %v927, %v918
    %v973 = vadd.s32 %v949, %v968
    %vm974 = vc.u32 %v949, %v968
    %v975 = vadd.s32 %v971, 1
    %v976 = vsel %vm974, %v975, %v971
    %v977 = vadd.s32 %v972, %v976
    %v978 = vadd.s32 %v977, 536870912
    %v979 = vshrl.u32 %v978, 30
    %v980 = vshll.u32 %v979, 30
    %v981 = vsub.s32 %v977, %v980
    %vm982 = vcmp.lt.s32.totalorder %v981, 0
    %v983 = vsub.s32 0, %v981
    %v984 = vsel %vm982, %v983, %v981
    %v985 = vclz %v984
    %v986 = vsub.s32 %v985, 2
    %vm987 = vcmp.gt.s32.totalorder 0, %v986
    %v988 = vsel %vm987, 0, %v986
    %v989 = vsub.s32 32, %v988
    %v990 = vshll.u32 %v981, %v988
    %v991 = vshrl.u32 %v973, %v989
    %v992 = vor.u32 %v990, %v991
    %v993 = vsub.s32 4294967266, %v988
    %v994 = vadd.s32 %v993, 127
    %v995 = vshll.u32 %v994, 23
    %v996 = vor.u32 4788187, %v995
    %v997 = vand.u32 2147483647, %v996
    %v999 = vcvt.s32.f32 %v992
    %v1000 = vmul.f32 %v999, %v997
    %v1001 = vxor.u32 %v1000, 2147483648
    %v1002 = vsel %vm881, %v1001, %v1000
    %v1003 = vsub.s32 4, %v979
    %v1004 = vsel %vm881, %v1003, %v979
    %v1005 = vsel %vm880, %v24, %v1002
    %v1006 = vsel %vm880, 0, %v1004
    %v1007 = vmul.f32 %v1005, %v1005
    %v1008 = vmul.f32 %v1007, -0.001358992
    %v1009 = vadd.f32 %v1008, 0.041655596
    %v1010 = vmul.f32 %v1007, %v1009
    %v1011 = vadd.f32 %v1010, -0.4999988
    %v1012 = vmul.f32 %v1007, %v1011
    %v1013 = vadd.f32 1.0, %v1012
    %v1014 = vmul.f32 %v1005, %v1005
    %v1015 = vmul.f32 %v1014, -0.00019511016
    %v1016 = vadd.f32 %v1015, 0.008332121
    %v1017 = vmul.f32 %v1014, %v1016
    %v1018 = vadd.f32 %v1017, -0.16666654
    %v1019 = vmul.f32 %v1014, %v1018
    %v1020 = vadd.f32 %v1019, 1.0
    %v1021 = vmul.f32 %v1020, %v1005
    %vm1022 = vweird.f32 %v24
    %v1023 = vand.u32 %v1006, 3
    %vm1024 = vcmp.lt.s32.totalorder %v1023, 2
    %vm1025 = vcmp.eq.s32.totalorder %v1023, 0
    %v1026 = vxor.u32 %v1021, 2147483648
    %v1027 = vsel %vm1025, %v1013, %v1026
    %vm1028 = vcmp.eq.s32.totalorder %v1023, 2
    %v1029 = vxor.u32 %v1013, 2147483648
    %v1030 = vsel %vm1028, %v1029, %v1021
    %v1031 = vsel %vm1024, %v1027, %v1030
    %v1032 = vsel %vm1022, nan, %v1031
    %v1033 = vand.u32 2147483647, %v25
    %vm1034 = vcmp.le.f32.partialorder %v1033, 0.7853982
    %vm1035 = vcmp.lt.s32.totalorder %v25, 0
    %v1036 = vand.u32 %v25, 2139095040
    %v1037 = vshrl.u32 %v1036, 23
    %v1038 = vsub.s32 %v1037, 127
    %v1039 = vand.u32 2147483647, %v25
    %v1040 = vand.u32 %v1039, 8388607
    %v1041 = vor.u32 %v1040, 8388608
    %v1042 = vsub.s32 0, %v1041
    %v1043 = vadd.s32 %v1038, 1
    %vm1044 = vcmp.gt.s32.totalorder %v1043, 0
    %v1045 = vsel %vm1044, %v1043, 0
    %v1046 = vshrl.u32 %v1045, 5
    %v1047 = vand.u32 %v1045, 31
    %v1048 = vsub.s32 32, %v1047
    %v1049 = vshrl.u32 683565275, %v1048
    %v1050 = vshll.u32 683565275, %v1047
    %v1051 = vshrl.u32 2475754826, %v1048
    %v1052 = vor.u32 %v1050, %v1051
    %v1053 = vshll.u32 2475754826, %v1047
    %v1054 = vshrl.u32 2131351028, %v1048
    %v1055 = vor.u32 %v1053, %v1054
    %v1056 = vshll.u32 2131351028, %v1047
    %v1057 = vshrl.u32 2102212464, %v1048
    %v1058 = vor.u32 %v1056, %v1057
    %v1059 = vshll.u32 2102212464, %v1047
    %v1060 = vshrl.u32 920167782, %v1048
    %v1061 = vor.u32 %v1059, %v1060
    %v1062 = vshll.u32 920167782, %v1047
    %v1063 = vshrl.u32 1326507024, %v1048
    %v1064 = vor.u32 %v1062, %v1063
    %vm1065 = vcmp.lt.s32.totalorder %v1046, 1
    %vm1066 = vcmp.lt.s32.totalorder %v1046, 2
    %vm1067 = vcmp.lt.s32.totalorder %v1046, 3
    %vm1068 = vcmp.lt.s32.totalorder %v1046, 4
    %v1069 = vsel %vm1065, %v1049, %v1052
    %v1070 = vsel %vm1068, %v1058, 2102212464
    %v1071 = vsel %vm1067, %v1055, %v1070
    %v1072 = vsel %vm1066, %v1069, %v1071
    %v1073 = vsel %vm1065, %v1052, %v1055
    %v1074 = vsel %vm1068, %v1061, 920167782
    %v1075 = vsel %vm1067, %v1058, %v1074
    %v1076 = vsel %vm1066, %v1073, %v1075
    %v1077 = vsel %vm1065, %v1055, %v1058
    %v1078 = vsel %vm1068, %v1064, 1326507024
    %v1079 = vsel %vm1067, %v1061, %v1078
    %v1080 = vsel %vm1066, %v1077, %v1079
    %v1081 = vshll.u32 %v1041, 8
    %v1082 = vand.u32 %v1081, 65535
    %v1083 = vshrl.u32 %v1081, 16
    %v1084 = vand.u32 %v1080, 65535
    %v1085 = vshrl.u32 %v1080, 16
    %v1086 = vmul.u32 %v1082, %v1084
    %v1087 = vmul.u32 %v1082, %v1085
    %v1088 = vmul.u32 %v1083, %v1084
    %v1089 = vmul.u32 %v1083, %v1085
    %v1090 = vshll.u32 %v1087, 16
    %v1091 = vshrl.u32 %v1087, 16
    %v1092 = vshll.u32 %v1088, 16
    %v1093 = vshrl.u32 %v1088, 16
    %vm1094 = vc.u32 %v1086, %v1090
    %v1095 = vsel %vm1094, 1, 0
    %v1096 = vadd.s32 %v1086, %v1090
    %v1097 = vadd.s32 %v1089, %v1095
    %vm1098 = vc.u32 %v1096, %v1092
    %v1099 = vsel %vm1098, 1, 0
    %v1100 = vadd.s32 %v1096, %v1092
    %v1101 = vadd.s32 %v1097, %v1099
    %v1102 = vadd.s32 %v1101, %v1091
    %v1103 = vadd.s32 %v1102, %v1093
    %v1104 = vand.u32 %v1081, 65535
    %v1105 = vshrl.u32 %v1081, 16
    %v1106 = vand.u32 %v1076, 65535
    %v1107 = vshrl.u32 %v1076, 16
    %v1108 = vmul.u32 %v1104, %v1106
    %v1109 = vmul.u32 %v1104, %v1107
    %v1110 = vmul.u32 %v1105, %v1106
    %v1111 = vmul.u32 %v1105, %v1107
    %v1112 = vshll.u32 %v1109, 16
    %v1113 = vshrl.u32 %v1109, 16
    %v1114 = vshll.u32 %v1110, 16
    %v1115 = vshrl.u32 %v1110, 16
    %vm1116 = vc.u32 %v1108, %v1112
    %v1117 = vsel %vm1116, 1, 0
    %v1118 = vadd.s32 %v1108, %v1112
    %v1119 = vadd.s32 %v1111, %v1117
    %vm1120 = vc.u32 %v1118, %v1114
    %v1121 = vsel %vm1120, 1, 0
    %v1122 = vadd.s32 %v1118, %v1114
    %v1123 = vadd.s32 %v1119, %v1121
    %v1124 = vadd.s32 %v1123, %v1113
    %v1125 = vadd.s32 %v1124, %v1115
    %v1126 = vmul.u32 %v1081, %v1072
    %v1127 = vadd.s32 %v1103, %v1122
    %vm1128 = vc.u32 %v1103, %v1122
    %v1129 = vadd.s32 %v1125, 1
    %v1130 = vsel %vm1128, %v1129, %v1125
    %v1131 = vadd.s32 %v1126, %v1130
    %v1132 = vadd.s32 %v1131, 536870912
    %v1133 = vshrl.u32 %v1132, 30
    %v1134 = vshll.u32 %v1133, 30
    %v1135 = vsub.s32 %v1131, %v1134
    %vm1136 = vcmp.lt.s32.totalorder %v1135, 0
    %v1137 = vsub.s32 0, %v1135
    %v1138 = vsel %vm1136, %v1137, %v1135
    %v1139 = vclz %v1138
    %v1140 = vsub.s32 %v1139, 2
    %vm1141 = vcmp.gt.s32.totalorder 0, %v1140
    %v1142 = vsel %vm1141, 0, %v1140
    %v1143 = vsub.s32 32, %v1142
    %v1144 = vshll.u32 %v1135, %v1142
    %v1145 = vshrl.u32 %v1127, %v1143
    %v1146 = vor.u32 %v1144, %v1145
    %v1147 = vsub.s32 4294967266, %v1142
    %v1148 = vadd.s32 %v1147, 127
    %v1149 = vshll.u32 %v1148, 23
    %v1150 = vor.u32 4788187, %v1149
    %v1151 = vand.u32 2147483647, %v1150
    %v1153 = vcvt.s32.f32 %v1146
    %v1154 = vmul.f32 %v1153, %v1151
    %v1155 = vxor.u32 %v1154, 2147483648
    %v1156 = vsel %vm1035, %v1155, %v1154
    %v1157 = vsub.s32 4, %v1133
    %v1158 = vsel %vm1035, %v1157, %v1133
    %v1159 = vsel %vm1034, %v25, %v1156
    %v1160 = vsel %vm1034, 0, %v1158
    %v1161 = vmul.f32 %v1159, %v1159
    %v1162 = vmul.f32 %v1161, -0.001358992
    %v1163 = vadd.f32 %v1162, 0.041655596
    %v1164 = vmul.f32 %v1161, %v1163
    %v1165 = vadd.f32 %v1164, -0.4999988
    %v1166 = vmul.f32 %v1161, %v1165
    %v1167 = vadd.f32 1.0, %v1166
    %v1168 = vmul.f32 %v1159, %v1159
    %v1169 = vmul.f32 %v1168, -0.00019511016
    %v1170 = vadd.f32 %v1169, 0.008332121
    %v1171 = vmul.f32 %v1168, %v1170
    %v1172 = vadd.f32 %v1171, -0.16666654
    %v1173 = vmul.f32 %v1168, %v1172
    %v1174 = vadd.f32 %v1173, 1.0
    %v1175 = vmul.f32 %v1174, %v1159
    %vm1176 = vweird.f32 %v25
    %v1177 = vand.u32 %v1160, 3
    %vm1178 = vcmp.lt.s32.totalorder %v1177, 2
    %vm1179 = vcmp.eq.s32.totalorder %v1177, 0
    %v1180 = vxor.u32 %v1175, 2147483648
    %v1181 = vsel %vm1179, %v1167, %v1180
    %vm1182 = vcmp.eq.s32.totalorder %v1177, 2
    %v1183 = vxor.u32 %v1167, 2147483648
    %v1184 = vsel %vm1182, %v1183, %v1175
    %v1185 = vsel %vm1178, %v1181, %v1184
    %v1186 = vsel %vm1176, nan, %v1185
    %v1187 = vand.u32 2147483647, %v26
    %vm1188 = vcmp.le.f32.partialorder %v1187, 0.7853982
    %vm1189 = vcmp.lt.s32.totalorder %v26, 0
    %v1190 = vand.u32 %v26, 2139095040
    %v1191 = vshrl.u32 %v1190, 23
    %v1192 = vsub.s32 %v1191, 127
    %v1193 = vand.u32 2147483647, %v26
    %v1194 = vand.u32 %v1193, 8388607
    %v1195 = vor.u32 %v1194, 8388608
    %v1196 = vsub.s32 0, %v1195
    %v1197 = vadd.s32 %v1192, 1
    %vm1198 = vcmp.gt.s32.totalorder %v1197, 0
    %v1199 = vsel %vm1198, %v1197, 0
    %v1200 = vshrl.u32 %v1199, 5
    %v1201 = vand.u32 %v1199, 31
    %v1202 = vsub.s32 32, %v1201
    %v1203 = vshrl.u32 683565275, %v1202
    %v1204 = vshll.u32 683565275, %v1201
    %v1205 = vshrl.u32 2475754826, %v1202
    %v1206 = vor.u32 %v1204, %v1205
    %v1207 = vshll.u32 2475754826, %v1201
    %v1208 = vshrl.u32 2131351028, %v1202
    %v1209 = vor.u32 %v1207, %v1208
    %v1210 = vshll.u32 2131351028, %v1201
    %v1211 = vshrl.u32 2102212464, %v1202
    %v1212 = vor.u32 %v1210, %v1211
    %v1213 = vshll.u32 2102212464, %v1201
    %v1214 = vshrl.u32 920167782, %v1202
    %v1215 = vor.u32 %v1213, %v1214
    %v1216 = vshll.u32 920167782, %v1201
    %v1217 = vshrl.u32 1326507024, %v1202
    %v1218 = vor.u32 %v1216, %v1217
    %vm1219 = vcmp.lt.s32.totalorder %v1200, 1
    %vm1220 = vcmp.lt.s32.totalorder %v1200, 2
    %vm1221 = vcmp.lt.s32.totalorder %v1200, 3
    %vm1222 = vcmp.lt.s32.totalorder %v1200, 4
    %v1223 = vsel %vm1219, %v1203, %v1206
    %v1224 = vsel %vm1222, %v1212, 2102212464
    %v1225 = vsel %vm1221, %v1209, %v1224
    %v1226 = vsel %vm1220, %v1223, %v1225
    %v1227 = vsel %vm1219, %v1206, %v1209
    %v1228 = vsel %vm1222, %v1215, 920167782
    %v1229 = vsel %vm1221, %v1212, %v1228
    %v1230 = vsel %vm1220, %v1227, %v1229
    %v1231 = vsel %vm1219, %v1209, %v1212
    %v1232 = vsel %vm1222, %v1218, 1326507024
    %v1233 = vsel %vm1221, %v1215, %v1232
    %v1234 = vsel %vm1220, %v1231, %v1233
    %v1235 = vshll.u32 %v1195, 8
    %v1236 = vand.u32 %v1235, 65535
    %v1237 = vshrl.u32 %v1235, 16
    %v1238 = vand.u32 %v1234, 65535
    %v1239 = vshrl.u32 %v1234, 16
    %v1240 = vmul.u32 %v1236, %v1238
    %v1241 = vmul.u32 %v1236, %v1239
    %v1242 = vmul.u32 %v1237, %v1238
    %v1243 = vmul.u32 %v1237, %v1239
    %v1244 = vshll.u32 %v1241, 16
    %v1245 = vshrl.u32 %v1241, 16
    %v1246 = vshll.u32 %v1242, 16
    %v1247 = vshrl.u32 %v1242, 16
    %vm1248 = vc.u32 %v1240, %v1244
    %v1249 = vsel %vm1248, 1, 0
    %v1250 = vadd.s32 %v1240, %v1244
    %v1251 = vadd.s32 %v1243, %v1249
    %vm1252 = vc.u32 %v1250, %v1246
    %v1253 = vsel %vm1252, 1, 0
    %v1254 = vadd.s32 %v1250, %v1246
    %v1255 = vadd.s32 %v1251, %v1253
    %v1256 = vadd.s32 %v1255, %v1245
    %v1257 = vadd.s32 %v1256, %v1247
    %v1258 = vand.u32 %v1235, 65535
    %v1259 = vshrl.u32 %v1235, 16
    %v1260 = vand.u32 %v1230, 65535
    %v1261 = vshrl.u32 %v1230, 16
    %v1262 = vmul.u32 %v1258, %v1260
    %v1263 = vmul.u32 %v1258, %v1261
    %v1264 = vmul.u32 %v1259, %v1260
    %v1265 = vmul.u32 %v1259, %v1261
    %v1266 = vshll.u32 %v1263, 16
    %v1267 = vshrl.u32 %v1263, 16
    %v1268 = vshll.u32 %v1264, 16
    %v1269 = vshrl.u32 %v1264, 16
    %vm1270 = vc.u32 %v1262, %v1266
    %v1271 = vsel %vm1270, 1, 0
    %v1272 = vadd.s32 %v1262, %v1266
    %v1273 = vadd.s32 %v1265, %v1271
    %vm1274 = vc.u32 %v1272, %v1268
    %v1275 = vsel %vm1274, 1, 0
    %v1276 = vadd.s32 %v1272, %v1268
    %v1277 = vadd.s32 %v1273, %v1275
    %v1278 = vadd.s32 %v1277, %v1267
    %v1279 = vadd.s32 %v1278, %v1269
    %v1280 = vmul.u32 %v1235, %v1226
    %v1281 = vadd.s32 %v1257, %v1276
    %vm1282 = vc.u32 %v1257, %v1276
    %v1283 = vadd.s32 %v1279, 1
    %v1284 = vsel %vm1282, %v1283, %v1279
    %v1285 = vadd.s32 %v1280, %v1284
    %v1286 = vadd.s32 %v1285, 536870912
    %v1287 = vshrl.u32 %v1286, 30
    %v1288 = vshll.u32 %v1287, 30
    %v1289 = vsub.s32 %v1285, %v1288
    %vm1290 = vcmp.lt.s32.totalorder %v1289, 0
    %v1291 = vsub.s32 0, %v1289
    %v1292 = vsel %vm1290, %v1291, %v1289
    %v1293 = vclz %v1292
    %v1294 = vsub.s32 %v1293, 2
    %vm1295 = vcmp.gt.s32.totalorder 0, %v1294
    %v1296 = vsel %vm1295, 0, %v1294
    %v1297 = vsub.s32 32, %v1296
    %v1298 = vshll.u32 %v1289, %v1296
    %v1299 = vshrl.u32 %v1281, %v1297
    %v1300 = vor.u32 %v1298, %v1299
    %v1301 = vsub.s32 4294967266, %v1296
    %v1302 = vadd.s32 %v1301, 127
    %v1303 = vshll.u32 %v1302, 23
    %v1304 = vor.u32 4788187, %v1303
    %v1305 = vand.u32 2147483647, %v1304
    %v1307 = vcvt.s32.f32 %v1300
    %v1308 = vmul.f32 %v1307, %v1305
    %v1309 = vxor.u32 %v1308, 2147483648
    %v1310 = vsel %vm1189, %v1309, %v1308
    %v1311 = vsub.s32 4, %v1287
    %v1312 = vsel %vm1189, %v1311, %v1287
    %v1313 = vsel %vm1188, %v26, %v1310
    %v1314 = vsel %vm1188, 0, %v1312
    %v1315 = vmul.f32 %v1313, %v1313
    %v1316 = vmul.f32 %v1315, -0.001358992
    %v1317 = vadd.f32 %v1316, 0.041655596
    %v1318 = vmul.f32 %v1315, %v1317
    %v1319 = vadd.f32 %v1318, -0.4999988
    %v1320 = vmul.f32 %v1315, %v1319
    %v1321 = vadd.f32 1.0, %v1320
    %v1322 = vmul.f32 %v1313, %v1313
    %v1323 = vmul.f32 %v1322, -0.00019511016
    %v1324 = vadd.f32 %v1323, 0.008332121
    %v1325 = vmul.f32 %v1322, %v1324
    %v1326 = vadd.f32 %v1325, -0.16666654
    %v1327 = vmul.f32 %v1322, %v1326
    %v1328 = vadd.f32 %v1327, 1.0
    %v1329 = vmul.f32 %v1328, %v1313
    %vm1330 = vweird.f32 %v26
    %v1331 = vand.u32 %v1314, 3
    %vm1332 = vcmp.lt.s32.totalorder %v1331, 2
    %vm1333 = vcmp.eq.s32.totalorder %v1331, 0
    %v1334 = vxor.u32 %v1329, 2147483648
    %v1335 = vsel %vm1333, %v1321, %v1334
    %vm1336 = vcmp.eq.s32.totalorder %v1331, 2
    %v1337 = vxor.u32 %v1321, 2147483648
    %v1338 = vsel %vm1336, %v1337, %v1329
    %v1339 = vsel %vm1332, %v1335, %v1338
    %v1340 = vsel %vm1330, nan, %v1339
    %1345 = vst [vmem:[#allocation1] ss:$2 sm:$0xff] %v878
    %s1346 = scalar_lea.vmem [#allocation1], 16
    %1347 = vst [vmem:[%s1346] ss:$2 sm:$0xff] %v1032
    %s1348 = scalar_lea.vmem [#allocation1], 32
    %1349 = vst [vmem:[%s1348] ss:$2 sm:$0xff] %v1186
    %s1350 = scalar_lea.vmem [#allocation1], 48
    %1351 = vst [vmem:[%s1350] ss:$2 sm:$0xff] %v1340
    %v1352 = vld.sshfl [vmem:[#allocation1] sm:$0xff pattern:$0x75316420]
    %v1353 = vld.sshfl [vmem:[#allocation1 + $0x8] sm:$0xff pattern:$0x75316420]
    %v1354 = vld.sshfl [vmem:[#allocation1 + $0x10] sm:$0xff pattern:$0x75316420]
    %v1355 = vld.sshfl [vmem:[#allocation1 + $0x18] sm:$0xff pattern:$0x75316420]
    %v1356 = vld.sshfl [vmem:[#allocation1 + $0x20] sm:$0xff pattern:$0x75316420]
    %v1357 = vld.sshfl [vmem:[#allocation1 + $0x28] sm:$0xff pattern:$0x75316420]
    %v1358 = vld.sshfl [vmem:[#allocation1 + $0x30] sm:$0xff pattern:$0x75316420]
    %v1359 = vld.sshfl [vmem:[#allocation1 + $0x38] sm:$0xff pattern:$0x75316420]
    %v1360 = vrot.slane %v1352, 2
    %v1361 = vrot.slane %v1353, 2
    %v1362 = vrot.slane %v1354, 2
    %v1363 = vrot.slane %v1355, 2
    %v1364 = vrot.slane %v1356, 2
    %v1365 = vrot.slane %v1357, 2
    %v1366 = vrot.slane %v1358, 2
    %v1367 = vrot.slane %v1359, 2
    %1376 = vst [vmem:[#allocation5] sm:$0xc0] %v1360
    %1377 = vst [vmem:[#allocation5 + $0x8] sm:$0xc0] %v1361
    %1378 = vst [vmem:[#allocation5 + $0x10] sm:$0xc0] %v1362
    %1379 = vst [vmem:[#allocation5 + $0x18] sm:$0xc0] %v1363
    %1380 = vst [vmem:[#allocation5 + $0x20] sm:$0xc0] %v1364
    %1381 = vst [vmem:[#allocation5 + $0x28] sm:$0xc0] %v1365
    %1382 = vst [vmem:[#allocation5 + $0x30] sm:$0xc0] %v1366
    %1383 = vst [vmem:[#allocation5 + $0x38] sm:$0xc0] %v1367
    %1384 = vst [vmem:[#allocation5 + $0x40] sm:$0x1] %v1360
    %1385 = vst [vmem:[#allocation5 + $0x48] sm:$0x1] %v1361
    %1386 = vst [vmem:[#allocation5 + $0x50] sm:$0x1] %v1362
    %1387 = vst [vmem:[#allocation5 + $0x58] sm:$0x1] %v1363
    %1388 = vst [vmem:[#allocation5 + $0x60] sm:$0x1] %v1364
    %1389 = vst [vmem:[#allocation5 + $0x68] sm:$0x1] %v1365
    %1390 = vst [vmem:[#allocation5 + $0x70] sm:$0x1] %v1366
    %1391 = vst [vmem:[#allocation5 + $0x78] sm:$0x1] %v1367
    %v1392 = vmul.f32 %v23, 2.0
    %v1393 = vmul.f32 %v24, 2.0
    %v1394 = vmul.f32 %v25, 2.0
    %v1395 = vmul.f32 %v26, 2.0
    %v1396 = vand.u32 2147483647, %v1392
    %vm1397 = vcmp.le.f32.partialorder %v1396, 0.7853982
    %vm1398 = vcmp.lt.s32.totalorder %v1392, 0
    %v1399 = vand.u32 %v1392, 2139095040
    %v1400 = vshrl.u32 %v1399, 23
    %v1401 = vsub.s32 %v1400, 127
    %v1402 = vand.u32 2147483647, %v1392
    %v1403 = vand.u32 %v1402, 8388607
    %v1404 = vor.u32 %v1403, 8388608
    %v1405 = vsub.s32 0, %v1404
    %v1406 = vadd.s32 %v1401, 1
    %vm1407 = vcmp.gt.s32.totalorder %v1406, 0
    %v1408 = vsel %vm1407, %v1406, 0
    %v1409 = vshrl.u32 %v1408, 5
    %v1410 = vand.u32 %v1408, 31
    %v1411 = vsub.s32 32, %v1410
    %v1412 = vshrl.u32 683565275, %v1411
    %v1413 = vshll.u32 683565275, %v1410
    %v1414 = vshrl.u32 2475754826, %v1411
    %v1415 = vor.u32 %v1413, %v1414
    %v1416 = vshll.u32 2475754826, %v1410
    %v1417 = vshrl.u32 2131351028, %v1411
    %v1418 = vor.u32 %v1416, %v1417
    %v1419 = vshll.u32 2131351028, %v1410
    %v1420 = vshrl.u32 2102212464, %v1411
    %v1421 = vor.u32 %v1419, %v1420
    %v1422 = vshll.u32 2102212464, %v1410
    %v1423 = vshrl.u32 920167782, %v1411
    %v1424 = vor.u32 %v1422, %v1423
    %v1425 = vshll.u32 920167782, %v1410
    %v1426 = vshrl.u32 1326507024, %v1411
    %v1427 = vor.u32 %v1425, %v1426
    %vm1428 = vcmp.lt.s32.totalorder %v1409, 1
    %vm1429 = vcmp.lt.s32.totalorder %v1409, 2
    %vm1430 = vcmp.lt.s32.totalorder %v1409, 3
    %vm1431 = vcmp.lt.s32.totalorder %v1409, 4
    %v1432 = vsel %vm1428, %v1412, %v1415
    %v1433 = vsel %vm1431, %v1421, 2102212464
    %v1434 = vsel %vm1430, %v1418, %v1433
    %v1435 = vsel %vm1429, %v1432, %v1434
    %v1436 = vsel %vm1428, %v1415, %v1418
    %v1437 = vsel %vm1431, %v1424, 920167782
    %v1438 = vsel %vm1430, %v1421, %v1437
    %v1439 = vsel %vm1429, %v1436, %v1438
    %v1440 = vsel %vm1428, %v1418, %v1421
    %v1441 = vsel %vm1431, %v1427, 1326507024
    %v1442 = vsel %vm1430, %v1424, %v1441
    %v1443 = vsel %vm1429, %v1440, %v1442
    %v1444 = vshll.u32 %v1404, 8
    %v1445 = vand.u32 %v1444, 65535
    %v1446 = vshrl.u32 %v1444, 16
    %v1447 = vand.u32 %v1443, 65535
    %v1448 = vshrl.u32 %v1443, 16
    %v1449 = vmul.u32 %v1445, %v1447
    %v1450 = vmul.u32 %v1445, %v1448
    %v1451 = vmul.u32 %v1446, %v1447
    %v1452 = vmul.u32 %v1446, %v1448
    %v1453 = vshll.u32 %v1450, 16
    %v1454 = vshrl.u32 %v1450, 16
    %v1455 = vshll.u32 %v1451, 16
    %v1456 = vshrl.u32 %v1451, 16
    %vm1457 = vc.u32 %v1449, %v1453
    %v1458 = vsel %vm1457, 1, 0
    %v1459 = vadd.s32 %v1449, %v1453
    %v1460 = vadd.s32 %v1452, %v1458
    %vm1461 = vc.u32 %v1459, %v1455
    %v1462 = vsel %vm1461, 1, 0
    %v1463 = vadd.s32 %v1459, %v1455
    %v1464 = vadd.s32 %v1460, %v1462
    %v1465 = vadd.s32 %v1464, %v1454
    %v1466 = vadd.s32 %v1465, %v1456
    %v1467 = vand.u32 %v1444, 65535
    %v1468 = vshrl.u32 %v1444, 16
    %v1469 = vand.u32 %v1439, 65535
    %v1470 = vshrl.u32 %v1439, 16
    %v1471 = vmul.u32 %v1467, %v1469
    %v1472 = vmul.u32 %v1467, %v1470
    %v1473 = vmul.u32 %v1468, %v1469
    %v1474 = vmul.u32 %v1468, %v1470
    %v1475 = vshll.u32 %v1472, 16
    %v1476 = vshrl.u32 %v1472, 16
    %v1477 = vshll.u32 %v1473, 16
    %v1478 = vshrl.u32 %v1473, 16
    %vm1479 = vc.u32 %v1471, %v1475
    %v1480 = vsel %vm1479, 1, 0
    %v1481 = vadd.s32 %v1471, %v1475
    %v1482 = vadd.s32 %v1474, %v1480
    %vm1483 = vc.u32 %v1481, %v1477
    %v1484 = vsel %vm1483, 1, 0
    %v1485 = vadd.s32 %v1481, %v1477
    %v1486 = vadd.s32 %v1482, %v1484
    %v1487 = vadd.s32 %v1486, %v1476
    %v1488 = vadd.s32 %v1487, %v1478
    %v1489 = vmul.u32 %v1444, %v1435
    %v1490 = vadd.s32 %v1466, %v1485
    %vm1491 = vc.u32 %v1466, %v1485
    %v1492 = vadd.s32 %v1488, 1
    %v1493 = vsel %vm1491, %v1492, %v1488
    %v1494 = vadd.s32 %v1489, %v1493
    %v1495 = vadd.s32 %v1494, 536870912
    %v1496 = vshrl.u32 %v1495, 30
    %v1497 = vshll.u32 %v1496, 30
    %v1498 = vsub.s32 %v1494, %v1497
    %vm1499 = vcmp.lt.s32.totalorder %v1498, 0
    %v1500 = vsub.s32 0, %v1498
    %v1501 = vsel %vm1499, %v1500, %v1498
    %v1502 = vclz %v1501
    %v1503 = vsub.s32 %v1502, 2
    %vm1504 = vcmp.gt.s32.totalorder 0, %v1503
    %v1505 = vsel %vm1504, 0, %v1503
    %v1506 = vsub.s32 32, %v1505
    %v1507 = vshll.u32 %v1498, %v1505
    %v1508 = vshrl.u32 %v1490, %v1506
    %v1509 = vor.u32 %v1507, %v1508
    %v1510 = vsub.s32 4294967266, %v1505
    %v1511 = vadd.s32 %v1510, 127
    %v1512 = vshll.u32 %v1511, 23
    %v1513 = vor.u32 4788187, %v1512
    %v1514 = vand.u32 2147483647, %v1513
    %v1516 = vcvt.s32.f32 %v1509
    %v1517 = vmul.f32 %v1516, %v1514
    %v1518 = vxor.u32 %v1517, 2147483648
    %v1519 = vsel %vm1398, %v1518, %v1517
    %v1520 = vsub.s32 4, %v1496
    %v1521 = vsel %vm1398, %v1520, %v1496
    %v1522 = vsel %vm1397, %v1392, %v1519
    %v1523 = vsel %vm1397, 0, %v1521
    %v1524 = vmul.f32 %v1522, %v1522
    %v1525 = vmul.f32 %v1524, -0.001358992
    %v1526 = vadd.f32 %v1525, 0.041655596
    %v1527 = vmul.f32 %v1524, %v1526
    %v1528 = vadd.f32 %v1527, -0.4999988
    %v1529 = vmul.f32 %v1524, %v1528
    %v1530 = vadd.f32 1.0, %v1529
    %v1531 = vmul.f32 %v1522, %v1522
    %v1532 = vmul.f32 %v1531, -0.00019511016
    %v1533 = vadd.f32 %v1532, 0.008332121
    %v1534 = vmul.f32 %v1531, %v1533
    %v1535 = vadd.f32 %v1534, -0.16666654
    %v1536 = vmul.f32 %v1531, %v1535
    %v1537 = vadd.f32 %v1536, 1.0
    %v1538 = vmul.f32 %v1537, %v1522
    %vm1539 = vweird.f32 %v1392
    %v1540 = vadd.s32 %v1523, 3
    %v1541 = vand.u32 %v1540, 3
    %vm1542 = vcmp.lt.s32.totalorder %v1541, 2
    %vm1543 = vcmp.eq.s32.totalorder %v1541, 0
    %v1544 = vxor.u32 %v1538, 2147483648
    %v1545 = vsel %vm1543, %v1530, %v1544
    %vm1546 = vcmp.eq.s32.totalorder %v1541, 2
    %v1547 = vxor.u32 %v1530, 2147483648
    %v1548 = vsel %vm1546, %v1547, %v1538
    %v1549 = vsel %vm1542, %v1545, %v1548
    %v1550 = vsel %vm1539, nan, %v1549
    %v1551 = vand.u32 2147483647, %v1393
    %vm1552 = vcmp.le.f32.partialorder %v1551, 0.7853982
    %vm1553 = vcmp.lt.s32.totalorder %v1393, 0
    %v1554 = vand.u32 %v1393, 2139095040
    %v1555 = vshrl.u32 %v1554, 23
    %v1556 = vsub.s32 %v1555, 127
    %v1557 = vand.u32 2147483647, %v1393
    %v1558 = vand.u32 %v1557, 8388607
    %v1559 = vor.u32 %v1558, 8388608
    %v1560 = vsub.s32 0, %v1559
    %v1561 = vadd.s32 %v1556, 1
    %vm1562 = vcmp.gt.s32.totalorder %v1561, 0
    %v1563 = vsel %vm1562, %v1561, 0
    %v1564 = vshrl.u32 %v1563, 5
    %v1565 = vand.u32 %v1563, 31
    %v1566 = vsub.s32 32, %v1565
    %v1567 = vshrl.u32 683565275, %v1566
    %v1568 = vshll.u32 683565275, %v1565
    %v1569 = vshrl.u32 2475754826, %v1566
    %v1570 = vor.u32 %v1568, %v1569
    %v1571 = vshll.u32 2475754826, %v1565
    %v1572 = vshrl.u32 2131351028, %v1566
    %v1573 = vor.u32 %v1571, %v1572
    %v1574 = vshll.u32 2131351028, %v1565
    %v1575 = vshrl.u32 2102212464, %v1566
    %v1576 = vor.u32 %v1574, %v1575
    %v1577 = vshll.u32 2102212464, %v1565
    %v1578 = vshrl.u32 920167782, %v1566
    %v1579 = vor.u32 %v1577, %v1578
    %v1580 = vshll.u32 920167782, %v1565
    %v1581 = vshrl.u32 1326507024, %v1566
    %v1582 = vor.u32 %v1580, %v1581
    %vm1583 = vcmp.lt.s32.totalorder %v1564, 1
    %vm1584 = vcmp.lt.s32.totalorder %v1564, 2
    %vm1585 = vcmp.lt.s32.totalorder %v1564, 3
    %vm1586 = vcmp.lt.s32.totalorder %v1564, 4
    %v1587 = vsel %vm1583, %v1567, %v1570
    %v1588 = vsel %vm1586, %v1576, 2102212464
    %v1589 = vsel %vm1585, %v1573, %v1588
    %v1590 = vsel %vm1584, %v1587, %v1589
    %v1591 = vsel %vm1583, %v1570, %v1573
    %v1592 = vsel %vm1586, %v1579, 920167782
    %v1593 = vsel %vm1585, %v1576, %v1592
    %v1594 = vsel %vm1584, %v1591, %v1593
    %v1595 = vsel %vm1583, %v1573, %v1576
    %v1596 = vsel %vm1586, %v1582, 1326507024
    %v1597 = vsel %vm1585, %v1579, %v1596
    %v1598 = vsel %vm1584, %v1595, %v1597
    %v1599 = vshll.u32 %v1559, 8
    %v1600 = vand.u32 %v1599, 65535
    %v1601 = vshrl.u32 %v1599, 16
    %v1602 = vand.u32 %v1598, 65535
    %v1603 = vshrl.u32 %v1598, 16
    %v1604 = vmul.u32 %v1600, %v1602
    %v1605 = vmul.u32 %v1600, %v1603
    %v1606 = vmul.u32 %v1601, %v1602
    %v1607 = vmul.u32 %v1601, %v1603
    %v1608 = vshll.u32 %v1605, 16
    %v1609 = vshrl.u32 %v1605, 16
    %v1610 = vshll.u32 %v1606, 16
    %v1611 = vshrl.u32 %v1606, 16
    %vm1612 = vc.u32 %v1604, %v1608
    %v1613 = vsel %vm1612, 1, 0
    %v1614 = vadd.s32 %v1604, %v1608
    %v1615 = vadd.s32 %v1607, %v1613
    %vm1616 = vc.u32 %v1614, %v1610
    %v1617 = vsel %vm1616, 1, 0
    %v1618 = vadd.s32 %v1614, %v1610
    %v1619 = vadd.s32 %v1615, %v1617
    %v1620 = vadd.s32 %v1619, %v1609
    %v1621 = vadd.s32 %v1620, %v1611
    %v1622 = vand.u32 %v1599, 65535
    %v1623 = vshrl.u32 %v1599, 16
    %v1624 = vand.u32 %v1594, 65535
    %v1625 = vshrl.u32 %v1594, 16
    %v1626 = vmul.u32 %v1622, %v1624
    %v1627 = vmul.u32 %v1622, %v1625
    %v1628 = vmul.u32 %v1623, %v1624
    %v1629 = vmul.u32 %v1623, %v1625
    %v1630 = vshll.u32 %v1627, 16
    %v1631 = vshrl.u32 %v1627, 16
    %v1632 = vshll.u32 %v1628, 16
    %v1633 = vshrl.u32 %v1628, 16
    %vm1634 = vc.u32 %v1626, %v1630
    %v1635 = vsel %vm1634, 1, 0
    %v1636 = vadd.s32 %v1626, %v1630
    %v1637 = vadd.s32 %v1629, %v1635
    %vm1638 = vc.u32 %v1636, %v1632
    %v1639 = vsel %vm1638, 1, 0
    %v1640 = vadd.s32 %v1636, %v1632
    %v1641 = vadd.s32 %v1637, %v1639
    %v1642 = vadd.s32 %v1641, %v1631
    %v1643 = vadd.s32 %v1642, %v1633
    %v1644 = vmul.u32 %v1599, %v1590
    %v1645 = vadd.s32 %v1621, %v1640
    %vm1646 = vc.u32 %v1621, %v1640
    %v1647 = vadd.s32 %v1643, 1
    %v1648 = vsel %vm1646, %v1647, %v1643
    %v1649 = vadd.s32 %v1644, %v1648
    %v1650 = vadd.s32 %v1649, 536870912
    %v1651 = vshrl.u32 %v1650, 30
    %v1652 = vshll.u32 %v1651, 30
    %v1653 = vsub.s32 %v1649, %v1652
    %vm1654 = vcmp.lt.s32.totalorder %v1653, 0
    %v1655 = vsub.s32 0, %v1653
    %v1656 = vsel %vm1654, %v1655, %v1653
    %v1657 = vclz %v1656
    %v1658 = vsub.s32 %v1657, 2
    %vm1659 = vcmp.gt.s32.totalorder 0, %v1658
    %v1660 = vsel %vm1659, 0, %v1658
    %v1661 = vsub.s32 32, %v1660
    %v1662 = vshll.u32 %v1653, %v1660
    %v1663 = vshrl.u32 %v1645, %v1661
    %v1664 = vor.u32 %v1662, %v1663
    %v1665 = vsub.s32 4294967266, %v1660
    %v1666 = vadd.s32 %v1665, 127
    %v1667 = vshll.u32 %v1666, 23
    %v1668 = vor.u32 4788187, %v1667
    %v1669 = vand.u32 2147483647, %v1668
    %v1671 = vcvt.s32.f32 %v1664
    %v1672 = vmul.f32 %v1671, %v1669
    %v1673 = vxor.u32 %v1672, 2147483648
    %v1674 = vsel %vm1553, %v1673, %v1672
    %v1675 = vsub.s32 4, %v1651
    %v1676 = vsel %vm1553, %v1675, %v1651
    %v1677 = vsel %vm1552, %v1393, %v1674
    %v1678 = vsel %vm1552, 0, %v1676
    %v1679 = vmul.f32 %v1677, %v1677
    %v1680 = vmul.f32 %v1679, -0.001358992
    %v1681 = vadd.f32 %v1680, 0.041655596
    %v1682 = vmul.f32 %v1679, %v1681
    %v1683 = vadd.f32 %v1682, -0.4999988
    %v1684 = vmul.f32 %v1679, %v1683
    %v1685 = vadd.f32 1.0, %v1684
    %v1686 = vmul.f32 %v1677, %v1677
    %v1687 = vmul.f32 %v1686, -0.00019511016
    %v1688 = vadd.f32 %v1687, 0.008332121
    %v1689 = vmul.f32 %v1686, %v1688
    %v1690 = vadd.f32 %v1689, -0.16666654
    %v1691 = vmul.f32 %v1686, %v1690
    %v1692 = vadd.f32 %v1691, 1.0
    %v1693 = vmul.f32 %v1692, %v1677
    %vm1694 = vweird.f32 %v1393
    %v1695 = vadd.s32 %v1678, 3
    %v1696 = vand.u32 %v1695, 3
    %vm1697 = vcmp.lt.s32.totalorder %v1696, 2
    %vm1698 = vcmp.eq.s32.totalorder %v1696, 0
    %v1699 = vxor.u32 %v1693, 2147483648
    %v1700 = vsel %vm1698, %v1685, %v1699
    %vm1701 = vcmp.eq.s32.totalorder %v1696, 2
    %v1702 = vxor.u32 %v1685, 2147483648
    %v1703 = vsel %vm1701, %v1702, %v1693
    %v1704 = vsel %vm1697, %v1700, %v1703
    %v1705 = vsel %vm1694, nan, %v1704
    %v1706 = vand.u32 2147483647, %v1394
    %vm1707 = vcmp.le.f32.partialorder %v1706, 0.7853982
    %vm1708 = vcmp.lt.s32.totalorder %v1394, 0
    %v1709 = vand.u32 %v1394, 2139095040
    %v1710 = vshrl.u32 %v1709, 23
    %v1711 = vsub.s32 %v1710, 127
    %v1712 = vand.u32 2147483647, %v1394
    %v1713 = vand.u32 %v1712, 8388607
    %v1714 = vor.u32 %v1713, 8388608
    %v1715 = vsub.s32 0, %v1714
    %v1716 = vadd.s32 %v1711, 1
    %vm1717 = vcmp.gt.s32.totalorder %v1716, 0
    %v1718 = vsel %vm1717, %v1716, 0
    %v1719 = vshrl.u32 %v1718, 5
    %v1720 = vand.u32 %v1718, 31
    %v1721 = vsub.s32 32, %v1720
    %v1722 = vshrl.u32 683565275, %v1721
    %v1723 = vshll.u32 683565275, %v1720
    %v1724 = vshrl.u32 2475754826, %v1721
    %v1725 = vor.u32 %v1723, %v1724
    %v1726 = vshll.u32 2475754826, %v1720
    %v1727 = vshrl.u32 2131351028, %v1721
    %v1728 = vor.u32 %v1726, %v1727
    %v1729 = vshll.u32 2131351028, %v1720
    %v1730 = vshrl.u32 2102212464, %v1721
    %v1731 = vor.u32 %v1729, %v1730
    %v1732 = vshll.u32 2102212464, %v1720
    %v1733 = vshrl.u32 920167782, %v1721
    %v1734 = vor.u32 %v1732, %v1733
    %v1735 = vshll.u32 920167782, %v1720
    %v1736 = vshrl.u32 1326507024, %v1721
    %v1737 = vor.u32 %v1735, %v1736
    %vm1738 = vcmp.lt.s32.totalorder %v1719, 1
    %vm1739 = vcmp.lt.s32.totalorder %v1719, 2
    %vm1740 = vcmp.lt.s32.totalorder %v1719, 3
    %vm1741 = vcmp.lt.s32.totalorder %v1719, 4
    %v1742 = vsel %vm1738, %v1722, %v1725
    %v1743 = vsel %vm1741, %v1731, 2102212464
    %v1744 = vsel %vm1740, %v1728, %v1743
    %v1745 = vsel %vm1739, %v1742, %v1744
    %v1746 = vsel %vm1738, %v1725, %v1728
    %v1747 = vsel %vm1741, %v1734, 920167782
    %v1748 = vsel %vm1740, %v1731, %v1747
    %v1749 = vsel %vm1739, %v1746, %v1748
    %v1750 = vsel %vm1738, %v1728, %v1731
    %v1751 = vsel %vm1741, %v1737, 1326507024
    %v1752 = vsel %vm1740, %v1734, %v1751
    %v1753 = vsel %vm1739, %v1750, %v1752
    %v1754 = vshll.u32 %v1714, 8
    %v1755 = vand.u32 %v1754, 65535
    %v1756 = vshrl.u32 %v1754, 16
    %v1757 = vand.u32 %v1753, 65535
    %v1758 = vshrl.u32 %v1753, 16
    %v1759 = vmul.u32 %v1755, %v1757
    %v1760 = vmul.u32 %v1755, %v1758
    %v1761 = vmul.u32 %v1756, %v1757
    %v1762 = vmul.u32 %v1756, %v1758
    %v1763 = vshll.u32 %v1760, 16
    %v1764 = vshrl.u32 %v1760, 16
    %v1765 = vshll.u32 %v1761, 16
    %v1766 = vshrl.u32 %v1761, 16
    %vm1767 = vc.u32 %v1759, %v1763
    %v1768 = vsel %vm1767, 1, 0
    %v1769 = vadd.s32 %v1759, %v1763
    %v1770 = vadd.s32 %v1762, %v1768
    %vm1771 = vc.u32 %v1769, %v1765
    %v1772 = vsel %vm1771, 1, 0
    %v1773 = vadd.s32 %v1769, %v1765
    %v1774 = vadd.s32 %v1770, %v1772
    %v1775 = vadd.s32 %v1774, %v1764
    %v1776 = vadd.s32 %v1775, %v1766
    %v1777 = vand.u32 %v1754, 65535
    %v1778 = vshrl.u32 %v1754, 16
    %v1779 = vand.u32 %v1749, 65535
    %v1780 = vshrl.u32 %v1749, 16
    %v1781 = vmul.u32 %v1777, %v1779
    %v1782 = vmul.u32 %v1777, %v1780
    %v1783 = vmul.u32 %v1778, %v1779
    %v1784 = vmul.u32 %v1778, %v1780
    %v1785 = vshll.u32 %v1782, 16
    %v1786 = vshrl.u32 %v1782, 16
    %v1787 = vshll.u32 %v1783, 16
    %v1788 = vshrl.u32 %v1783, 16
    %vm1789 = vc.u32 %v1781, %v1785
    %v1790 = vsel %vm1789, 1, 0
    %v1791 = vadd.s32 %v1781, %v1785
    %v1792 = vadd.s32 %v1784, %v1790
    %vm1793 = vc.u32 %v1791, %v1787
    %v1794 = vsel %vm1793, 1, 0
    %v1795 = vadd.s32 %v1791, %v1787
    %v1796 = vadd.s32 %v1792, %v1794
    %v1797 = vadd.s32 %v1796, %v1786
    %v1798 = vadd.s32 %v1797, %v1788
    %v1799 = vmul.u32 %v1754, %v1745
    %v1800 = vadd.s32 %v1776, %v1795
    %vm1801 = vc.u32 %v1776, %v1795
    %v1802 = vadd.s32 %v1798, 1
    %v1803 = vsel %vm1801, %v1802, %v1798
    %v1804 = vadd.s32 %v1799, %v1803
    %v1805 = vadd.s32 %v1804, 536870912
    %v1806 = vshrl.u32 %v1805, 30
    %v1807 = vshll.u32 %v1806, 30
    %v1808 = vsub.s32 %v1804, %v1807
    %vm1809 = vcmp.lt.s32.totalorder %v1808, 0
    %v1810 = vsub.s32 0, %v1808
    %v1811 = vsel %vm1809, %v1810, %v1808
    %v1812 = vclz %v1811
    %v1813 = vsub.s32 %v1812, 2
    %vm1814 = vcmp.gt.s32.totalorder 0, %v1813
    %v1815 = vsel %vm1814, 0, %v1813
    %v1816 = vsub.s32 32, %v1815
    %v1817 = vshll.u32 %v1808, %v1815
    %v1818 = vshrl.u32 %v1800, %v1816
    %v1819 = vor.u32 %v1817, %v1818
    %v1820 = vsub.s32 4294967266, %v1815
    %v1821 = vadd.s32 %v1820, 127
    %v1822 = vshll.u32 %v1821, 23
    %v1823 = vor.u32 4788187, %v1822
    %v1824 = vand.u32 2147483647, %v1823
    %v1826 = vcvt.s32.f32 %v1819
    %v1827 = vmul.f32 %v1826, %v1824
    %v1828 = vxor.u32 %v1827, 2147483648
    %v1829 = vsel %vm1708, %v1828, %v1827
    %v1830 = vsub.s32 4, %v1806
    %v1831 = vsel %vm1708, %v1830, %v1806
    %v1832 = vsel %vm1707, %v1394, %v1829
    %v1833 = vsel %vm1707, 0, %v1831
    %v1834 = vmul.f32 %v1832, %v1832
    %v1835 = vmul.f32 %v1834, -0.001358992
    %v1836 = vadd.f32 %v1835, 0.041655596
    %v1837 = vmul.f32 %v1834, %v1836
    %v1838 = vadd.f32 %v1837, -0.4999988
    %v1839 = vmul.f32 %v1834, %v1838
    %v1840 = vadd.f32 1.0, %v1839
    %v1841 = vmul.f32 %v1832, %v1832
    %v1842 = vmul.f32 %v1841, -0.00019511016
    %v1843 = vadd.f32 %v1842, 0.008332121
    %v1844 = vmul.f32 %v1841, %v1843
    %v1845 = vadd.f32 %v1844, -0.16666654
    %v1846 = vmul.f32 %v1841, %v1845
    %v1847 = vadd.f32 %v1846, 1.0
    %v1848 = vmul.f32 %v1847, %v1832
    %vm1849 = vweird.f32 %v1394
    %v1850 = vadd.s32 %v1833, 3
    %v1851 = vand.u32 %v1850, 3
    %vm1852 = vcmp.lt.s32.totalorder %v1851, 2
    %vm1853 = vcmp.eq.s32.totalorder %v1851, 0
    %v1854 = vxor.u32 %v1848, 2147483648
    %v1855 = vsel %vm1853, %v1840, %v1854
    %vm1856 = vcmp.eq.s32.totalorder %v1851, 2
    %v1857 = vxor.u32 %v1840, 2147483648
    %v1858 = vsel %vm1856, %v1857, %v1848
    %v1859 = vsel %vm1852, %v1855, %v1858
    %v1860 = vsel %vm1849, nan, %v1859
    %v1861 = vand.u32 2147483647, %v1395
    %vm1862 = vcmp.le.f32.partialorder %v1861, 0.7853982
    %vm1863 = vcmp.lt.s32.totalorder %v1395, 0
    %v1864 = vand.u32 %v1395, 2139095040
    %v1865 = vshrl.u32 %v1864, 23
    %v1866 = vsub.s32 %v1865, 127
    %v1867 = vand.u32 2147483647, %v1395
    %v1868 = vand.u32 %v1867, 8388607
    %v1869 = vor.u32 %v1868, 8388608
    %v1870 = vsub.s32 0, %v1869
    %v1871 = vadd.s32 %v1866, 1
    %vm1872 = vcmp.gt.s32.totalorder %v1871, 0
    %v1873 = vsel %vm1872, %v1871, 0
    %v1874 = vshrl.u32 %v1873, 5
    %v1875 = vand.u32 %v1873, 31
    %v1876 = vsub.s32 32, %v1875
    %v1877 = vshrl.u32 683565275, %v1876
    %v1878 = vshll.u32 683565275, %v1875
    %v1879 = vshrl.u32 2475754826, %v1876
    %v1880 = vor.u32 %v1878, %v1879
    %v1881 = vshll.u32 2475754826, %v1875
    %v1882 = vshrl.u32 2131351028, %v1876
    %v1883 = vor.u32 %v1881, %v1882
    %v1884 = vshll.u32 2131351028, %v1875
    %v1885 = vshrl.u32 2102212464, %v1876
    %v1886 = vor.u32 %v1884, %v1885
    %v1887 = vshll.u32 2102212464, %v1875
    %v1888 = vshrl.u32 920167782, %v1876
    %v1889 = vor.u32 %v1887, %v1888
    %v1890 = vshll.u32 920167782, %v1875
    %v1891 = vshrl.u32 1326507024, %v1876
    %v1892 = vor.u32 %v1890, %v1891
    %vm1893 = vcmp.lt.s32.totalorder %v1874, 1
    %vm1894 = vcmp.lt.s32.totalorder %v1874, 2
    %vm1895 = vcmp.lt.s32.totalorder %v1874, 3
    %vm1896 = vcmp.lt.s32.totalorder %v1874, 4
    %v1897 = vsel %vm1893, %v1877, %v1880
    %v1898 = vsel %vm1896, %v1886, 2102212464
    %v1899 = vsel %vm1895, %v1883, %v1898
    %v1900 = vsel %vm1894, %v1897, %v1899
    %v1901 = vsel %vm1893, %v1880, %v1883
    %v1902 = vsel %vm1896, %v1889, 920167782
    %v1903 = vsel %vm1895, %v1886, %v1902
    %v1904 = vsel %vm1894, %v1901, %v1903
    %v1905 = vsel %vm1893, %v1883, %v1886
    %v1906 = vsel %vm1896, %v1892, 1326507024
    %v1907 = vsel %vm1895, %v1889, %v1906
    %v1908 = vsel %vm1894, %v1905, %v1907
    %v1909 = vshll.u32 %v1869, 8
    %v1910 = vand.u32 %v1909, 65535
    %v1911 = vshrl.u32 %v1909, 16
    %v1912 = vand.u32 %v1908, 65535
    %v1913 = vshrl.u32 %v1908, 16
    %v1914 = vmul.u32 %v1910, %v1912
    %v1915 = vmul.u32 %v1910, %v1913
    %v1916 = vmul.u32 %v1911, %v1912
    %v1917 = vmul.u32 %v1911, %v1913
    %v1918 = vshll.u32 %v1915, 16
    %v1919 = vshrl.u32 %v1915, 16
    %v1920 = vshll.u32 %v1916, 16
    %v1921 = vshrl.u32 %v1916, 16
    %vm1922 = vc.u32 %v1914, %v1918
    %v1923 = vsel %vm1922, 1, 0
    %v1924 = vadd.s32 %v1914, %v1918
    %v1925 = vadd.s32 %v1917, %v1923
    %vm1926 = vc.u32 %v1924, %v1920
    %v1927 = vsel %vm1926, 1, 0
    %v1928 = vadd.s32 %v1924, %v1920
    %v1929 = vadd.s32 %v1925, %v1927
    %v1930 = vadd.s32 %v1929, %v1919
    %v1931 = vadd.s32 %v1930, %v1921
    %v1932 = vand.u32 %v1909, 65535
    %v1933 = vshrl.u32 %v1909, 16
    %v1934 = vand.u32 %v1904, 65535
    %v1935 = vshrl.u32 %v1904, 16
    %v1936 = vmul.u32 %v1932, %v1934
    %v1937 = vmul.u32 %v1932, %v1935
    %v1938 = vmul.u32 %v1933, %v1934
    %v1939 = vmul.u32 %v1933, %v1935
    %v1940 = vshll.u32 %v1937, 16
    %v1941 = vshrl.u32 %v1937, 16
    %v1942 = vshll.u32 %v1938, 16
    %v1943 = vshrl.u32 %v1938, 16
    %vm1944 = vc.u32 %v1936, %v1940
    %v1945 = vsel %vm1944, 1, 0
    %v1946 = vadd.s32 %v1936, %v1940
    %v1947 = vadd.s32 %v1939, %v1945
    %vm1948 = vc.u32 %v1946, %v1942
    %v1949 = vsel %vm1948, 1, 0
    %v1950 = vadd.s32 %v1946, %v1942
    %v1951 = vadd.s32 %v1947, %v1949
    %v1952 = vadd.s32 %v1951, %v1941
    %v1953 = vadd.s32 %v1952, %v1943
    %v1954 = vmul.u32 %v1909, %v1900
    %v1955 = vadd.s32 %v1931, %v1950
    %vm1956 = vc.u32 %v1931, %v1950
    %v1957 = vadd.s32 %v1953, 1
    %v1958 = vsel %vm1956, %v1957, %v1953
    %v1959 = vadd.s32 %v1954, %v1958
    %v1960 = vadd.s32 %v1959, 536870912
    %v1961 = vshrl.u32 %v1960, 30
    %v1962 = vshll.u32 %v1961, 30
    %v1963 = vsub.s32 %v1959, %v1962
    %vm1964 = vcmp.lt.s32.totalorder %v1963, 0
    %v1965 = vsub.s32 0, %v1963
    %v1966 = vsel %vm1964, %v1965, %v1963
    %v1967 = vclz %v1966
    %v1968 = vsub.s32 %v1967, 2
    %vm1969 = vcmp.gt.s32.totalorder 0, %v1968
    %v1970 = vsel %vm1969, 0, %v1968
    %v1971 = vsub.s32 32, %v1970
    %v1972 = vshll.u32 %v1963, %v1970
    %v1973 = vshrl.u32 %v1955, %v1971
    %v1974 = vor.u32 %v1972, %v1973
    %v1975 = vsub.s32 4294967266, %v1970
    %v1976 = vadd.s32 %v1975, 127
    %v1977 = vshll.u32 %v1976, 23
    %v1978 = vor.u32 4788187, %v1977
    %v1979 = vand.u32 2147483647, %v1978
    %v1981 = vcvt.s32.f32 %v1974
    %v1982 = vmul.f32 %v1981, %v1979
    %v1983 = vxor.u32 %v1982, 2147483648
    %v1984 = vsel %vm1863, %v1983, %v1982
    %v1985 = vsub.s32 4, %v1961
    %v1986 = vsel %vm1863, %v1985, %v1961
    %v1987 = vsel %vm1862, %v1395, %v1984
    %v1988 = vsel %vm1862, 0, %v1986
    %v1989 = vmul.f32 %v1987, %v1987
    %v1990 = vmul.f32 %v1989, -0.001358992
    %v1991 = vadd.f32 %v1990, 0.041655596
    %v1992 = vmul.f32 %v1989, %v1991
    %v1993 = vadd.f32 %v1992, -0.4999988
    %v1994 = vmul.f32 %v1989, %v1993
    %v1995 = vadd.f32 1.0, %v1994
    %v1996 = vmul.f32 %v1987, %v1987
    %v1997 = vmul.f32 %v1996, -0.00019511016
    %v1998 = vadd.f32 %v1997, 0.008332121
    %v1999 = vmul.f32 %v1996, %v1998
    %v2000 = vadd.f32 %v1999, -0.16666654
    %v2001 = vmul.f32 %v1996, %v2000
    %v2002 = vadd.f32 %v2001, 1.0
    %v2003 = vmul.f32 %v2002, %v1987
    %vm2004 = vweird.f32 %v1395
    %v2005 = vadd.s32 %v1988, 3
    %v2006 = vand.u32 %v2005, 3
    %vm2007 = vcmp.lt.s32.totalorder %v2006, 2
    %vm2008 = vcmp.eq.s32.totalorder %v2006, 0
    %v2009 = vxor.u32 %v2003, 2147483648
    %v2010 = vsel %vm2008, %v1995, %v2009
    %vm2011 = vcmp.eq.s32.totalorder %v2006, 2
    %v2012 = vxor.u32 %v1995, 2147483648
    %v2013 = vsel %vm2011, %v2012, %v2003
    %v2014 = vsel %vm2007, %v2010, %v2013
    %v2015 = vsel %vm2004, nan, %v2014
    %2020 = vst [vmem:[#allocation1] ss:$2 sm:$0xff] %v1550
    %s2021 = scalar_lea.vmem [#allocation1], 16
    %2022 = vst [vmem:[%s2021] ss:$2 sm:$0xff] %v1705
    %s2023 = scalar_lea.vmem [#allocation1], 32
    %2024 = vst [vmem:[%s2023] ss:$2 sm:$0xff] %v1860
    %s2025 = scalar_lea.vmem [#allocation1], 48
    %2026 = vst [vmem:[%s2025] ss:$2 sm:$0xff] %v2015
    %v2027 = vld.sshfl [vmem:[#allocation1] sm:$0xff pattern:$0x75316420]
    %v2028 = vld.sshfl [vmem:[#allocation1 + $0x8] sm:$0xff pattern:$0x75316420]
    %v2029 = vld.sshfl [vmem:[#allocation1 + $0x10] sm:$0xff pattern:$0x75316420]
    %v2030 = vld.sshfl [vmem:[#allocation1 + $0x18] sm:$0xff pattern:$0x75316420]
    %v2031 = vld.sshfl [vmem:[#allocation1 + $0x20] sm:$0xff pattern:$0x75316420]
    %v2032 = vld.sshfl [vmem:[#allocation1 + $0x28] sm:$0xff pattern:$0x75316420]
    %v2033 = vld.sshfl [vmem:[#allocation1 + $0x30] sm:$0xff pattern:$0x75316420]
    %v2034 = vld.sshfl [vmem:[#allocation1 + $0x38] sm:$0xff pattern:$0x75316420]
    %v2035 = vrot.slane %v2027, 7
    %v2036 = vrot.slane %v2028, 7
    %v2037 = vrot.slane %v2029, 7
    %v2038 = vrot.slane %v2030, 7
    %v2039 = vrot.slane %v2031, 7
    %v2040 = vrot.slane %v2032, 7
    %v2041 = vrot.slane %v2033, 7
    %v2042 = vrot.slane %v2034, 7
    %2051 = vst [vmem:[#allocation5 + $0x40] sm:$0xe] %v2035
    %2052 = vst [vmem:[#allocation5 + $0x48] sm:$0xe] %v2036
    %2053 = vst [vmem:[#allocation5 + $0x50] sm:$0xe] %v2037
    %2054 = vst [vmem:[#allocation5 + $0x58] sm:$0xe] %v2038
    %2055 = vst [vmem:[#allocation5 + $0x60] sm:$0xe] %v2039
    %2056 = vst [vmem:[#allocation5 + $0x68] sm:$0xe] %v2040
    %2057 = vst [vmem:[#allocation5 + $0x70] sm:$0xe] %v2041
    %2058 = vst [vmem:[#allocation5 + $0x78] sm:$0xe] %v2042
    %v2059 = vand.u32 2147483647, %v1392
    %vm2060 = vcmp.le.f32.partialorder %v2059, 0.7853982
    %vm2061 = vcmp.lt.s32.totalorder %v1392, 0
    %v2062 = vand.u32 %v1392, 2139095040
    %v2063 = vshrl.u32 %v2062, 23
    %v2064 = vsub.s32 %v2063, 127
    %v2065 = vand.u32 2147483647, %v1392
    %v2066 = vand.u32 %v2065, 8388607
    %v2067 = vor.u32 %v2066, 8388608
    %v2068 = vsub.s32 0, %v2067
    %v2069 = vadd.s32 %v2064, 1
    %vm2070 = vcmp.gt.s32.totalorder %v2069, 0
    %v2071 = vsel %vm2070, %v2069, 0
    %v2072 = vshrl.u32 %v2071, 5
    %v2073 = vand.u32 %v2071, 31
    %v2074 = vsub.s32 32, %v2073
    %v2075 = vshrl.u32 683565275, %v2074
    %v2076 = vshll.u32 683565275, %v2073
    %v2077 = vshrl.u32 2475754826, %v2074
    %v2078 = vor.u32 %v2076, %v2077
    %v2079 = vshll.u32 2475754826, %v2073
    %v2080 = vshrl.u32 2131351028, %v2074
    %v2081 = vor.u32 %v2079, %v2080
    %v2082 = vshll.u32 2131351028, %v2073
    %v2083 = vshrl.u32 2102212464, %v2074
    %v2084 = vor.u32 %v2082, %v2083
    %v2085 = vshll.u32 2102212464, %v2073
    %v2086 = vshrl.u32 920167782, %v2074
    %v2087 = vor.u32 %v2085, %v2086
    %v2088 = vshll.u32 920167782, %v2073
    %v2089 = vshrl.u32 1326507024, %v2074
    %v2090 = vor.u32 %v2088, %v2089
    %vm2091 = vcmp.lt.s32.totalorder %v2072, 1
    %vm2092 = vcmp.lt.s32.totalorder %v2072, 2
    %vm2093 = vcmp.lt.s32.totalorder %v2072, 3
    %vm2094 = vcmp.lt.s32.totalorder %v2072, 4
    %v2095 = vsel %vm2091, %v2075, %v2078
    %v2096 = vsel %vm2094, %v2084, 2102212464
    %v2097 = vsel %vm2093, %v2081, %v2096
    %v2098 = vsel %vm2092, %v2095, %v2097
    %v2099 = vsel %vm2091, %v2078, %v2081
    %v2100 = vsel %vm2094, %v2087, 920167782
    %v2101 = vsel %vm2093, %v2084, %v2100
    %v2102 = vsel %vm2092, %v2099, %v2101
    %v2103 = vsel %vm2091, %v2081, %v2084
    %v2104 = vsel %vm2094, %v2090, 1326507024
    %v2105 = vsel %vm2093, %v2087, %v2104
    %v2106 = vsel %vm2092, %v2103, %v2105
    %v2107 = vshll.u32 %v2067, 8
    %v2108 = vand.u32 %v2107, 65535
    %v2109 = vshrl.u32 %v2107, 16
    %v2110 = vand.u32 %v2106, 65535
    %v2111 = vshrl.u32 %v2106, 16
    %v2112 = vmul.u32 %v2108, %v2110
    %v2113 = vmul.u32 %v2108, %v2111
    %v2114 = vmul.u32 %v2109, %v2110
    %v2115 = vmul.u32 %v2109, %v2111
    %v2116 = vshll.u32 %v2113, 16
    %v2117 = vshrl.u32 %v2113, 16
    %v2118 = vshll.u32 %v2114, 16
    %v2119 = vshrl.u32 %v2114, 16
    %vm2120 = vc.u32 %v2112, %v2116
    %v2121 = vsel %vm2120, 1, 0
    %v2122 = vadd.s32 %v2112, %v2116
    %v2123 = vadd.s32 %v2115, %v2121
    %vm2124 = vc.u32 %v2122, %v2118
    %v2125 = vsel %vm2124, 1, 0
    %v2126 = vadd.s32 %v2122, %v2118
    %v2127 = vadd.s32 %v2123, %v2125
    %v2128 = vadd.s32 %v2127, %v2117
    %v2129 = vadd.s32 %v2128, %v2119
    %v2130 = vand.u32 %v2107, 65535
    %v2131 = vshrl.u32 %v2107, 16
    %v2132 = vand.u32 %v2102, 65535
    %v2133 = vshrl.u32 %v2102, 16
    %v2134 = vmul.u32 %v2130, %v2132
    %v2135 = vmul.u32 %v2130, %v2133
    %v2136 = vmul.u32 %v2131, %v2132
    %v2137 = vmul.u32 %v2131, %v2133
    %v2138 = vshll.u32 %v2135, 16
    %v2139 = vshrl.u32 %v2135, 16
    %v2140 = vshll.u32 %v2136, 16
    %v2141 = vshrl.u32 %v2136, 16
    %vm2142 = vc.u32 %v2134, %v2138
    %v2143 = vsel %vm2142, 1, 0
    %v2144 = vadd.s32 %v2134, %v2138
    %v2145 = vadd.s32 %v2137, %v2143
    %vm2146 = vc.u32 %v2144, %v2140
    %v2147 = vsel %vm2146, 1, 0
    %v2148 = vadd.s32 %v2144, %v2140
    %v2149 = vadd.s32 %v2145, %v2147
    %v2150 = vadd.s32 %v2149, %v2139
    %v2151 = vadd.s32 %v2150, %v2141
    %v2152 = vmul.u32 %v2107, %v2098
    %v2153 = vadd.s32 %v2129, %v2148
    %vm2154 = vc.u32 %v2129, %v2148
    %v2155 = vadd.s32 %v2151, 1
    %v2156 = vsel %vm2154, %v2155, %v2151
    %v2157 = vadd.s32 %v2152, %v2156
    %v2158 = vadd.s32 %v2157, 536870912
    %v2159 = vshrl.u32 %v2158, 30
    %v2160 = vshll.u32 %v2159, 30
    %v2161 = vsub.s32 %v2157, %v2160
    %vm2162 = vcmp.lt.s32.totalorder %v2161, 0
    %v2163 = vsub.s32 0, %v2161
    %v2164 = vsel %vm2162, %v2163, %v2161
    %v2165 = vclz %v2164
    %v2166 = vsub.s32 %v2165, 2
    %vm2167 = vcmp.gt.s32.totalorder 0, %v2166
    %v2168 = vsel %vm2167, 0, %v2166
    %v2169 = vsub.s32 32, %v2168
    %v2170 = vshll.u32 %v2161, %v2168
    %v2171 = vshrl.u32 %v2153, %v2169
    %v2172 = vor.u32 %v2170, %v2171
    %v2173 = vsub.s32 4294967266, %v2168
    %v2174 = vadd.s32 %v2173, 127
    %v2175 = vshll.u32 %v2174, 23
    %v2176 = vor.u32 4788187, %v2175
    %v2177 = vand.u32 2147483647, %v2176
    %v2179 = vcvt.s32.f32 %v2172
    %v2180 = vmul.f32 %v2179, %v2177
    %v2181 = vxor.u32 %v2180, 2147483648
    %v2182 = vsel %vm2061, %v2181, %v2180
    %v2183 = vsub.s32 4, %v2159
    %v2184 = vsel %vm2061, %v2183, %v2159
    %v2185 = vsel %vm2060, %v1392, %v2182
    %v2186 = vsel %vm2060, 0, %v2184
    %v2187 = vmul.f32 %v2185, %v2185
    %v2188 = vmul.f32 %v2187, -0.001358992
    %v2189 = vadd.f32 %v2188, 0.041655596
    %v2190 = vmul.f32 %v2187, %v2189
    %v2191 = vadd.f32 %v2190, -0.4999988
    %v2192 = vmul.f32 %v2187, %v2191
    %v2193 = vadd.f32 1.0, %v2192
    %v2194 = vmul.f32 %v2185, %v2185
    %v2195 = vmul.f32 %v2194, -0.00019511016
    %v2196 = vadd.f32 %v2195, 0.008332121
    %v2197 = vmul.f32 %v2194, %v2196
    %v2198 = vadd.f32 %v2197, -0.16666654
    %v2199 = vmul.f32 %v2194, %v2198
    %v2200 = vadd.f32 %v2199, 1.0
    %v2201 = vmul.f32 %v2200, %v2185
    %vm2202 = vweird.f32 %v1392
    %v2203 = vand.u32 %v2186, 3
    %vm2204 = vcmp.lt.s32.totalorder %v2203, 2
    %vm2205 = vcmp.eq.s32.totalorder %v2203, 0
    %v2206 = vxor.u32 %v2201, 2147483648
    %v2207 = vsel %vm2205, %v2193, %v2206
    %vm2208 = vcmp.eq.s32.totalorder %v2203, 2
    %v2209 = vxor.u32 %v2193, 2147483648
    %v2210 = vsel %vm2208, %v2209, %v2201
    %v2211 = vsel %vm2204, %v2207, %v2210
    %v2212 = vsel %vm2202, nan, %v2211
    %v2213 = vand.u32 2147483647, %v1393
    %vm2214 = vcmp.le.f32.partialorder %v2213, 0.7853982
    %vm2215 = vcmp.lt.s32.totalorder %v1393, 0
    %v2216 = vand.u32 %v1393, 2139095040
    %v2217 = vshrl.u32 %v2216, 23
    %v2218 = vsub.s32 %v2217, 127
    %v2219 = vand.u32 2147483647, %v1393
    %v2220 = vand.u32 %v2219, 8388607
    %v2221 = vor.u32 %v2220, 8388608
    %v2222 = vsub.s32 0, %v2221
    %v2223 = vadd.s32 %v2218, 1
    %vm2224 = vcmp.gt.s32.totalorder %v2223, 0
    %v2225 = vsel %vm2224, %v2223, 0
    %v2226 = vshrl.u32 %v2225, 5
    %v2227 = vand.u32 %v2225, 31
    %v2228 = vsub.s32 32, %v2227
    %v2229 = vshrl.u32 683565275, %v2228
    %v2230 = vshll.u32 683565275, %v2227
    %v2231 = vshrl.u32 2475754826, %v2228
    %v2232 = vor.u32 %v2230, %v2231
    %v2233 = vshll.u32 2475754826, %v2227
    %v2234 = vshrl.u32 2131351028, %v2228
    %v2235 = vor.u32 %v2233, %v2234
    %v2236 = vshll.u32 2131351028, %v2227
    %v2237 = vshrl.u32 2102212464, %v2228
    %v2238 = vor.u32 %v2236, %v2237
    %v2239 = vshll.u32 2102212464, %v2227
    %v2240 = vshrl.u32 920167782, %v2228
    %v2241 = vor.u32 %v2239, %v2240
    %v2242 = vshll.u32 920167782, %v2227
    %v2243 = vshrl.u32 1326507024, %v2228
    %v2244 = vor.u32 %v2242, %v2243
    %vm2245 = vcmp.lt.s32.totalorder %v2226, 1
    %vm2246 = vcmp.lt.s32.totalorder %v2226, 2
    %vm2247 = vcmp.lt.s32.totalorder %v2226, 3
    %vm2248 = vcmp.lt.s32.totalorder %v2226, 4
    %v2249 = vsel %vm2245, %v2229, %v2232
    %v2250 = vsel %vm2248, %v2238, 2102212464
    %v2251 = vsel %vm2247, %v2235, %v2250
    %v2252 = vsel %vm2246, %v2249, %v2251
    %v2253 = vsel %vm2245, %v2232, %v2235
    %v2254 = vsel %vm2248, %v2241, 920167782
    %v2255 = vsel %vm2247, %v2238, %v2254
    %v2256 = vsel %vm2246, %v2253, %v2255
    %v2257 = vsel %vm2245, %v2235, %v2238
    %v2258 = vsel %vm2248, %v2244, 1326507024
    %v2259 = vsel %vm2247, %v2241, %v2258
    %v2260 = vsel %vm2246, %v2257, %v2259
    %v2261 = vshll.u32 %v2221, 8
    %v2262 = vand.u32 %v2261, 65535
    %v2263 = vshrl.u32 %v2261, 16
    %v2264 = vand.u32 %v2260, 65535
    %v2265 = vshrl.u32 %v2260, 16
    %v2266 = vmul.u32 %v2262, %v2264
    %v2267 = vmul.u32 %v2262, %v2265
    %v2268 = vmul.u32 %v2263, %v2264
    %v2269 = vmul.u32 %v2263, %v2265
    %v2270 = vshll.u32 %v2267, 16
    %v2271 = vshrl.u32 %v2267, 16
    %v2272 = vshll.u32 %v2268, 16
    %v2273 = vshrl.u32 %v2268, 16
    %vm2274 = vc.u32 %v2266, %v2270
    %v2275 = vsel %vm2274, 1, 0
    %v2276 = vadd.s32 %v2266, %v2270
    %v2277 = vadd.s32 %v2269, %v2275
    %vm2278 = vc.u32 %v2276, %v2272
    %v2279 = vsel %vm2278, 1, 0
    %v2280 = vadd.s32 %v2276, %v2272
    %v2281 = vadd.s32 %v2277, %v2279
    %v2282 = vadd.s32 %v2281, %v2271
    %v2283 = vadd.s32 %v2282, %v2273
    %v2284 = vand.u32 %v2261, 65535
    %v2285 = vshrl.u32 %v2261, 16
    %v2286 = vand.u32 %v2256, 65535
    %v2287 = vshrl.u32 %v2256, 16
    %v2288 = vmul.u32 %v2284, %v2286
    %v2289 = vmul.u32 %v2284, %v2287
    %v2290 = vmul.u32 %v2285, %v2286
    %v2291 = vmul.u32 %v2285, %v2287
    %v2292 = vshll.u32 %v2289, 16
    %v2293 = vshrl.u32 %v2289, 16
    %v2294 = vshll.u32 %v2290, 16
    %v2295 = vshrl.u32 %v2290, 16
    %vm2296 = vc.u32 %v2288, %v2292
    %v2297 = vsel %vm2296, 1, 0
    %v2298 = vadd.s32 %v2288, %v2292
    %v2299 = vadd.s32 %v2291, %v2297
    %vm2300 = vc.u32 %v2298, %v2294
    %v2301 = vsel %vm2300, 1, 0
    %v2302 = vadd.s32 %v2298, %v2294
    %v2303 = vadd.s32 %v2299, %v2301
    %v2304 = vadd.s32 %v2303, %v2293
    %v2305 = vadd.s32 %v2304, %v2295
    %v2306 = vmul.u32 %v2261, %v2252
    %v2307 = vadd.s32 %v2283, %v2302
    %vm2308 = vc.u32 %v2283, %v2302
    %v2309 = vadd.s32 %v2305, 1
    %v2310 = vsel %vm2308, %v2309, %v2305
    %v2311 = vadd.s32 %v2306, %v2310
    %v2312 = vadd.s32 %v2311, 536870912
    %v2313 = vshrl.u32 %v2312, 30
    %v2314 = vshll.u32 %v2313, 30
    %v2315 = vsub.s32 %v2311, %v2314
    %vm2316 = vcmp.lt.s32.totalorder %v2315, 0
    %v2317 = vsub.s32 0, %v2315
    %v2318 = vsel %vm2316, %v2317, %v2315
    %v2319 = vclz %v2318
    %v2320 = vsub.s32 %v2319, 2
    %vm2321 = vcmp.gt.s32.totalorder 0, %v2320
    %v2322 = vsel %vm2321, 0, %v2320
    %v2323 = vsub.s32 32, %v2322
    %v2324 = vshll.u32 %v2315, %v2322
    %v2325 = vshrl.u32 %v2307, %v2323
    %v2326 = vor.u32 %v2324, %v2325
    %v2327 = vsub.s32 4294967266, %v2322
    %v2328 = vadd.s32 %v2327, 127
    %v2329 = vshll.u32 %v2328, 23
    %v2330 = vor.u32 4788187, %v2329
    %v2331 = vand.u32 2147483647, %v2330
    %v2333 = vcvt.s32.f32 %v2326
    %v2334 = vmul.f32 %v2333, %v2331
    %v2335 = vxor.u32 %v2334, 2147483648
    %v2336 = vsel %vm2215, %v2335, %v2334
    %v2337 = vsub.s32 4, %v2313
    %v2338 = vsel %vm2215, %v2337, %v2313
    %v2339 = vsel %vm2214, %v1393, %v2336
    %v2340 = vsel %vm2214, 0, %v2338
    %v2341 = vmul.f32 %v2339, %v2339
    %v2342 = vmul.f32 %v2341, -0.001358992
    %v2343 = vadd.f32 %v2342, 0.041655596
    %v2344 = vmul.f32 %v2341, %v2343
    %v2345 = vadd.f32 %v2344, -0.4999988
    %v2346 = vmul.f32 %v2341, %v2345
    %v2347 = vadd.f32 1.0, %v2346
    %v2348 = vmul.f32 %v2339, %v2339
    %v2349 = vmul.f32 %v2348, -0.00019511016
    %v2350 = vadd.f32 %v2349, 0.008332121
    %v2351 = vmul.f32 %v2348, %v2350
    %v2352 = vadd.f32 %v2351, -0.16666654
    %v2353 = vmul.f32 %v2348, %v2352
    %v2354 = vadd.f32 %v2353, 1.0
    %v2355 = vmul.f32 %v2354, %v2339
    %vm2356 = vweird.f32 %v1393
    %v2357 = vand.u32 %v2340, 3
    %vm2358 = vcmp.lt.s32.totalorder %v2357, 2
    %vm2359 = vcmp.eq.s32.totalorder %v2357, 0
    %v2360 = vxor.u32 %v2355, 2147483648
    %v2361 = vsel %vm2359, %v2347, %v2360
    %vm2362 = vcmp.eq.s32.totalorder %v2357, 2
    %v2363 = vxor.u32 %v2347, 2147483648
    %v2364 = vsel %vm2362, %v2363, %v2355
    %v2365 = vsel %vm2358, %v2361, %v2364
    %v2366 = vsel %vm2356, nan, %v2365
    %v2367 = vand.u32 2147483647, %v1394
    %vm2368 = vcmp.le.f32.partialorder %v2367, 0.7853982
    %vm2369 = vcmp.lt.s32.totalorder %v1394, 0
    %v2370 = vand.u32 %v1394, 2139095040
    %v2371 = vshrl.u32 %v2370, 23
    %v2372 = vsub.s32 %v2371, 127
    %v2373 = vand.u32 2147483647, %v1394
    %v2374 = vand.u32 %v2373, 8388607
    %v2375 = vor.u32 %v2374, 8388608
    %v2376 = vsub.s32 0, %v2375
    %v2377 = vadd.s32 %v2372, 1
    %vm2378 = vcmp.gt.s32.totalorder %v2377, 0
    %v2379 = vsel %vm2378, %v2377, 0
    %v2380 = vshrl.u32 %v2379, 5
    %v2381 = vand.u32 %v2379, 31
    %v2382 = vsub.s32 32, %v2381
    %v2383 = vshrl.u32 683565275, %v2382
    %v2384 = vshll.u32 683565275, %v2381
    %v2385 = vshrl.u32 2475754826, %v2382
    %v2386 = vor.u32 %v2384, %v2385
    %v2387 = vshll.u32 2475754826, %v2381
    %v2388 = vshrl.u32 2131351028, %v2382
    %v2389 = vor.u32 %v2387, %v2388
    %v2390 = vshll.u32 2131351028, %v2381
    %v2391 = vshrl.u32 2102212464, %v2382
    %v2392 = vor.u32 %v2390, %v2391
    %v2393 = vshll.u32 2102212464, %v2381
    %v2394 = vshrl.u32 920167782, %v2382
    %v2395 = vor.u32 %v2393, %v2394
    %v2396 = vshll.u32 920167782, %v2381
    %v2397 = vshrl.u32 1326507024, %v2382
    %v2398 = vor.u32 %v2396, %v2397
    %vm2399 = vcmp.lt.s32.totalorder %v2380, 1
    %vm2400 = vcmp.lt.s32.totalorder %v2380, 2
    %vm2401 = vcmp.lt.s32.totalorder %v2380, 3
    %vm2402 = vcmp.lt.s32.totalorder %v2380, 4
    %v2403 = vsel %vm2399, %v2383, %v2386
    %v2404 = vsel %vm2402, %v2392, 2102212464
    %v2405 = vsel %vm2401, %v2389, %v2404
    %v2406 = vsel %vm2400, %v2403, %v2405
    %v2407 = vsel %vm2399, %v2386, %v2389
    %v2408 = vsel %vm2402, %v2395, 920167782
    %v2409 = vsel %vm2401, %v2392, %v2408
    %v2410 = vsel %vm2400, %v2407, %v2409
    %v2411 = vsel %vm2399, %v2389, %v2392
    %v2412 = vsel %vm2402, %v2398, 1326507024
    %v2413 = vsel %vm2401, %v2395, %v2412
    %v2414 = vsel %vm2400, %v2411, %v2413
    %v2415 = vshll.u32 %v2375, 8
    %v2416 = vand.u32 %v2415, 65535
    %v2417 = vshrl.u32 %v2415, 16
    %v2418 = vand.u32 %v2414, 65535
    %v2419 = vshrl.u32 %v2414, 16
    %v2420 = vmul.u32 %v2416, %v2418
    %v2421 = vmul.u32 %v2416, %v2419
    %v2422 = vmul.u32 %v2417, %v2418
    %v2423 = vmul.u32 %v2417, %v2419
    %v2424 = vshll.u32 %v2421, 16
    %v2425 = vshrl.u32 %v2421, 16
    %v2426 = vshll.u32 %v2422, 16
    %v2427 = vshrl.u32 %v2422, 16
    %vm2428 = vc.u32 %v2420, %v2424
    %v2429 = vsel %vm2428, 1, 0
    %v2430 = vadd.s32 %v2420, %v2424
    %v2431 = vadd.s32 %v2423, %v2429
    %vm2432 = vc.u32 %v2430, %v2426
    %v2433 = vsel %vm2432, 1, 0
    %v2434 = vadd.s32 %v2430, %v2426
    %v2435 = vadd.s32 %v2431, %v2433
    %v2436 = vadd.s32 %v2435, %v2425
    %v2437 = vadd.s32 %v2436, %v2427
    %v2438 = vand.u32 %v2415, 65535
    %v2439 = vshrl.u32 %v2415, 16
    %v2440 = vand.u32 %v2410, 65535
    %v2441 = vshrl.u32 %v2410, 16
    %v2442 = vmul.u32 %v2438, %v2440
    %v2443 = vmul.u32 %v2438, %v2441
    %v2444 = vmul.u32 %v2439, %v2440
    %v2445 = vmul.u32 %v2439, %v2441
    %v2446 = vshll.u32 %v2443, 16
    %v2447 = vshrl.u32 %v2443, 16
    %v2448 = vshll.u32 %v2444, 16
    %v2449 = vshrl.u32 %v2444, 16
    %vm2450 = vc.u32 %v2442, %v2446
    %v2451 = vsel %vm2450, 1, 0
    %v2452 = vadd.s32 %v2442, %v2446
    %v2453 = vadd.s32 %v2445, %v2451
    %vm2454 = vc.u32 %v2452, %v2448
    %v2455 = vsel %vm2454, 1, 0
    %v2456 = vadd.s32 %v2452, %v2448
    %v2457 = vadd.s32 %v2453, %v2455
    %v2458 = vadd.s32 %v2457, %v2447
    %v2459 = vadd.s32 %v2458, %v2449
    %v2460 = vmul.u32 %v2415, %v2406
    %v2461 = vadd.s32 %v2437, %v2456
    %vm2462 = vc.u32 %v2437, %v2456
    %v2463 = vadd.s32 %v2459, 1
    %v2464 = vsel %vm2462, %v2463, %v2459
    %v2465 = vadd.s32 %v2460, %v2464
    %v2466 = vadd.s32 %v2465, 536870912
    %v2467 = vshrl.u32 %v2466, 30
    %v2468 = vshll.u32 %v2467, 30
    %v2469 = vsub.s32 %v2465, %v2468
    %vm2470 = vcmp.lt.s32.totalorder %v2469, 0
    %v2471 = vsub.s32 0, %v2469
    %v2472 = vsel %vm2470, %v2471, %v2469
    %v2473 = vclz %v2472
    %v2474 = vsub.s32 %v2473, 2
    %vm2475 = vcmp.gt.s32.totalorder 0, %v2474
    %v2476 = vsel %vm2475, 0, %v2474
    %v2477 = vsub.s32 32, %v2476
    %v2478 = vshll.u32 %v2469, %v2476
    %v2479 = vshrl.u32 %v2461, %v2477
    %v2480 = vor.u32 %v2478, %v2479
    %v2481 = vsub.s32 4294967266, %v2476
    %v2482 = vadd.s32 %v2481, 127
    %v2483 = vshll.u32 %v2482, 23
    %v2484 = vor.u32 4788187, %v2483
    %v2485 = vand.u32 2147483647, %v2484
    %v2487 = vcvt.s32.f32 %v2480
    %v2488 = vmul.f32 %v2487, %v2485
    %v2489 = vxor.u32 %v2488, 2147483648
    %v2490 = vsel %vm2369, %v2489, %v2488
    %v2491 = vsub.s32 4, %v2467
    %v2492 = vsel %vm2369, %v2491, %v2467
    %v2493 = vsel %vm2368, %v1394, %v2490
    %v2494 = vsel %vm2368, 0, %v2492
    %v2495 = vmul.f32 %v2493, %v2493
    %v2496 = vmul.f32 %v2495, -0.001358992
    %v2497 = vadd.f32 %v2496, 0.041655596
    %v2498 = vmul.f32 %v2495, %v2497
    %v2499 = vadd.f32 %v2498, -0.4999988
    %v2500 = vmul.f32 %v2495, %v2499
    %v2501 = vadd.f32 1.0, %v2500
    %v2502 = vmul.f32 %v2493, %v2493
    %v2503 = vmul.f32 %v2502, -0.00019511016
    %v2504 = vadd.f32 %v2503, 0.008332121
    %v2505 = vmul.f32 %v2502, %v2504
    %v2506 = vadd.f32 %v2505, -0.16666654
    %v2507 = vmul.f32 %v2502, %v2506
    %v2508 = vadd.f32 %v2507, 1.0
    %v2509 = vmul.f32 %v2508, %v2493
    %vm2510 = vweird.f32 %v1394
    %v2511 = vand.u32 %v2494, 3
    %vm2512 = vcmp.lt.s32.totalorder %v2511, 2
    %vm2513 = vcmp.eq.s32.totalorder %v2511, 0
    %v2514 = vxor.u32 %v2509, 2147483648
    %v2515 = vsel %vm2513, %v2501, %v2514
    %vm2516 = vcmp.eq.s32.totalorder %v2511, 2
    %v2517 = vxor.u32 %v2501, 2147483648
    %v2518 = vsel %vm2516, %v2517, %v2509
    %v2519 = vsel %vm2512, %v2515, %v2518
    %v2520 = vsel %vm2510, nan, %v2519
    %v2521 = vand.u32 2147483647, %v1395
    %vm2522 = vcmp.le.f32.partialorder %v2521, 0.7853982
    %vm2523 = vcmp.lt.s32.totalorder %v1395, 0
    %v2524 = vand.u32 %v1395, 2139095040
    %v2525 = vshrl.u32 %v2524, 23
    %v2526 = vsub.s32 %v2525, 127
    %v2527 = vand.u32 2147483647, %v1395
    %v2528 = vand.u32 %v2527, 8388607
    %v2529 = vor.u32 %v2528, 8388608
    %v2530 = vsub.s32 0, %v2529
    %v2531 = vadd.s32 %v2526, 1
    %vm2532 = vcmp.gt.s32.totalorder %v2531, 0
    %v2533 = vsel %vm2532, %v2531, 0
    %v2534 = vshrl.u32 %v2533, 5
    %v2535 = vand.u32 %v2533, 31
    %v2536 = vsub.s32 32, %v2535
    %v2537 = vshrl.u32 683565275, %v2536
    %v2538 = vshll.u32 683565275, %v2535
    %v2539 = vshrl.u32 2475754826, %v2536
    %v2540 = vor.u32 %v2538, %v2539
    %v2541 = vshll.u32 2475754826, %v2535
    %v2542 = vshrl.u32 2131351028, %v2536
    %v2543 = vor.u32 %v2541, %v2542
    %v2544 = vshll.u32 2131351028, %v2535
    %v2545 = vshrl.u32 2102212464, %v2536
    %v2546 = vor.u32 %v2544, %v2545
    %v2547 = vshll.u32 2102212464, %v2535
    %v2548 = vshrl.u32 920167782, %v2536
    %v2549 = vor.u32 %v2547, %v2548
    %v2550 = vshll.u32 920167782, %v2535
    %v2551 = vshrl.u32 1326507024, %v2536
    %v2552 = vor.u32 %v2550, %v2551
    %vm2553 = vcmp.lt.s32.totalorder %v2534, 1
    %vm2554 = vcmp.lt.s32.totalorder %v2534, 2
    %vm2555 = vcmp.lt.s32.totalorder %v2534, 3
    %vm2556 = vcmp.lt.s32.totalorder %v2534, 4
    %v2557 = vsel %vm2553, %v2537, %v2540
    %v2558 = vsel %vm2556, %v2546, 2102212464
    %v2559 = vsel %vm2555, %v2543, %v2558
    %v2560 = vsel %vm2554, %v2557, %v2559
    %v2561 = vsel %vm2553, %v2540, %v2543
    %v2562 = vsel %vm2556, %v2549, 920167782
    %v2563 = vsel %vm2555, %v2546, %v2562
    %v2564 = vsel %vm2554, %v2561, %v2563
    %v2565 = vsel %vm2553, %v2543, %v2546
    %v2566 = vsel %vm2556, %v2552, 1326507024
    %v2567 = vsel %vm2555, %v2549, %v2566
    %v2568 = vsel %vm2554, %v2565, %v2567
    %v2569 = vshll.u32 %v2529, 8
    %v2570 = vand.u32 %v2569, 65535
    %v2571 = vshrl.u32 %v2569, 16
    %v2572 = vand.u32 %v2568, 65535
    %v2573 = vshrl.u32 %v2568, 16
    %v2574 = vmul.u32 %v2570, %v2572
    %v2575 = vmul.u32 %v2570, %v2573
    %v2576 = vmul.u32 %v2571, %v2572
    %v2577 = vmul.u32 %v2571, %v2573
    %v2578 = vshll.u32 %v2575, 16
    %v2579 = vshrl.u32 %v2575, 16
    %v2580 = vshll.u32 %v2576, 16
    %v2581 = vshrl.u32 %v2576, 16
    %vm2582 = vc.u32 %v2574, %v2578
    %v2583 = vsel %vm2582, 1, 0
    %v2584 = vadd.s32 %v2574, %v2578
    %v2585 = vadd.s32 %v2577, %v2583
    %vm2586 = vc.u32 %v2584, %v2580
    %v2587 = vsel %vm2586, 1, 0
    %v2588 = vadd.s32 %v2584, %v2580
    %v2589 = vadd.s32 %v2585, %v2587
    %v2590 = vadd.s32 %v2589, %v2579
    %v2591 = vadd.s32 %v2590, %v2581
    %v2592 = vand.u32 %v2569, 65535
    %v2593 = vshrl.u32 %v2569, 16
    %v2594 = vand.u32 %v2564, 65535
    %v2595 = vshrl.u32 %v2564, 16
    %v2596 = vmul.u32 %v2592, %v2594
    %v2597 = vmul.u32 %v2592, %v2595
    %v2598 = vmul.u32 %v2593, %v2594
    %v2599 = vmul.u32 %v2593, %v2595
    %v2600 = vshll.u32 %v2597, 16
    %v2601 = vshrl.u32 %v2597, 16
    %v2602 = vshll.u32 %v2598, 16
    %v2603 = vshrl.u32 %v2598, 16
    %vm2604 = vc.u32 %v2596, %v2600
    %v2605 = vsel %vm2604, 1, 0
    %v2606 = vadd.s32 %v2596, %v2600
    %v2607 = vadd.s32 %v2599, %v2605
    %vm2608 = vc.u32 %v2606, %v2602
    %v2609 = vsel %vm2608, 1, 0
    %v2610 = vadd.s32 %v2606, %v2602
    %v2611 = vadd.s32 %v2607, %v2609
    %v2612 = vadd.s32 %v2611, %v2601
    %v2613 = vadd.s32 %v2612, %v2603
    %v2614 = vmul.u32 %v2569, %v2560
    %v2615 = vadd.s32 %v2591, %v2610
    %vm2616 = vc.u32 %v2591, %v2610
    %v2617 = vadd.s32 %v2613, 1
    %v2618 = vsel %vm2616, %v2617, %v2613
    %v2619 = vadd.s32 %v2614, %v2618
    %v2620 = vadd.s32 %v2619, 536870912
    %v2621 = vshrl.u32 %v2620, 30
    %v2622 = vshll.u32 %v2621, 30
    %v2623 = vsub.s32 %v2619, %v2622
    %vm2624 = vcmp.lt.s32.totalorder %v2623, 0
    %v2625 = vsub.s32 0, %v2623
    %v2626 = vsel %vm2624, %v2625, %v2623
    %v2627 = vclz %v2626
    %v2628 = vsub.s32 %v2627, 2
    %vm2629 = vcmp.gt.s32.totalorder 0, %v2628
    %v2630 = vsel %vm2629, 0, %v2628
    %v2631 = vsub.s32 32, %v2630
    %v2632 = vshll.u32 %v2623, %v2630
    %v2633 = vshrl.u32 %v2615, %v2631
    %v2634 = vor.u32 %v2632, %v2633
    %v2635 = vsub.s32 4294967266, %v2630
    %v2636 = vadd.s32 %v2635, 127
    %v2637 = vshll.u32 %v2636, 23
    %v2638 = vor.u32 4788187, %v2637
    %v2639 = vand.u32 2147483647, %v2638
    %v2641 = vcvt.s32.f32 %v2634
    %v2642 = vmul.f32 %v2641, %v2639
    %v2643 = vxor.u32 %v2642, 2147483648
    %v2644 = vsel %vm2523, %v2643, %v2642
    %v2645 = vsub.s32 4, %v2621
    %v2646 = vsel %vm2523, %v2645, %v2621
    %v2647 = vsel %vm2522, %v1395, %v2644
    %v2648 = vsel %vm2522, 0, %v2646
    %v2649 = vmul.f32 %v2647, %v2647
    %v2650 = vmul.f32 %v2649, -0.001358992
    %v2651 = vadd.f32 %v2650, 0.041655596
    %v2652 = vmul.f32 %v2649, %v2651
    %v2653 = vadd.f32 %v2652, -0.4999988
    %v2654 = vmul.f32 %v2649, %v2653
    %v2655 = vadd.f32 1.0, %v2654
    %v2656 = vmul.f32 %v2647, %v2647
    %v2657 = vmul.f32 %v2656, -0.00019511016
    %v2658 = vadd.f32 %v2657, 0.008332121
    %v2659 = vmul.f32 %v2656, %v2658
    %v2660 = vadd.f32 %v2659, -0.16666654
    %v2661 = vmul.f32 %v2656, %v2660
    %v2662 = vadd.f32 %v2661, 1.0
    %v2663 = vmul.f32 %v2662, %v2647
    %vm2664 = vweird.f32 %v1395
    %v2665 = vand.u32 %v2648, 3
    %vm2666 = vcmp.lt.s32.totalorder %v2665, 2
    %vm2667 = vcmp.eq.s32.totalorder %v2665, 0
    %v2668 = vxor.u32 %v2663, 2147483648
    %v2669 = vsel %vm2667, %v2655, %v2668
    %vm2670 = vcmp.eq.s32.totalorder %v2665, 2
    %v2671 = vxor.u32 %v2655, 2147483648
    %v2672 = vsel %vm2670, %v2671, %v2663
    %v2673 = vsel %vm2666, %v2669, %v2672
    %v2674 = vsel %vm2664, nan, %v2673
    %s2679 = scalar_lea.vmem [#allocation1], 1
    %2680 = vst [vmem:[%s2679] ss:$2 sm:$0xff] %v2212
    %s2681 = scalar_lea.vmem [#allocation1], 17
    %2682 = vst [vmem:[%s2681] ss:$2 sm:$0xff] %v2366
    %s2683 = scalar_lea.vmem [#allocation1], 33
    %2684 = vst [vmem:[%s2683] ss:$2 sm:$0xff] %v2520
    %s2685 = scalar_lea.vmem [#allocation1], 49
    %2686 = vst [vmem:[%s2685] ss:$2 sm:$0xff] %v2674
    %v2687 = vld.sshfl [vmem:[#allocation1] sm:$0xff pattern:$0x75316420]
    %v2688 = vld.sshfl [vmem:[#allocation1 + $0x8] sm:$0xff pattern:$0x75316420]
    %v2689 = vld.sshfl [vmem:[#allocation1 + $0x10] sm:$0xff pattern:$0x75316420]
    %v2690 = vld.sshfl [vmem:[#allocation1 + $0x18] sm:$0xff pattern:$0x75316420]
    %v2691 = vld.sshfl [vmem:[#allocation1 + $0x20] sm:$0xff pattern:$0x75316420]
    %v2692 = vld.sshfl [vmem:[#allocation1 + $0x28] sm:$0xff pattern:$0x75316420]
    %v2693 = vld.sshfl [vmem:[#allocation1 + $0x30] sm:$0xff pattern:$0x75316420]
    %v2694 = vld.sshfl [vmem:[#allocation1 + $0x38] sm:$0xff pattern:$0x75316420]
    %2703 = vst [vmem:[#allocation5 + $0x40] sm:$0x70] %v2687
    %2704 = vst [vmem:[#allocation5 + $0x48] sm:$0x70] %v2688
    %2705 = vst [vmem:[#allocation5 + $0x50] sm:$0x70] %v2689
    %2706 = vst [vmem:[#allocation5 + $0x58] sm:$0x70] %v2690
    %2707 = vst [vmem:[#allocation5 + $0x60] sm:$0x70] %v2691
    %2708 = vst [vmem:[#allocation5 + $0x68] sm:$0x70] %v2692
    %2709 = vst [vmem:[#allocation5 + $0x70] sm:$0x70] %v2693
    %2710 = vst [vmem:[#allocation5 + $0x78] sm:$0x70] %v2694
    %v2711 = vmul.f32 %v23, 4.0
    %v2712 = vmul.f32 %v24, 4.0
    %v2713 = vmul.f32 %v25, 4.0
    %v2714 = vmul.f32 %v26, 4.0
    %v2715 = vand.u32 2147483647, %v2711
    %vm2716 = vcmp.le.f32.partialorder %v2715, 0.7853982
    %vm2717 = vcmp.lt.s32.totalorder %v2711, 0
    %v2718 = vand.u32 %v2711, 2139095040
    %v2719 = vshrl.u32 %v2718, 23
    %v2720 = vsub.s32 %v2719, 127
    %v2721 = vand.u32 2147483647, %v2711
    %v2722 = vand.u32 %v2721, 8388607
    %v2723 = vor.u32 %v2722, 8388608
    %v2724 = vsub.s32 0, %v2723
    %v2725 = vadd.s32 %v2720, 1
    %vm2726 = vcmp.gt.s32.totalorder %v2725, 0
    %v2727 = vsel %vm2726, %v2725, 0
    %v2728 = vshrl.u32 %v2727, 5
    %v2729 = vand.u32 %v2727, 31
    %v2730 = vsub.s32 32, %v2729
    %v2731 = vshrl.u32 683565275, %v2730
    %v2732 = vshll.u32 683565275, %v2729
    %v2733 = vshrl.u32 2475754826, %v2730
    %v2734 = vor.u32 %v2732, %v2733
    %v2735 = vshll.u32 2475754826, %v2729
    %v2736 = vshrl.u32 2131351028, %v2730
    %v2737 = vor.u32 %v2735, %v2736
    %v2738 = vshll.u32 2131351028, %v2729
    %v2739 = vshrl.u32 2102212464, %v2730
    %v2740 = vor.u32 %v2738, %v2739
    %v2741 = vshll.u32 2102212464, %v2729
    %v2742 = vshrl.u32 920167782, %v2730
    %v2743 = vor.u32 %v2741, %v2742
    %v2744 = vshll.u32 920167782, %v2729
    %v2745 = vshrl.u32 1326507024, %v2730
    %v2746 = vor.u32 %v2744, %v2745
    %vm2747 = vcmp.lt.s32.totalorder %v2728, 1
    %vm2748 = vcmp.lt.s32.totalorder %v2728, 2
    %vm2749 = vcmp.lt.s32.totalorder %v2728, 3
    %vm2750 = vcmp.lt.s32.totalorder %v2728, 4
    %v2751 = vsel %vm2747, %v2731, %v2734
    %v2752 = vsel %vm2750, %v2740, 2102212464
    %v2753 = vsel %vm2749, %v2737, %v2752
    %v2754 = vsel %vm2748, %v2751, %v2753
    %v2755 = vsel %vm2747, %v2734, %v2737
    %v2756 = vsel %vm2750, %v2743, 920167782
    %v2757 = vsel %vm2749, %v2740, %v2756
    %v2758 = vsel %vm2748, %v2755, %v2757
    %v2759 = vsel %vm2747, %v2737, %v2740
    %v2760 = vsel %vm2750, %v2746, 1326507024
    %v2761 = vsel %vm2749, %v2743, %v2760
    %v2762 = vsel %vm2748, %v2759, %v2761
    %v2763 = vshll.u32 %v2723, 8
    %v2764 = vand.u32 %v2763, 65535
    %v2765 = vshrl.u32 %v2763, 16
    %v2766 = vand.u32 %v2762, 65535
    %v2767 = vshrl.u32 %v2762, 16
    %v2768 = vmul.u32 %v2764, %v2766
    %v2769 = vmul.u32 %v2764, %v2767
    %v2770 = vmul.u32 %v2765, %v2766
    %v2771 = vmul.u32 %v2765, %v2767
    %v2772 = vshll.u32 %v2769, 16
    %v2773 = vshrl.u32 %v2769, 16
    %v2774 = vshll.u32 %v2770, 16
    %v2775 = vshrl.u32 %v2770, 16
    %vm2776 = vc.u32 %v2768, %v2772
    %v2777 = vsel %vm2776, 1, 0
    %v2778 = vadd.s32 %v2768, %v2772
    %v2779 = vadd.s32 %v2771, %v2777
    %vm2780 = vc.u32 %v2778, %v2774
    %v2781 = vsel %vm2780, 1, 0
    %v2782 = vadd.s32 %v2778, %v2774
    %v2783 = vadd.s32 %v2779, %v2781
    %v2784 = vadd.s32 %v2783, %v2773
    %v2785 = vadd.s32 %v2784, %v2775
    %v2786 = vand.u32 %v2763, 65535
    %v2787 = vshrl.u32 %v2763, 16
    %v2788 = vand.u32 %v2758, 65535
    %v2789 = vshrl.u32 %v2758, 16
    %v2790 = vmul.u32 %v2786, %v2788
    %v2791 = vmul.u32 %v2786, %v2789
    %v2792 = vmul.u32 %v2787, %v2788
    %v2793 = vmul.u32 %v2787, %v2789
    %v2794 = vshll.u32 %v2791, 16
    %v2795 = vshrl.u32 %v2791, 16
    %v2796 = vshll.u32 %v2792, 16
    %v2797 = vshrl.u32 %v2792, 16
    %vm2798 = vc.u32 %v2790, %v2794
    %v2799 = vsel %vm2798, 1, 0
    %v2800 = vadd.s32 %v2790, %v2794
    %v2801 = vadd.s32 %v2793, %v2799
    %vm2802 = vc.u32 %v2800, %v2796
    %v2803 = vsel %vm2802, 1, 0
    %v2804 = vadd.s32 %v2800, %v2796
    %v2805 = vadd.s32 %v2801, %v2803
    %v2806 = vadd.s32 %v2805, %v2795
    %v2807 = vadd.s32 %v2806, %v2797
    %v2808 = vmul.u32 %v2763, %v2754
    %v2809 = vadd.s32 %v2785, %v2804
    %vm2810 = vc.u32 %v2785, %v2804
    %v2811 = vadd.s32 %v2807, 1
    %v2812 = vsel %vm2810, %v2811, %v2807
    %v2813 = vadd.s32 %v2808, %v2812
    %v2814 = vadd.s32 %v2813, 536870912
    %v2815 = vshrl.u32 %v2814, 30
    %v2816 = vshll.u32 %v2815, 30
    %v2817 = vsub.s32 %v2813, %v2816
    %vm2818 = vcmp.lt.s32.totalorder %v2817, 0
    %v2819 = vsub.s32 0, %v2817
    %v2820 = vsel %vm2818, %v2819, %v2817
    %v2821 = vclz %v2820
    %v2822 = vsub.s32 %v2821, 2
    %vm2823 = vcmp.gt.s32.totalorder 0, %v2822
    %v2824 = vsel %vm2823, 0, %v2822
    %v2825 = vsub.s32 32, %v2824
    %v2826 = vshll.u32 %v2817, %v2824
    %v2827 = vshrl.u32 %v2809, %v2825
    %v2828 = vor.u32 %v2826, %v2827
    %v2829 = vsub.s32 4294967266, %v2824
    %v2830 = vadd.s32 %v2829, 127
    %v2831 = vshll.u32 %v2830, 23
    %v2832 = vor.u32 4788187, %v2831
    %v2833 = vand.u32 2147483647, %v2832
    %v2835 = vcvt.s32.f32 %v2828
    %v2836 = vmul.f32 %v2835, %v2833
    %v2837 = vxor.u32 %v2836, 2147483648
    %v2838 = vsel %vm2717, %v2837, %v2836
    %v2839 = vsub.s32 4, %v2815
    %v2840 = vsel %vm2717, %v2839, %v2815
    %v2841 = vsel %vm2716, %v2711, %v2838
    %v2842 = vsel %vm2716, 0, %v2840
    %v2843 = vmul.f32 %v2841, %v2841
    %v2844 = vmul.f32 %v2843, -0.001358992
    %v2845 = vadd.f32 %v2844, 0.041655596
    %v2846 = vmul.f32 %v2843, %v2845
    %v2847 = vadd.f32 %v2846, -0.4999988
    %v2848 = vmul.f32 %v2843, %v2847
    %v2849 = vadd.f32 1.0, %v2848
    %v2850 = vmul.f32 %v2841, %v2841
    %v2851 = vmul.f32 %v2850, -0.00019511016
    %v2852 = vadd.f32 %v2851, 0.008332121
    %v2853 = vmul.f32 %v2850, %v2852
    %v2854 = vadd.f32 %v2853, -0.16666654
    %v2855 = vmul.f32 %v2850, %v2854
    %v2856 = vadd.f32 %v2855, 1.0
    %v2857 = vmul.f32 %v2856, %v2841
    %vm2858 = vweird.f32 %v2711
    %v2859 = vadd.s32 %v2842, 3
    %v2860 = vand.u32 %v2859, 3
    %vm2861 = vcmp.lt.s32.totalorder %v2860, 2
    %vm2862 = vcmp.eq.s32.totalorder %v2860, 0
    %v2863 = vxor.u32 %v2857, 2147483648
    %v2864 = vsel %vm2862, %v2849, %v2863
    %vm2865 = vcmp.eq.s32.totalorder %v2860, 2
    %v2866 = vxor.u32 %v2849, 2147483648
    %v2867 = vsel %vm2865, %v2866, %v2857
    %v2868 = vsel %vm2861, %v2864, %v2867
    %v2869 = vsel %vm2858, nan, %v2868
    %v2870 = vand.u32 2147483647, %v2712
    %vm2871 = vcmp.le.f32.partialorder %v2870, 0.7853982
    %vm2872 = vcmp.lt.s32.totalorder %v2712, 0
    %v2873 = vand.u32 %v2712, 2139095040
    %v2874 = vshrl.u32 %v2873, 23
    %v2875 = vsub.s32 %v2874, 127
    %v2876 = vand.u32 2147483647, %v2712
    %v2877 = vand.u32 %v2876, 8388607
    %v2878 = vor.u32 %v2877, 8388608
    %v2879 = vsub.s32 0, %v2878
    %v2880 = vadd.s32 %v2875, 1
    %vm2881 = vcmp.gt.s32.totalorder %v2880, 0
    %v2882 = vsel %vm2881, %v2880, 0
    %v2883 = vshrl.u32 %v2882, 5
    %v2884 = vand.u32 %v2882, 31
    %v2885 = vsub.s32 32, %v2884
    %v2886 = vshrl.u32 683565275, %v2885
    %v2887 = vshll.u32 683565275, %v2884
    %v2888 = vshrl.u32 2475754826, %v2885
    %v2889 = vor.u32 %v2887, %v2888
    %v2890 = vshll.u32 2475754826, %v2884
    %v2891 = vshrl.u32 2131351028, %v2885
    %v2892 = vor.u32 %v2890, %v2891
    %v2893 = vshll.u32 2131351028, %v2884
    %v2894 = vshrl.u32 2102212464, %v2885
    %v2895 = vor.u32 %v2893, %v2894
    %v2896 = vshll.u32 2102212464, %v2884
    %v2897 = vshrl.u32 920167782, %v2885
    %v2898 = vor.u32 %v2896, %v2897
    %v2899 = vshll.u32 920167782, %v2884
    %v2900 = vshrl.u32 1326507024, %v2885
    %v2901 = vor.u32 %v2899, %v2900
    %vm2902 = vcmp.lt.s32.totalorder %v2883, 1
    %vm2903 = vcmp.lt.s32.totalorder %v2883, 2
    %vm2904 = vcmp.lt.s32.totalorder %v2883, 3
    %vm2905 = vcmp.lt.s32.totalorder %v2883, 4
    %v2906 = vsel %vm2902, %v2886, %v2889
    %v2907 = vsel %vm2905, %v2895, 2102212464
    %v2908 = vsel %vm2904, %v2892, %v2907
    %v2909 = vsel %vm2903, %v2906, %v2908
    %v2910 = vsel %vm2902, %v2889, %v2892
    %v2911 = vsel %vm2905, %v2898, 920167782
    %v2912 = vsel %vm2904, %v2895, %v2911
    %v2913 = vsel %vm2903, %v2910, %v2912
    %v2914 = vsel %vm2902, %v2892, %v2895
    %v2915 = vsel %vm2905, %v2901, 1326507024
    %v2916 = vsel %vm2904, %v2898, %v2915
    %v2917 = vsel %vm2903, %v2914, %v2916
    %v2918 = vshll.u32 %v2878, 8
    %v2919 = vand.u32 %v2918, 65535
    %v2920 = vshrl.u32 %v2918, 16
    %v2921 = vand.u32 %v2917, 65535
    %v2922 = vshrl.u32 %v2917, 16
    %v2923 = vmul.u32 %v2919, %v2921
    %v2924 = vmul.u32 %v2919, %v2922
    %v2925 = vmul.u32 %v2920, %v2921
    %v2926 = vmul.u32 %v2920, %v2922
    %v2927 = vshll.u32 %v2924, 16
    %v2928 = vshrl.u32 %v2924, 16
    %v2929 = vshll.u32 %v2925, 16
    %v2930 = vshrl.u32 %v2925, 16
    %vm2931 = vc.u32 %v2923, %v2927
    %v2932 = vsel %vm2931, 1, 0
    %v2933 = vadd.s32 %v2923, %v2927
    %v2934 = vadd.s32 %v2926, %v2932
    %vm2935 = vc.u32 %v2933, %v2929
    %v2936 = vsel %vm2935, 1, 0
    %v2937 = vadd.s32 %v2933, %v2929
    %v2938 = vadd.s32 %v2934, %v2936
    %v2939 = vadd.s32 %v2938, %v2928
    %v2940 = vadd.s32 %v2939, %v2930
    %v2941 = vand.u32 %v2918, 65535
    %v2942 = vshrl.u32 %v2918, 16
    %v2943 = vand.u32 %v2913, 65535
    %v2944 = vshrl.u32 %v2913, 16
    %v2945 = vmul.u32 %v2941, %v2943
    %v2946 = vmul.u32 %v2941, %v2944
    %v2947 = vmul.u32 %v2942, %v2943
    %v2948 = vmul.u32 %v2942, %v2944
    %v2949 = vshll.u32 %v2946, 16
    %v2950 = vshrl.u32 %v2946, 16
    %v2951 = vshll.u32 %v2947, 16
    %v2952 = vshrl.u32 %v2947, 16
    %vm2953 = vc.u32 %v2945, %v2949
    %v2954 = vsel %vm2953, 1, 0
    %v2955 = vadd.s32 %v2945, %v2949
    %v2956 = vadd.s32 %v2948, %v2954
    %vm2957 = vc.u32 %v2955, %v2951
    %v2958 = vsel %vm2957, 1, 0
    %v2959 = vadd.s32 %v2955, %v2951
    %v2960 = vadd.s32 %v2956, %v2958
    %v2961 = vadd.s32 %v2960, %v2950
    %v2962 = vadd.s32 %v2961, %v2952
    %v2963 = vmul.u32 %v2918, %v2909
    %v2964 = vadd.s32 %v2940, %v2959
    %vm2965 = vc.u32 %v2940, %v2959
    %v2966 = vadd.s32 %v2962, 1
    %v2967 = vsel %vm2965, %v2966, %v2962
    %v2968 = vadd.s32 %v2963, %v2967
    %v2969 = vadd.s32 %v2968, 536870912
    %v2970 = vshrl.u32 %v2969, 30
    %v2971 = vshll.u32 %v2970, 30
    %v2972 = vsub.s32 %v2968, %v2971
    %vm2973 = vcmp.lt.s32.totalorder %v2972, 0
    %v2974 = vsub.s32 0, %v2972
    %v2975 = vsel %vm2973, %v2974, %v2972
    %v2976 = vclz %v2975
    %v2977 = vsub.s32 %v2976, 2
    %vm2978 = vcmp.gt.s32.totalorder 0, %v2977
    %v2979 = vsel %vm2978, 0, %v2977
    %v2980 = vsub.s32 32, %v2979
    %v2981 = vshll.u32 %v2972, %v2979
    %v2982 = vshrl.u32 %v2964, %v2980
    %v2983 = vor.u32 %v2981, %v2982
    %v2984 = vsub.s32 4294967266, %v2979
    %v2985 = vadd.s32 %v2984, 127
    %v2986 = vshll.u32 %v2985, 23
    %v2987 = vor.u32 4788187, %v2986
    %v2988 = vand.u32 2147483647, %v2987
    %v2990 = vcvt.s32.f32 %v2983
    %v2991 = vmul.f32 %v2990, %v2988
    %v2992 = vxor.u32 %v2991, 2147483648
    %v2993 = vsel %vm2872, %v2992, %v2991
    %v2994 = vsub.s32 4, %v2970
    %v2995 = vsel %vm2872, %v2994, %v2970
    %v2996 = vsel %vm2871, %v2712, %v2993
    %v2997 = vsel %vm2871, 0, %v2995
    %v2998 = vmul.f32 %v2996, %v2996
    %v2999 = vmul.f32 %v2998, -0.001358992
    %v3000 = vadd.f32 %v2999, 0.041655596
    %v3001 = vmul.f32 %v2998, %v3000
    %v3002 = vadd.f32 %v3001, -0.4999988
    %v3003 = vmul.f32 %v2998, %v3002
    %v3004 = vadd.f32 1.0, %v3003
    %v3005 = vmul.f32 %v2996, %v2996
    %v3006 = vmul.f32 %v3005, -0.00019511016
    %v3007 = vadd.f32 %v3006, 0.008332121
    %v3008 = vmul.f32 %v3005, %v3007
    %v3009 = vadd.f32 %v3008, -0.16666654
    %v3010 = vmul.f32 %v3005, %v3009
    %v3011 = vadd.f32 %v3010, 1.0
    %v3012 = vmul.f32 %v3011, %v2996
    %vm3013 = vweird.f32 %v2712
    %v3014 = vadd.s32 %v2997, 3
    %v3015 = vand.u32 %v3014, 3
    %vm3016 = vcmp.lt.s32.totalorder %v3015, 2
    %vm3017 = vcmp.eq.s32.totalorder %v3015, 0
    %v3018 = vxor.u32 %v3012, 2147483648
    %v3019 = vsel %vm3017, %v3004, %v3018
    %vm3020 = vcmp.eq.s32.totalorder %v3015, 2
    %v3021 = vxor.u32 %v3004, 2147483648
    %v3022 = vsel %vm3020, %v3021, %v3012
    %v3023 = vsel %vm3016, %v3019, %v3022
    %v3024 = vsel %vm3013, nan, %v3023
    %v3025 = vand.u32 2147483647, %v2713
    %vm3026 = vcmp.le.f32.partialorder %v3025, 0.7853982
    %vm3027 = vcmp.lt.s32.totalorder %v2713, 0
    %v3028 = vand.u32 %v2713, 2139095040
    %v3029 = vshrl.u32 %v3028, 23
    %v3030 = vsub.s32 %v3029, 127
    %v3031 = vand.u32 2147483647, %v2713
    %v3032 = vand.u32 %v3031, 8388607
    %v3033 = vor.u32 %v3032, 8388608
    %v3034 = vsub.s32 0, %v3033
    %v3035 = vadd.s32 %v3030, 1
    %vm3036 = vcmp.gt.s32.totalorder %v3035, 0
    %v3037 = vsel %vm3036, %v3035, 0
    %v3038 = vshrl.u32 %v3037, 5
    %v3039 = vand.u32 %v3037, 31
    %v3040 = vsub.s32 32, %v3039
    %v3041 = vshrl.u32 683565275, %v3040
    %v3042 = vshll.u32 683565275, %v3039
    %v3043 = vshrl.u32 2475754826, %v3040
    %v3044 = vor.u32 %v3042, %v3043
    %v3045 = vshll.u32 2475754826, %v3039
    %v3046 = vshrl.u32 2131351028, %v3040
    %v3047 = vor.u32 %v3045, %v3046
    %v3048 = vshll.u32 2131351028, %v3039
    %v3049 = vshrl.u32 2102212464, %v3040
    %v3050 = vor.u32 %v3048, %v3049
    %v3051 = vshll.u32 2102212464, %v3039
    %v3052 = vshrl.u32 920167782, %v3040
    %v3053 = vor.u32 %v3051, %v3052
    %v3054 = vshll.u32 920167782, %v3039
    %v3055 = vshrl.u32 1326507024, %v3040
    %v3056 = vor.u32 %v3054, %v3055
    %vm3057 = vcmp.lt.s32.totalorder %v3038, 1
    %vm3058 = vcmp.lt.s32.totalorder %v3038, 2
    %vm3059 = vcmp.lt.s32.totalorder %v3038, 3
    %vm3060 = vcmp.lt.s32.totalorder %v3038, 4
    %v3061 = vsel %vm3057, %v3041, %v3044
    %v3062 = vsel %vm3060, %v3050, 2102212464
    %v3063 = vsel %vm3059, %v3047, %v3062
    %v3064 = vsel %vm3058, %v3061, %v3063
    %v3065 = vsel %vm3057, %v3044, %v3047
    %v3066 = vsel %vm3060, %v3053, 920167782
    %v3067 = vsel %vm3059, %v3050, %v3066
    %v3068 = vsel %vm3058, %v3065, %v3067
    %v3069 = vsel %vm3057, %v3047, %v3050
    %v3070 = vsel %vm3060, %v3056, 1326507024
    %v3071 = vsel %vm3059, %v3053, %v3070
    %v3072 = vsel %vm3058, %v3069, %v3071
    %v3073 = vshll.u32 %v3033, 8
    %v3074 = vand.u32 %v3073, 65535
    %v3075 = vshrl.u32 %v3073, 16
    %v3076 = vand.u32 %v3072, 65535
    %v3077 = vshrl.u32 %v3072, 16
    %v3078 = vmul.u32 %v3074, %v3076
    %v3079 = vmul.u32 %v3074, %v3077
    %v3080 = vmul.u32 %v3075, %v3076
    %v3081 = vmul.u32 %v3075, %v3077
    %v3082 = vshll.u32 %v3079, 16
    %v3083 = vshrl.u32 %v3079, 16
    %v3084 = vshll.u32 %v3080, 16
    %v3085 = vshrl.u32 %v3080, 16
    %vm3086 = vc.u32 %v3078, %v3082
    %v3087 = vsel %vm3086, 1, 0
    %v3088 = vadd.s32 %v3078, %v3082
    %v3089 = vadd.s32 %v3081, %v3087
    %vm3090 = vc.u32 %v3088, %v3084
    %v3091 = vsel %vm3090, 1, 0
    %v3092 = vadd.s32 %v3088, %v3084
    %v3093 = vadd.s32 %v3089, %v3091
    %v3094 = vadd.s32 %v3093, %v3083
    %v3095 = vadd.s32 %v3094, %v3085
    %v3096 = vand.u32 %v3073, 65535
    %v3097 = vshrl.u32 %v3073, 16
    %v3098 = vand.u32 %v3068, 65535
    %v3099 = vshrl.u32 %v3068, 16
    %v3100 = vmul.u32 %v3096, %v3098
    %v3101 = vmul.u32 %v3096, %v3099
    %v3102 = vmul.u32 %v3097, %v3098
    %v3103 = vmul.u32 %v3097, %v3099
    %v3104 = vshll.u32 %v3101, 16
    %v3105 = vshrl.u32 %v3101, 16
    %v3106 = vshll.u32 %v3102, 16
    %v3107 = vshrl.u32 %v3102, 16
    %vm3108 = vc.u32 %v3100, %v3104
    %v3109 = vsel %vm3108, 1, 0
    %v3110 = vadd.s32 %v3100, %v3104
    %v3111 = vadd.s32 %v3103, %v3109
    %vm3112 = vc.u32 %v3110, %v3106
    %v3113 = vsel %vm3112, 1, 0
    %v3114 = vadd.s32 %v3110, %v3106
    %v3115 = vadd.s32 %v3111, %v3113
    %v3116 = vadd.s32 %v3115, %v3105
    %v3117 = vadd.s32 %v3116, %v3107
    %v3118 = vmul.u32 %v3073, %v3064
    %v3119 = vadd.s32 %v3095, %v3114
    %vm3120 = vc.u32 %v3095, %v3114
    %v3121 = vadd.s32 %v3117, 1
    %v3122 = vsel %vm3120, %v3121, %v3117
    %v3123 = vadd.s32 %v3118, %v3122
    %v3124 = vadd.s32 %v3123, 536870912
    %v3125 = vshrl.u32 %v3124, 30
    %v3126 = vshll.u32 %v3125, 30
    %v3127 = vsub.s32 %v3123, %v3126
    %vm3128 = vcmp.lt.s32.totalorder %v3127, 0
    %v3129 = vsub.s32 0, %v3127
    %v3130 = vsel %vm3128, %v3129, %v3127
    %v3131 = vclz %v3130
    %v3132 = vsub.s32 %v3131, 2
    %vm3133 = vcmp.gt.s32.totalorder 0, %v3132
    %v3134 = vsel %vm3133, 0, %v3132
    %v3135 = vsub.s32 32, %v3134
    %v3136 = vshll.u32 %v3127, %v3134
    %v3137 = vshrl.u32 %v3119, %v3135
    %v3138 = vor.u32 %v3136, %v3137
    %v3139 = vsub.s32 4294967266, %v3134
    %v3140 = vadd.s32 %v3139, 127
    %v3141 = vshll.u32 %v3140, 23
    %v3142 = vor.u32 4788187, %v3141
    %v3143 = vand.u32 2147483647, %v3142
    %v3145 = vcvt.s32.f32 %v3138
    %v3146 = vmul.f32 %v3145, %v3143
    %v3147 = vxor.u32 %v3146, 2147483648
    %v3148 = vsel %vm3027, %v3147, %v3146
    %v3149 = vsub.s32 4, %v3125
    %v3150 = vsel %vm3027, %v3149, %v3125
    %v3151 = vsel %vm3026, %v2713, %v3148
    %v3152 = vsel %vm3026, 0, %v3150
    %v3153 = vmul.f32 %v3151, %v3151
    %v3154 = vmul.f32 %v3153, -0.001358992
    %v3155 = vadd.f32 %v3154, 0.041655596
    %v3156 = vmul.f32 %v3153, %v3155
    %v3157 = vadd.f32 %v3156, -0.4999988
    %v3158 = vmul.f32 %v3153, %v3157
    %v3159 = vadd.f32 1.0, %v3158
    %v3160 = vmul.f32 %v3151, %v3151
    %v3161 = vmul.f32 %v3160, -0.00019511016
    %v3162 = vadd.f32 %v3161, 0.008332121
    %v3163 = vmul.f32 %v3160, %v3162
    %v3164 = vadd.f32 %v3163, -0.16666654
    %v3165 = vmul.f32 %v3160, %v3164
    %v3166 = vadd.f32 %v3165, 1.0
    %v3167 = vmul.f32 %v3166, %v3151
    %vm3168 = vweird.f32 %v2713
    %v3169 = vadd.s32 %v3152, 3
    %v3170 = vand.u32 %v3169, 3
    %vm3171 = vcmp.lt.s32.totalorder %v3170, 2
    %vm3172 = vcmp.eq.s32.totalorder %v3170, 0
    %v3173 = vxor.u32 %v3167, 2147483648
    %v3174 = vsel %vm3172, %v3159, %v3173
    %vm3175 = vcmp.eq.s32.totalorder %v3170, 2
    %v3176 = vxor.u32 %v3159, 2147483648
    %v3177 = vsel %vm3175, %v3176, %v3167
    %v3178 = vsel %vm3171, %v3174, %v3177
    %v3179 = vsel %vm3168, nan, %v3178
    %v3180 = vand.u32 2147483647, %v2714
    %vm3181 = vcmp.le.f32.partialorder %v3180, 0.7853982
    %vm3182 = vcmp.lt.s32.totalorder %v2714, 0
    %v3183 = vand.u32 %v2714, 2139095040
    %v3184 = vshrl.u32 %v3183, 23
    %v3185 = vsub.s32 %v3184, 127
    %v3186 = vand.u32 2147483647, %v2714
    %v3187 = vand.u32 %v3186, 8388607
    %v3188 = vor.u32 %v3187, 8388608
    %v3189 = vsub.s32 0, %v3188
    %v3190 = vadd.s32 %v3185, 1
    %vm3191 = vcmp.gt.s32.totalorder %v3190, 0
    %v3192 = vsel %vm3191, %v3190, 0
    %v3193 = vshrl.u32 %v3192, 5
    %v3194 = vand.u32 %v3192, 31
    %v3195 = vsub.s32 32, %v3194
    %v3196 = vshrl.u32 683565275, %v3195
    %v3197 = vshll.u32 683565275, %v3194
    %v3198 = vshrl.u32 2475754826, %v3195
    %v3199 = vor.u32 %v3197, %v3198
    %v3200 = vshll.u32 2475754826, %v3194
    %v3201 = vshrl.u32 2131351028, %v3195
    %v3202 = vor.u32 %v3200, %v3201
    %v3203 = vshll.u32 2131351028, %v3194
    %v3204 = vshrl.u32 2102212464, %v3195
    %v3205 = vor.u32 %v3203, %v3204
    %v3206 = vshll.u32 2102212464, %v3194
    %v3207 = vshrl.u32 920167782, %v3195
    %v3208 = vor.u32 %v3206, %v3207
    %v3209 = vshll.u32 920167782, %v3194
    %v3210 = vshrl.u32 1326507024, %v3195
    %v3211 = vor.u32 %v3209, %v3210
    %vm3212 = vcmp.lt.s32.totalorder %v3193, 1
    %vm3213 = vcmp.lt.s32.totalorder %v3193, 2
    %vm3214 = vcmp.lt.s32.totalorder %v3193, 3
    %vm3215 = vcmp.lt.s32.totalorder %v3193, 4
    %v3216 = vsel %vm3212, %v3196, %v3199
    %v3217 = vsel %vm3215, %v3205, 2102212464
    %v3218 = vsel %vm3214, %v3202, %v3217
    %v3219 = vsel %vm3213, %v3216, %v3218
    %v3220 = vsel %vm3212, %v3199, %v3202
    %v3221 = vsel %vm3215, %v3208, 920167782
    %v3222 = vsel %vm3214, %v3205, %v3221
    %v3223 = vsel %vm3213, %v3220, %v3222
    %v3224 = vsel %vm3212, %v3202, %v3205
    %v3225 = vsel %vm3215, %v3211, 1326507024
    %v3226 = vsel %vm3214, %v3208, %v3225
    %v3227 = vsel %vm3213, %v3224, %v3226
    %v3228 = vshll.u32 %v3188, 8
    %v3229 = vand.u32 %v3228, 65535
    %v3230 = vshrl.u32 %v3228, 16
    %v3231 = vand.u32 %v3227, 65535
    %v3232 = vshrl.u32 %v3227, 16
    %v3233 = vmul.u32 %v3229, %v3231
    %v3234 = vmul.u32 %v3229, %v3232
    %v3235 = vmul.u32 %v3230, %v3231
    %v3236 = vmul.u32 %v3230, %v3232
    %v3237 = vshll.u32 %v3234, 16
    %v3238 = vshrl.u32 %v3234, 16
    %v3239 = vshll.u32 %v3235, 16
    %v3240 = vshrl.u32 %v3235, 16
    %vm3241 = vc.u32 %v3233, %v3237
    %v3242 = vsel %vm3241, 1, 0
    %v3243 = vadd.s32 %v3233, %v3237
    %v3244 = vadd.s32 %v3236, %v3242
    %vm3245 = vc.u32 %v3243, %v3239
    %v3246 = vsel %vm3245, 1, 0
    %v3247 = vadd.s32 %v3243, %v3239
    %v3248 = vadd.s32 %v3244, %v3246
    %v3249 = vadd.s32 %v3248, %v3238
    %v3250 = vadd.s32 %v3249, %v3240
    %v3251 = vand.u32 %v3228, 65535
    %v3252 = vshrl.u32 %v3228, 16
    %v3253 = vand.u32 %v3223, 65535
    %v3254 = vshrl.u32 %v3223, 16
    %v3255 = vmul.u32 %v3251, %v3253
    %v3256 = vmul.u32 %v3251, %v3254
    %v3257 = vmul.u32 %v3252, %v3253
    %v3258 = vmul.u32 %v3252, %v3254
    %v3259 = vshll.u32 %v3256, 16
    %v3260 = vshrl.u32 %v3256, 16
    %v3261 = vshll.u32 %v3257, 16
    %v3262 = vshrl.u32 %v3257, 16
    %vm3263 = vc.u32 %v3255, %v3259
    %v3264 = vsel %vm3263, 1, 0
    %v3265 = vadd.s32 %v3255, %v3259
    %v3266 = vadd.s32 %v3258, %v3264
    %vm3267 = vc.u32 %v3265, %v3261
    %v3268 = vsel %vm3267, 1, 0
    %v3269 = vadd.s32 %v3265, %v3261
    %v3270 = vadd.s32 %v3266, %v3268
    %v3271 = vadd.s32 %v3270, %v3260
    %v3272 = vadd.s32 %v3271, %v3262
    %v3273 = vmul.u32 %v3228, %v3219
    %v3274 = vadd.s32 %v3250, %v3269
    %vm3275 = vc.u32 %v3250, %v3269
    %v3276 = vadd.s32 %v3272, 1
    %v3277 = vsel %vm3275, %v3276, %v3272
    %v3278 = vadd.s32 %v3273, %v3277
    %v3279 = vadd.s32 %v3278, 536870912
    %v3280 = vshrl.u32 %v3279, 30
    %v3281 = vshll.u32 %v3280, 30
    %v3282 = vsub.s32 %v3278, %v3281
    %vm3283 = vcmp.lt.s32.totalorder %v3282, 0
    %v3284 = vsub.s32 0, %v3282
    %v3285 = vsel %vm3283, %v3284, %v3282
    %v3286 = vclz %v3285
    %v3287 = vsub.s32 %v3286, 2
    %vm3288 = vcmp.gt.s32.totalorder 0, %v3287
    %v3289 = vsel %vm3288, 0, %v3287
    %v3290 = vsub.s32 32, %v3289
    %v3291 = vshll.u32 %v3282, %v3289
    %v3292 = vshrl.u32 %v3274, %v3290
    %v3293 = vor.u32 %v3291, %v3292
    %v3294 = vsub.s32 4294967266, %v3289
    %v3295 = vadd.s32 %v3294, 127
    %v3296 = vshll.u32 %v3295, 23
    %v3297 = vor.u32 4788187, %v3296
    %v3298 = vand.u32 2147483647, %v3297
    %v3300 = vcvt.s32.f32 %v3293
    %v3301 = vmul.f32 %v3300, %v3298
    %v3302 = vxor.u32 %v3301, 2147483648
    %v3303 = vsel %vm3182, %v3302, %v3301
    %v3304 = vsub.s32 4, %v3280
    %v3305 = vsel %vm3182, %v3304, %v3280
    %v3306 = vsel %vm3181, %v2714, %v3303
    %v3307 = vsel %vm3181, 0, %v3305
    %v3308 = vmul.f32 %v3306, %v3306
    %v3309 = vmul.f32 %v3308, -0.001358992
    %v3310 = vadd.f32 %v3309, 0.041655596
    %v3311 = vmul.f32 %v3308, %v3310
    %v3312 = vadd.f32 %v3311, -0.4999988
    %v3313 = vmul.f32 %v3308, %v3312
    %v3314 = vadd.f32 1.0, %v3313
    %v3315 = vmul.f32 %v3306, %v3306
    %v3316 = vmul.f32 %v3315, -0.00019511016
    %v3317 = vadd.f32 %v3316, 0.008332121
    %v3318 = vmul.f32 %v3315, %v3317
    %v3319 = vadd.f32 %v3318, -0.16666654
    %v3320 = vmul.f32 %v3315, %v3319
    %v3321 = vadd.f32 %v3320, 1.0
    %v3322 = vmul.f32 %v3321, %v3306
    %vm3323 = vweird.f32 %v2714
    %v3324 = vadd.s32 %v3307, 3
    %v3325 = vand.u32 %v3324, 3
    %vm3326 = vcmp.lt.s32.totalorder %v3325, 2
    %vm3327 = vcmp.eq.s32.totalorder %v3325, 0
    %v3328 = vxor.u32 %v3322, 2147483648
    %v3329 = vsel %vm3327, %v3314, %v3328
    %vm3330 = vcmp.eq.s32.totalorder %v3325, 2
    %v3331 = vxor.u32 %v3314, 2147483648
    %v3332 = vsel %vm3330, %v3331, %v3322
    %v3333 = vsel %vm3326, %v3329, %v3332
    %v3334 = vsel %vm3323, nan, %v3333
    %3339 = vst [vmem:[#allocation1] ss:$2 sm:$0xff] %v2869
    %s3340 = scalar_lea.vmem [#allocation1], 16
    %3341 = vst [vmem:[%s3340] ss:$2 sm:$0xff] %v3024
    %s3342 = scalar_lea.vmem [#allocation1], 32
    %3343 = vst [vmem:[%s3342] ss:$2 sm:$0xff] %v3179
    %s3344 = scalar_lea.vmem [#allocation1], 48
    %3345 = vst [vmem:[%s3344] ss:$2 sm:$0xff] %v3334
    %v3346 = vld.sshfl [vmem:[#allocation1] sm:$0xff pattern:$0x75316420]
    %v3347 = vld.sshfl [vmem:[#allocation1 + $0x8] sm:$0xff pattern:$0x75316420]
    %v3348 = vld.sshfl [vmem:[#allocation1 + $0x10] sm:$0xff pattern:$0x75316420]
    %v3349 = vld.sshfl [vmem:[#allocation1 + $0x18] sm:$0xff pattern:$0x75316420]
    %v3350 = vld.sshfl [vmem:[#allocation1 + $0x20] sm:$0xff pattern:$0x75316420]
    %v3351 = vld.sshfl [vmem:[#allocation1 + $0x28] sm:$0xff pattern:$0x75316420]
    %v3352 = vld.sshfl [vmem:[#allocation1 + $0x30] sm:$0xff pattern:$0x75316420]
    %v3353 = vld.sshfl [vmem:[#allocation1 + $0x38] sm:$0xff pattern:$0x75316420]
    %v3354 = vrot.slane %v3346, 1
    %v3355 = vrot.slane %v3347, 1
    %v3356 = vrot.slane %v3348, 1
    %v3357 = vrot.slane %v3349, 1
    %v3358 = vrot.slane %v3350, 1
    %v3359 = vrot.slane %v3351, 1
    %v3360 = vrot.slane %v3352, 1
    %v3361 = vrot.slane %v3353, 1
    %3370 = vst [vmem:[#allocation5 + $0x40] sm:$0x80] %v3354
    %3371 = vst [vmem:[#allocation5 + $0x48] sm:$0x80] %v3355
    %3372 = vst [vmem:[#allocation5 + $0x50] sm:$0x80] %v3356
    %3373 = vst [vmem:[#allocation5 + $0x58] sm:$0x80] %v3357
    %3374 = vst [vmem:[#allocation5 + $0x60] sm:$0x80] %v3358
    %3375 = vst [vmem:[#allocation5 + $0x68] sm:$0x80] %v3359
    %3376 = vst [vmem:[#allocation5 + $0x70] sm:$0x80] %v3360
    %3377 = vst [vmem:[#allocation5 + $0x78] sm:$0x80] %v3361
    %3378 = vst [vmem:[#allocation5 + $0x80] sm:$0x3] %v3354
    %3379 = vst [vmem:[#allocation5 + $0x88] sm:$0x3] %v3355
    %3380 = vst [vmem:[#allocation5 + $0x90] sm:$0x3] %v3356
    %3381 = vst [vmem:[#allocation5 + $0x98] sm:$0x3] %v3357
    %3382 = vst [vmem:[#allocation5 + $0xa0] sm:$0x3] %v3358
    %3383 = vst [vmem:[#allocation5 + $0xa8] sm:$0x3] %v3359
    %3384 = vst [vmem:[#allocation5 + $0xb0] sm:$0x3] %v3360
    %3385 = vst [vmem:[#allocation5 + $0xb8] sm:$0x3] %v3361
    %v3386 = vand.u32 2147483647, %v2711
    %vm3387 = vcmp.le.f32.partialorder %v3386, 0.7853982
    %vm3388 = vcmp.lt.s32.totalorder %v2711, 0
    %v3389 = vand.u32 %v2711, 2139095040
    %v3390 = vshrl.u32 %v3389, 23
    %v3391 = vsub.s32 %v3390, 127
    %v3392 = vand.u32 2147483647, %v2711
    %v3393 = vand.u32 %v3392, 8388607
    %v3394 = vor.u32 %v3393, 8388608
    %v3395 = vsub.s32 0, %v3394
    %v3396 = vadd.s32 %v3391, 1
    %vm3397 = vcmp.gt.s32.totalorder %v3396, 0
    %v3398 = vsel %vm3397, %v3396, 0
    %v3399 = vshrl.u32 %v3398, 5
    %v3400 = vand.u32 %v3398, 31
    %v3401 = vsub.s32 32, %v3400
    %v3402 = vshrl.u32 683565275, %v3401
    %v3403 = vshll.u32 683565275, %v3400
    %v3404 = vshrl.u32 2475754826, %v3401
    %v3405 = vor.u32 %v3403, %v3404
    %v3406 = vshll.u32 2475754826, %v3400
    %v3407 = vshrl.u32 2131351028, %v3401
    %v3408 = vor.u32 %v3406, %v3407
    %v3409 = vshll.u32 2131351028, %v3400
    %v3410 = vshrl.u32 2102212464, %v3401
    %v3411 = vor.u32 %v3409, %v3410
    %v3412 = vshll.u32 2102212464, %v3400
    %v3413 = vshrl.u32 920167782, %v3401
    %v3414 = vor.u32 %v3412, %v3413
    %v3415 = vshll.u32 920167782, %v3400
    %v3416 = vshrl.u32 1326507024, %v3401
    %v3417 = vor.u32 %v3415, %v3416
    %vm3418 = vcmp.lt.s32.totalorder %v3399, 1
    %vm3419 = vcmp.lt.s32.totalorder %v3399, 2
    %vm3420 = vcmp.lt.s32.totalorder %v3399, 3
    %vm3421 = vcmp.lt.s32.totalorder %v3399, 4
    %v3422 = vsel %vm3418, %v3402, %v3405
    %v3423 = vsel %vm3421, %v3411, 2102212464
    %v3424 = vsel %vm3420, %v3408, %v3423
    %v3425 = vsel %vm3419, %v3422, %v3424
    %v3426 = vsel %vm3418, %v3405, %v3408
    %v3427 = vsel %vm3421, %v3414, 920167782
    %v3428 = vsel %vm3420, %v3411, %v3427
    %v3429 = vsel %vm3419, %v3426, %v3428
    %v3430 = vsel %vm3418, %v3408, %v3411
    %v3431 = vsel %vm3421, %v3417, 1326507024
    %v3432 = vsel %vm3420, %v3414, %v3431
    %v3433 = vsel %vm3419, %v3430, %v3432
    %v3434 = vshll.u32 %v3394, 8
    %v3435 = vand.u32 %v3434, 65535
    %v3436 = vshrl.u32 %v3434, 16
    %v3437 = vand.u32 %v3433, 65535
    %v3438 = vshrl.u32 %v3433, 16
    %v3439 = vmul.u32 %v3435, %v3437
    %v3440 = vmul.u32 %v3435, %v3438
    %v3441 = vmul.u32 %v3436, %v3437
    %v3442 = vmul.u32 %v3436, %v3438
    %v3443 = vshll.u32 %v3440, 16
    %v3444 = vshrl.u32 %v3440, 16
    %v3445 = vshll.u32 %v3441, 16
    %v3446 = vshrl.u32 %v3441, 16
    %vm3447 = vc.u32 %v3439, %v3443
    %v3448 = vsel %vm3447, 1, 0
    %v3449 = vadd.s32 %v3439, %v3443
    %v3450 = vadd.s32 %v3442, %v3448
    %vm3451 = vc.u32 %v3449, %v3445
    %v3452 = vsel %vm3451, 1, 0
    %v3453 = vadd.s32 %v3449, %v3445
    %v3454 = vadd.s32 %v3450, %v3452
    %v3455 = vadd.s32 %v3454, %v3444
    %v3456 = vadd.s32 %v3455, %v3446
    %v3457 = vand.u32 %v3434, 65535
    %v3458 = vshrl.u32 %v3434, 16
    %v3459 = vand.u32 %v3429, 65535
    %v3460 = vshrl.u32 %v3429, 16
    %v3461 = vmul.u32 %v3457, %v3459
    %v3462 = vmul.u32 %v3457, %v3460
    %v3463 = vmul.u32 %v3458, %v3459
    %v3464 = vmul.u32 %v3458, %v3460
    %v3465 = vshll.u32 %v3462, 16
    %v3466 = vshrl.u32 %v3462, 16
    %v3467 = vshll.u32 %v3463, 16
    %v3468 = vshrl.u32 %v3463, 16
    %vm3469 = vc.u32 %v3461, %v3465
    %v3470 = vsel %vm3469, 1, 0
    %v3471 = vadd.s32 %v3461, %v3465
    %v3472 = vadd.s32 %v3464, %v3470
    %vm3473 = vc.u32 %v3471, %v3467
    %v3474 = vsel %vm3473, 1, 0
    %v3475 = vadd.s32 %v3471, %v3467
    %v3476 = vadd.s32 %v3472, %v3474
    %v3477 = vadd.s32 %v3476, %v3466
    %v3478 = vadd.s32 %v3477, %v3468
    %v3479 = vmul.u32 %v3434, %v3425
    %v3480 = vadd.s32 %v3456, %v3475
    %vm3481 = vc.u32 %v3456, %v3475
    %v3482 = vadd.s32 %v3478, 1
    %v3483 = vsel %vm3481, %v3482, %v3478
    %v3484 = vadd.s32 %v3479, %v3483
    %v3485 = vadd.s32 %v3484, 536870912
    %v3486 = vshrl.u32 %v3485, 30
    %v3487 = vshll.u32 %v3486, 30
    %v3488 = vsub.s32 %v3484, %v3487
    %vm3489 = vcmp.lt.s32.totalorder %v3488, 0
    %v3490 = vsub.s32 0, %v3488
    %v3491 = vsel %vm3489, %v3490, %v3488
    %v3492 = vclz %v3491
    %v3493 = vsub.s32 %v3492, 2
    %vm3494 = vcmp.gt.s32.totalorder 0, %v3493
    %v3495 = vsel %vm3494, 0, %v3493
    %v3496 = vsub.s32 32, %v3495
    %v3497 = vshll.u32 %v3488, %v3495
    %v3498 = vshrl.u32 %v3480, %v3496
    %v3499 = vor.u32 %v3497, %v3498
    %v3500 = vsub.s32 4294967266, %v3495
    %v3501 = vadd.s32 %v3500, 127
    %v3502 = vshll.u32 %v3501, 23
    %v3503 = vor.u32 4788187, %v3502
    %v3504 = vand.u32 2147483647, %v3503
    %v3506 = vcvt.s32.f32 %v3499
    %v3507 = vmul.f32 %v3506, %v3504
    %v3508 = vxor.u32 %v3507, 2147483648
    %v3509 = vsel %vm3388, %v3508, %v3507
    %v3510 = vsub.s32 4, %v3486
    %v3511 = vsel %vm3388, %v3510, %v3486
    %v3512 = vsel %vm3387, %v2711, %v3509
    %v3513 = vsel %vm3387, 0, %v3511
    %v3514 = vmul.f32 %v3512, %v3512
    %v3515 = vmul.f32 %v3514, -0.001358992
    %v3516 = vadd.f32 %v3515, 0.041655596
    %v3517 = vmul.f32 %v3514, %v3516
    %v3518 = vadd.f32 %v3517, -0.4999988
    %v3519 = vmul.f32 %v3514, %v3518
    %v3520 = vadd.f32 1.0, %v3519
    %v3521 = vmul.f32 %v3512, %v3512
    %v3522 = vmul.f32 %v3521, -0.00019511016
    %v3523 = vadd.f32 %v3522, 0.008332121
    %v3524 = vmul.f32 %v3521, %v3523
    %v3525 = vadd.f32 %v3524, -0.16666654
    %v3526 = vmul.f32 %v3521, %v3525
    %v3527 = vadd.f32 %v3526, 1.0
    %v3528 = vmul.f32 %v3527, %v3512
    %vm3529 = vweird.f32 %v2711
    %v3530 = vand.u32 %v3513, 3
    %vm3531 = vcmp.lt.s32.totalorder %v3530, 2
    %vm3532 = vcmp.eq.s32.totalorder %v3530, 0
    %v3533 = vxor.u32 %v3528, 2147483648
    %v3534 = vsel %vm3532, %v3520, %v3533
    %vm3535 = vcmp.eq.s32.totalorder %v3530, 2
    %v3536 = vxor.u32 %v3520, 2147483648
    %v3537 = vsel %vm3535, %v3536, %v3528
    %v3538 = vsel %vm3531, %v3534, %v3537
    %v3539 = vsel %vm3529, nan, %v3538
    %v3540 = vand.u32 2147483647, %v2712
    %vm3541 = vcmp.le.f32.partialorder %v3540, 0.7853982
    %vm3542 = vcmp.lt.s32.totalorder %v2712, 0
    %v3543 = vand.u32 %v2712, 2139095040
    %v3544 = vshrl.u32 %v3543, 23
    %v3545 = vsub.s32 %v3544, 127
    %v3546 = vand.u32 2147483647, %v2712
    %v3547 = vand.u32 %v3546, 8388607
    %v3548 = vor.u32 %v3547, 8388608
    %v3549 = vsub.s32 0, %v3548
    %v3550 = vadd.s32 %v3545, 1
    %vm3551 = vcmp.gt.s32.totalorder %v3550, 0
    %v3552 = vsel %vm3551, %v3550, 0
    %v3553 = vshrl.u32 %v3552, 5
    %v3554 = vand.u32 %v3552, 31
    %v3555 = vsub.s32 32, %v3554
    %v3556 = vshrl.u32 683565275, %v3555
    %v3557 = vshll.u32 683565275, %v3554
    %v3558 = vshrl.u32 2475754826, %v3555
    %v3559 = vor.u32 %v3557, %v3558
    %v3560 = vshll.u32 2475754826, %v3554
    %v3561 = vshrl.u32 2131351028, %v3555
    %v3562 = vor.u32 %v3560, %v3561
    %v3563 = vshll.u32 2131351028, %v3554
    %v3564 = vshrl.u32 2102212464, %v3555
    %v3565 = vor.u32 %v3563, %v3564
    %v3566 = vshll.u32 2102212464, %v3554
    %v3567 = vshrl.u32 920167782, %v3555
    %v3568 = vor.u32 %v3566, %v3567
    %v3569 = vshll.u32 920167782, %v3554
    %v3570 = vshrl.u32 1326507024, %v3555
    %v3571 = vor.u32 %v3569, %v3570
    %vm3572 = vcmp.lt.s32.totalorder %v3553, 1
    %vm3573 = vcmp.lt.s32.totalorder %v3553, 2
    %vm3574 = vcmp.lt.s32.totalorder %v3553, 3
    %vm3575 = vcmp.lt.s32.totalorder %v3553, 4
    %v3576 = vsel %vm3572, %v3556, %v3559
    %v3577 = vsel %vm3575, %v3565, 2102212464
    %v3578 = vsel %vm3574, %v3562, %v3577
    %v3579 = vsel %vm3573, %v3576, %v3578
    %v3580 = vsel %vm3572, %v3559, %v3562
    %v3581 = vsel %vm3575, %v3568, 920167782
    %v3582 = vsel %vm3574, %v3565, %v3581
    %v3583 = vsel %vm3573, %v3580, %v3582
    %v3584 = vsel %vm3572, %v3562, %v3565
    %v3585 = vsel %vm3575, %v3571, 1326507024
    %v3586 = vsel %vm3574, %v3568, %v3585
    %v3587 = vsel %vm3573, %v3584, %v3586
    %v3588 = vshll.u32 %v3548, 8
    %v3589 = vand.u32 %v3588, 65535
    %v3590 = vshrl.u32 %v3588, 16
    %v3591 = vand.u32 %v3587, 65535
    %v3592 = vshrl.u32 %v3587, 16
    %v3593 = vmul.u32 %v3589, %v3591
    %v3594 = vmul.u32 %v3589, %v3592
    %v3595 = vmul.u32 %v3590, %v3591
    %v3596 = vmul.u32 %v3590, %v3592
    %v3597 = vshll.u32 %v3594, 16
    %v3598 = vshrl.u32 %v3594, 16
    %v3599 = vshll.u32 %v3595, 16
    %v3600 = vshrl.u32 %v3595, 16
    %vm3601 = vc.u32 %v3593, %v3597
    %v3602 = vsel %vm3601, 1, 0
    %v3603 = vadd.s32 %v3593, %v3597
    %v3604 = vadd.s32 %v3596, %v3602
    %vm3605 = vc.u32 %v3603, %v3599
    %v3606 = vsel %vm3605, 1, 0
    %v3607 = vadd.s32 %v3603, %v3599
    %v3608 = vadd.s32 %v3604, %v3606
    %v3609 = vadd.s32 %v3608, %v3598
    %v3610 = vadd.s32 %v3609, %v3600
    %v3611 = vand.u32 %v3588, 65535
    %v3612 = vshrl.u32 %v3588, 16
    %v3613 = vand.u32 %v3583, 65535
    %v3614 = vshrl.u32 %v3583, 16
    %v3615 = vmul.u32 %v3611, %v3613
    %v3616 = vmul.u32 %v3611, %v3614
    %v3617 = vmul.u32 %v3612, %v3613
    %v3618 = vmul.u32 %v3612, %v3614
    %v3619 = vshll.u32 %v3616, 16
    %v3620 = vshrl.u32 %v3616, 16
    %v3621 = vshll.u32 %v3617, 16
    %v3622 = vshrl.u32 %v3617, 16
    %vm3623 = vc.u32 %v3615, %v3619
    %v3624 = vsel %vm3623, 1, 0
    %v3625 = vadd.s32 %v3615, %v3619
    %v3626 = vadd.s32 %v3618, %v3624
    %vm3627 = vc.u32 %v3625, %v3621
    %v3628 = vsel %vm3627, 1, 0
    %v3629 = vadd.s32 %v3625, %v3621
    %v3630 = vadd.s32 %v3626, %v3628
    %v3631 = vadd.s32 %v3630, %v3620
    %v3632 = vadd.s32 %v3631, %v3622
    %v3633 = vmul.u32 %v3588, %v3579
    %v3634 = vadd.s32 %v3610, %v3629
    %vm3635 = vc.u32 %v3610, %v3629
    %v3636 = vadd.s32 %v3632, 1
    %v3637 = vsel %vm3635, %v3636, %v3632
    %v3638 = vadd.s32 %v3633, %v3637
    %v3639 = vadd.s32 %v3638, 536870912
    %v3640 = vshrl.u32 %v3639, 30
    %v3641 = vshll.u32 %v3640, 30
    %v3642 = vsub.s32 %v3638, %v3641
    %vm3643 = vcmp.lt.s32.totalorder %v3642, 0
    %v3644 = vsub.s32 0, %v3642
    %v3645 = vsel %vm3643, %v3644, %v3642
    %v3646 = vclz %v3645
    %v3647 = vsub.s32 %v3646, 2
    %vm3648 = vcmp.gt.s32.totalorder 0, %v3647
    %v3649 = vsel %vm3648, 0, %v3647
    %v3650 = vsub.s32 32, %v3649
    %v3651 = vshll.u32 %v3642, %v3649
    %v3652 = vshrl.u32 %v3634, %v3650
    %v3653 = vor.u32 %v3651, %v3652
    %v3654 = vsub.s32 4294967266, %v3649
    %v3655 = vadd.s32 %v3654, 127
    %v3656 = vshll.u32 %v3655, 23
    %v3657 = vor.u32 4788187, %v3656
    %v3658 = vand.u32 2147483647, %v3657
    %v3660 = vcvt.s32.f32 %v3653
    %v3661 = vmul.f32 %v3660, %v3658
    %v3662 = vxor.u32 %v3661, 2147483648
    %v3663 = vsel %vm3542, %v3662, %v3661
    %v3664 = vsub.s32 4, %v3640
    %v3665 = vsel %vm3542, %v3664, %v3640
    %v3666 = vsel %vm3541, %v2712, %v3663
    %v3667 = vsel %vm3541, 0, %v3665
    %v3668 = vmul.f32 %v3666, %v3666
    %v3669 = vmul.f32 %v3668, -0.001358992
    %v3670 = vadd.f32 %v3669, 0.041655596
    %v3671 = vmul.f32 %v3668, %v3670
    %v3672 = vadd.f32 %v3671, -0.4999988
    %v3673 = vmul.f32 %v3668, %v3672
    %v3674 = vadd.f32 1.0, %v3673
    %v3675 = vmul.f32 %v3666, %v3666
    %v3676 = vmul.f32 %v3675, -0.00019511016
    %v3677 = vadd.f32 %v3676, 0.008332121
    %v3678 = vmul.f32 %v3675, %v3677
    %v3679 = vadd.f32 %v3678, -0.16666654
    %v3680 = vmul.f32 %v3675, %v3679
    %v3681 = vadd.f32 %v3680, 1.0
    %v3682 = vmul.f32 %v3681, %v3666
    %vm3683 = vweird.f32 %v2712
    %v3684 = vand.u32 %v3667, 3
    %vm3685 = vcmp.lt.s32.totalorder %v3684, 2
    %vm3686 = vcmp.eq.s32.totalorder %v3684, 0
    %v3687 = vxor.u32 %v3682, 2147483648
    %v3688 = vsel %vm3686, %v3674, %v3687
    %vm3689 = vcmp.eq.s32.totalorder %v3684, 2
    %v3690 = vxor.u32 %v3674, 2147483648
    %v3691 = vsel %vm3689, %v3690, %v3682
    %v3692 = vsel %vm3685, %v3688, %v3691
    %v3693 = vsel %vm3683, nan, %v3692
    %v3694 = vand.u32 2147483647, %v2713
    %vm3695 = vcmp.le.f32.partialorder %v3694, 0.7853982
    %vm3696 = vcmp.lt.s32.totalorder %v2713, 0
    %v3697 = vand.u32 %v2713, 2139095040
    %v3698 = vshrl.u32 %v3697, 23
    %v3699 = vsub.s32 %v3698, 127
    %v3700 = vand.u32 2147483647, %v2713
    %v3701 = vand.u32 %v3700, 8388607
    %v3702 = vor.u32 %v3701, 8388608
    %v3703 = vsub.s32 0, %v3702
    %v3704 = vadd.s32 %v3699, 1
    %vm3705 = vcmp.gt.s32.totalorder %v3704, 0
    %v3706 = vsel %vm3705, %v3704, 0
    %v3707 = vshrl.u32 %v3706, 5
    %v3708 = vand.u32 %v3706, 31
    %v3709 = vsub.s32 32, %v3708
    %v3710 = vshrl.u32 683565275, %v3709
    %v3711 = vshll.u32 683565275, %v3708
    %v3712 = vshrl.u32 2475754826, %v3709
    %v3713 = vor.u32 %v3711, %v3712
    %v3714 = vshll.u32 2475754826, %v3708
    %v3715 = vshrl.u32 2131351028, %v3709
    %v3716 = vor.u32 %v3714, %v3715
    %v3717 = vshll.u32 2131351028, %v3708
    %v3718 = vshrl.u32 2102212464, %v3709
    %v3719 = vor.u32 %v3717, %v3718
    %v3720 = vshll.u32 2102212464, %v3708
    %v3721 = vshrl.u32 920167782, %v3709
    %v3722 = vor.u32 %v3720, %v3721
    %v3723 = vshll.u32 920167782, %v3708
    %v3724 = vshrl.u32 1326507024, %v3709
    %v3725 = vor.u32 %v3723, %v3724
    %vm3726 = vcmp.lt.s32.totalorder %v3707, 1
    %vm3727 = vcmp.lt.s32.totalorder %v3707, 2
    %vm3728 = vcmp.lt.s32.totalorder %v3707, 3
    %vm3729 = vcmp.lt.s32.totalorder %v3707, 4
    %v3730 = vsel %vm3726, %v3710, %v3713
    %v3731 = vsel %vm3729, %v3719, 2102212464
    %v3732 = vsel %vm3728, %v3716, %v3731
    %v3733 = vsel %vm3727, %v3730, %v3732
    %v3734 = vsel %vm3726, %v3713, %v3716
    %v3735 = vsel %vm3729, %v3722, 920167782
    %v3736 = vsel %vm3728, %v3719, %v3735
    %v3737 = vsel %vm3727, %v3734, %v3736
    %v3738 = vsel %vm3726, %v3716, %v3719
    %v3739 = vsel %vm3729, %v3725, 1326507024
    %v3740 = vsel %vm3728, %v3722, %v3739
    %v3741 = vsel %vm3727, %v3738, %v3740
    %v3742 = vshll.u32 %v3702, 8
    %v3743 = vand.u32 %v3742, 65535
    %v3744 = vshrl.u32 %v3742, 16
    %v3745 = vand.u32 %v3741, 65535
    %v3746 = vshrl.u32 %v3741, 16
    %v3747 = vmul.u32 %v3743, %v3745
    %v3748 = vmul.u32 %v3743, %v3746
    %v3749 = vmul.u32 %v3744, %v3745
    %v3750 = vmul.u32 %v3744, %v3746
    %v3751 = vshll.u32 %v3748, 16
    %v3752 = vshrl.u32 %v3748, 16
    %v3753 = vshll.u32 %v3749, 16
    %v3754 = vshrl.u32 %v3749, 16
    %vm3755 = vc.u32 %v3747, %v3751
    %v3756 = vsel %vm3755, 1, 0
    %v3757 = vadd.s32 %v3747, %v3751
    %v3758 = vadd.s32 %v3750, %v3756
    %vm3759 = vc.u32 %v3757, %v3753
    %v3760 = vsel %vm3759, 1, 0
    %v3761 = vadd.s32 %v3757, %v3753
    %v3762 = vadd.s32 %v3758, %v3760
    %v3763 = vadd.s32 %v3762, %v3752
    %v3764 = vadd.s32 %v3763, %v3754
    %v3765 = vand.u32 %v3742, 65535
    %v3766 = vshrl.u32 %v3742, 16
    %v3767 = vand.u32 %v3737, 65535
    %v3768 = vshrl.u32 %v3737, 16
    %v3769 = vmul.u32 %v3765, %v3767
    %v3770 = vmul.u32 %v3765, %v3768
    %v3771 = vmul.u32 %v3766, %v3767
    %v3772 = vmul.u32 %v3766, %v3768
    %v3773 = vshll.u32 %v3770, 16
    %v3774 = vshrl.u32 %v3770, 16
    %v3775 = vshll.u32 %v3771, 16
    %v3776 = vshrl.u32 %v3771, 16
    %vm3777 = vc.u32 %v3769, %v3773
    %v3778 = vsel %vm3777, 1, 0
    %v3779 = vadd.s32 %v3769, %v3773
    %v3780 = vadd.s32 %v3772, %v3778
    %vm3781 = vc.u32 %v3779, %v3775
    %v3782 = vsel %vm3781, 1, 0
    %v3783 = vadd.s32 %v3779, %v3775
    %v3784 = vadd.s32 %v3780, %v3782
    %v3785 = vadd.s32 %v3784, %v3774
    %v3786 = vadd.s32 %v3785, %v3776
    %v3787 = vmul.u32 %v3742, %v3733
    %v3788 = vadd.s32 %v3764, %v3783
    %vm3789 = vc.u32 %v3764, %v3783
    %v3790 = vadd.s32 %v3786, 1
    %v3791 = vsel %vm3789, %v3790, %v3786
    %v3792 = vadd.s32 %v3787, %v3791
    %v3793 = vadd.s32 %v3792, 536870912
    %v3794 = vshrl.u32 %v3793, 30
    %v3795 = vshll.u32 %v3794, 30
    %v3796 = vsub.s32 %v3792, %v3795
    %vm3797 = vcmp.lt.s32.totalorder %v3796, 0
    %v3798 = vsub.s32 0, %v3796
    %v3799 = vsel %vm3797, %v3798, %v3796
    %v3800 = vclz %v3799
    %v3801 = vsub.s32 %v3800, 2
    %vm3802 = vcmp.gt.s32.totalorder 0, %v3801
    %v3803 = vsel %vm3802, 0, %v3801
    %v3804 = vsub.s32 32, %v3803
    %v3805 = vshll.u32 %v3796, %v3803
    %v3806 = vshrl.u32 %v3788, %v3804
    %v3807 = vor.u32 %v3805, %v3806
    %v3808 = vsub.s32 4294967266, %v3803
    %v3809 = vadd.s32 %v3808, 127
    %v3810 = vshll.u32 %v3809, 23
    %v3811 = vor.u32 4788187, %v3810
    %v3812 = vand.u32 2147483647, %v3811
    %v3814 = vcvt.s32.f32 %v3807
    %v3815 = vmul.f32 %v3814, %v3812
    %v3816 = vxor.u32 %v3815, 2147483648
    %v3817 = vsel %vm3696, %v3816, %v3815
    %v3818 = vsub.s32 4, %v3794
    %v3819 = vsel %vm3696, %v3818, %v3794
    %v3820 = vsel %vm3695, %v2713, %v3817
    %v3821 = vsel %vm3695, 0, %v3819
    %v3822 = vmul.f32 %v3820, %v3820
    %v3823 = vmul.f32 %v3822, -0.001358992
    %v3824 = vadd.f32 %v3823, 0.041655596
    %v3825 = vmul.f32 %v3822, %v3824
    %v3826 = vadd.f32 %v3825, -0.4999988
    %v3827 = vmul.f32 %v3822, %v3826
    %v3828 = vadd.f32 1.0, %v3827
    %v3829 = vmul.f32 %v3820, %v3820
    %v3830 = vmul.f32 %v3829, -0.00019511016
    %v3831 = vadd.f32 %v3830, 0.008332121
    %v3832 = vmul.f32 %v3829, %v3831
    %v3833 = vadd.f32 %v3832, -0.16666654
    %v3834 = vmul.f32 %v3829, %v3833
    %v3835 = vadd.f32 %v3834, 1.0
    %v3836 = vmul.f32 %v3835, %v3820
    %vm3837 = vweird.f32 %v2713
    %v3838 = vand.u32 %v3821, 3
    %vm3839 = vcmp.lt.s32.totalorder %v3838, 2
    %vm3840 = vcmp.eq.s32.totalorder %v3838, 0
    %v3841 = vxor.u32 %v3836, 2147483648
    %v3842 = vsel %vm3840, %v3828, %v3841
    %vm3843 = vcmp.eq.s32.totalorder %v3838, 2
    %v3844 = vxor.u32 %v3828, 2147483648
    %v3845 = vsel %vm3843, %v3844, %v3836
    %v3846 = vsel %vm3839, %v3842, %v3845
    %v3847 = vsel %vm3837, nan, %v3846
    %v3848 = vand.u32 2147483647, %v2714
    %vm3849 = vcmp.le.f32.partialorder %v3848, 0.7853982
    %vm3850 = vcmp.lt.s32.totalorder %v2714, 0
    %v3851 = vand.u32 %v2714, 2139095040
    %v3852 = vshrl.u32 %v3851, 23
    %v3853 = vsub.s32 %v3852, 127
    %v3854 = vand.u32 2147483647, %v2714
    %v3855 = vand.u32 %v3854, 8388607
    %v3856 = vor.u32 %v3855, 8388608
    %v3857 = vsub.s32 0, %v3856
    %v3858 = vadd.s32 %v3853, 1
    %vm3859 = vcmp.gt.s32.totalorder %v3858, 0
    %v3860 = vsel %vm3859, %v3858, 0
    %v3861 = vshrl.u32 %v3860, 5
    %v3862 = vand.u32 %v3860, 31
    %v3863 = vsub.s32 32, %v3862
    %v3864 = vshrl.u32 683565275, %v3863
    %v3865 = vshll.u32 683565275, %v3862
    %v3866 = vshrl.u32 2475754826, %v3863
    %v3867 = vor.u32 %v3865, %v3866
    %v3868 = vshll.u32 2475754826, %v3862
    %v3869 = vshrl.u32 2131351028, %v3863
    %v3870 = vor.u32 %v3868, %v3869
    %v3871 = vshll.u32 2131351028, %v3862
    %v3872 = vshrl.u32 2102212464, %v3863
    %v3873 = vor.u32 %v3871, %v3872
    %v3874 = vshll.u32 2102212464, %v3862
    %v3875 = vshrl.u32 920167782, %v3863
    %v3876 = vor.u32 %v3874, %v3875
    %v3877 = vshll.u32 920167782, %v3862
    %v3878 = vshrl.u32 1326507024, %v3863
    %v3879 = vor.u32 %v3877, %v3878
    %vm3880 = vcmp.lt.s32.totalorder %v3861, 1
    %vm3881 = vcmp.lt.s32.totalorder %v3861, 2
    %vm3882 = vcmp.lt.s32.totalorder %v3861, 3
    %vm3883 = vcmp.lt.s32.totalorder %v3861, 4
    %v3884 = vsel %vm3880, %v3864, %v3867
    %v3885 = vsel %vm3883, %v3873, 2102212464
    %v3886 = vsel %vm3882, %v3870, %v3885
    %v3887 = vsel %vm3881, %v3884, %v3886
    %v3888 = vsel %vm3880, %v3867, %v3870
    %v3889 = vsel %vm3883, %v3876, 920167782
    %v3890 = vsel %vm3882, %v3873, %v3889
    %v3891 = vsel %vm3881, %v3888, %v3890
    %v3892 = vsel %vm3880, %v3870, %v3873
    %v3893 = vsel %vm3883, %v3879, 1326507024
    %v3894 = vsel %vm3882, %v3876, %v3893
    %v3895 = vsel %vm3881, %v3892, %v3894
    %v3896 = vshll.u32 %v3856, 8
    %v3897 = vand.u32 %v3896, 65535
    %v3898 = vshrl.u32 %v3896, 16
    %v3899 = vand.u32 %v3895, 65535
    %v3900 = vshrl.u32 %v3895, 16
    %v3901 = vmul.u32 %v3897, %v3899
    %v3902 = vmul.u32 %v3897, %v3900
    %v3903 = vmul.u32 %v3898, %v3899
    %v3904 = vmul.u32 %v3898, %v3900
    %v3905 = vshll.u32 %v3902, 16
    %v3906 = vshrl.u32 %v3902, 16
    %v3907 = vshll.u32 %v3903, 16
    %v3908 = vshrl.u32 %v3903, 16
    %vm3909 = vc.u32 %v3901, %v3905
    %v3910 = vsel %vm3909, 1, 0
    %v3911 = vadd.s32 %v3901, %v3905
    %v3912 = vadd.s32 %v3904, %v3910
    %vm3913 = vc.u32 %v3911, %v3907
    %v3914 = vsel %vm3913, 1, 0
    %v3915 = vadd.s32 %v3911, %v3907
    %v3916 = vadd.s32 %v3912, %v3914
    %v3917 = vadd.s32 %v3916, %v3906
    %v3918 = vadd.s32 %v3917, %v3908
    %v3919 = vand.u32 %v3896, 65535
    %v3920 = vshrl.u32 %v3896, 16
    %v3921 = vand.u32 %v3891, 65535
    %v3922 = vshrl.u32 %v3891, 16
    %v3923 = vmul.u32 %v3919, %v3921
    %v3924 = vmul.u32 %v3919, %v3922
    %v3925 = vmul.u32 %v3920, %v3921
    %v3926 = vmul.u32 %v3920, %v3922
    %v3927 = vshll.u32 %v3924, 16
    %v3928 = vshrl.u32 %v3924, 16
    %v3929 = vshll.u32 %v3925, 16
    %v3930 = vshrl.u32 %v3925, 16
    %vm3931 = vc.u32 %v3923, %v3927
    %v3932 = vsel %vm3931, 1, 0
    %v3933 = vadd.s32 %v3923, %v3927
    %v3934 = vadd.s32 %v3926, %v3932
    %vm3935 = vc.u32 %v3933, %v3929
    %v3936 = vsel %vm3935, 1, 0
    %v3937 = vadd.s32 %v3933, %v3929
    %v3938 = vadd.s32 %v3934, %v3936
    %v3939 = vadd.s32 %v3938, %v3928
    %v3940 = vadd.s32 %v3939, %v3930
    %v3941 = vmul.u32 %v3896, %v3887
    %v3942 = vadd.s32 %v3918, %v3937
    %vm3943 = vc.u32 %v3918, %v3937
    %v3944 = vadd.s32 %v3940, 1
    %v3945 = vsel %vm3943, %v3944, %v3940
    %v3946 = vadd.s32 %v3941, %v3945
    %v3947 = vadd.s32 %v3946, 536870912
    %v3948 = vshrl.u32 %v3947, 30
    %v3949 = vshll.u32 %v3948, 30
    %v3950 = vsub.s32 %v3946, %v3949
    %vm3951 = vcmp.lt.s32.totalorder %v3950, 0
    %v3952 = vsub.s32 0, %v3950
    %v3953 = vsel %vm3951, %v3952, %v3950
    %v3954 = vclz %v3953
    %v3955 = vsub.s32 %v3954, 2
    %vm3956 = vcmp.gt.s32.totalorder 0, %v3955
    %v3957 = vsel %vm3956, 0, %v3955
    %v3958 = vsub.s32 32, %v3957
    %v3959 = vshll.u32 %v3950, %v3957
    %v3960 = vshrl.u32 %v3942, %v3958
    %v3961 = vor.u32 %v3959, %v3960
    %v3962 = vsub.s32 4294967266, %v3957
    %v3963 = vadd.s32 %v3962, 127
    %v3964 = vshll.u32 %v3963, 23
    %v3965 = vor.u32 4788187, %v3964
    %v3966 = vand.u32 2147483647, %v3965
    %v3968 = vcvt.s32.f32 %v3961
    %v3969 = vmul.f32 %v3968, %v3966
    %v3970 = vxor.u32 %v3969, 2147483648
    %v3971 = vsel %vm3850, %v3970, %v3969
    %v3972 = vsub.s32 4, %v3948
    %v3973 = vsel %vm3850, %v3972, %v3948
    %v3974 = vsel %vm3849, %v2714, %v3971
    %v3975 = vsel %vm3849, 0, %v3973
    %v3976 = vmul.f32 %v3974, %v3974
    %v3977 = vmul.f32 %v3976, -0.001358992
    %v3978 = vadd.f32 %v3977, 0.041655596
    %v3979 = vmul.f32 %v3976, %v3978
    %v3980 = vadd.f32 %v3979, -0.4999988
    %v3981 = vmul.f32 %v3976, %v3980
    %v3982 = vadd.f32 1.0, %v3981
    %v3983 = vmul.f32 %v3974, %v3974
    %v3984 = vmul.f32 %v3983, -0.00019511016
    %v3985 = vadd.f32 %v3984, 0.008332121
    %v3986 = vmul.f32 %v3983, %v3985
    %v3987 = vadd.f32 %v3986, -0.16666654
    %v3988 = vmul.f32 %v3983, %v3987
    %v3989 = vadd.f32 %v3988, 1.0
    %v3990 = vmul.f32 %v3989, %v3974
    %vm3991 = vweird.f32 %v2714
    %v3992 = vand.u32 %v3975, 3
    %vm3993 = vcmp.lt.s32.totalorder %v3992, 2
    %vm3994 = vcmp.eq.s32.totalorder %v3992, 0
    %v3995 = vxor.u32 %v3990, 2147483648
    %v3996 = vsel %vm3994, %v3982, %v3995
    %vm3997 = vcmp.eq.s32.totalorder %v3992, 2
    %v3998 = vxor.u32 %v3982, 2147483648
    %v3999 = vsel %vm3997, %v3998, %v3990
    %v4000 = vsel %vm3993, %v3996, %v3999
    %v4001 = vsel %vm3991, nan, %v4000
    %4006 = vst [vmem:[#allocation1] ss:$2 sm:$0xff] %v3539
    %s4007 = scalar_lea.vmem [#allocation1], 16
    %4008 = vst [vmem:[%s4007] ss:$2 sm:$0xff] %v3693
    %s4009 = scalar_lea.vmem [#allocation1], 32
    %4010 = vst [vmem:[%s4009] ss:$2 sm:$0xff] %v3847
    %s4011 = scalar_lea.vmem [#allocation1], 48
    %4012 = vst [vmem:[%s4011] ss:$2 sm:$0xff] %v4001
    %v4013 = vld.sshfl [vmem:[#allocation1] sm:$0xff pattern:$0x75316420]
    %v4014 = vld.sshfl [vmem:[#allocation1 + $0x8] sm:$0xff pattern:$0x75316420]
    %v4015 = vld.sshfl [vmem:[#allocation1 + $0x10] sm:$0xff pattern:$0x75316420]
    %v4016 = vld.sshfl [vmem:[#allocation1 + $0x18] sm:$0xff pattern:$0x75316420]
    %v4017 = vld.sshfl [vmem:[#allocation1 + $0x20] sm:$0xff pattern:$0x75316420]
    %v4018 = vld.sshfl [vmem:[#allocation1 + $0x28] sm:$0xff pattern:$0x75316420]
    %v4019 = vld.sshfl [vmem:[#allocation1 + $0x30] sm:$0xff pattern:$0x75316420]
    %v4020 = vld.sshfl [vmem:[#allocation1 + $0x38] sm:$0xff pattern:$0x75316420]
    %v4021 = vrot.slane %v4013, 6
    %v4022 = vrot.slane %v4014, 6
    %v4023 = vrot.slane %v4015, 6
    %v4024 = vrot.slane %v4016, 6
    %v4025 = vrot.slane %v4017, 6
    %v4026 = vrot.slane %v4018, 6
    %v4027 = vrot.slane %v4019, 6
    %v4028 = vrot.slane %v4020, 6
    %4037 = vst [vmem:[#allocation5 + $0x80] sm:$0x1c] %v4021
    %4038 = vst [vmem:[#allocation5 + $0x88] sm:$0x1c] %v4022
    %4039 = vst [vmem:[#allocation5 + $0x90] sm:$0x1c] %v4023
    %4040 = vst [vmem:[#allocation5 + $0x98] sm:$0x1c] %v4024
    %4041 = vst [vmem:[#allocation5 + $0xa0] sm:$0x1c] %v4025
    %4042 = vst [vmem:[#allocation5 + $0xa8] sm:$0x1c] %v4026
    %4043 = vst [vmem:[#allocation5 + $0xb0] sm:$0x1c] %v4027
    %4044 = vst [vmem:[#allocation5 + $0xb8] sm:$0x1c] %v4028
    %v4045 = vmul.f32 %v23, 8.0
    %v4046 = vmul.f32 %v24, 8.0
    %v4047 = vmul.f32 %v25, 8.0
    %v4048 = vmul.f32 %v26, 8.0
    %v4049 = vand.u32 2147483647, %v4045
    %vm4050 = vcmp.le.f32.partialorder %v4049, 0.7853982
    %vm4051 = vcmp.lt.s32.totalorder %v4045, 0
    %v4052 = vand.u32 %v4045, 2139095040
    %v4053 = vshrl.u32 %v4052, 23
    %v4054 = vsub.s32 %v4053, 127
    %v4055 = vand.u32 2147483647, %v4045
    %v4056 = vand.u32 %v4055, 8388607
    %v4057 = vor.u32 %v4056, 8388608
    %v4058 = vsub.s32 0, %v4057
    %v4059 = vadd.s32 %v4054, 1
    %vm4060 = vcmp.gt.s32.totalorder %v4059, 0
    %v4061 = vsel %vm4060, %v4059, 0
    %v4062 = vshrl.u32 %v4061, 5
    %v4063 = vand.u32 %v4061, 31
    %v4064 = vsub.s32 32, %v4063
    %v4065 = vshrl.u32 683565275, %v4064
    %v4066 = vshll.u32 683565275, %v4063
    %v4067 = vshrl.u32 2475754826, %v4064
    %v4068 = vor.u32 %v4066, %v4067
    %v4069 = vshll.u32 2475754826, %v4063
    %v4070 = vshrl.u32 2131351028, %v4064
    %v4071 = vor.u32 %v4069, %v4070
    %v4072 = vshll.u32 2131351028, %v4063
    %v4073 = vshrl.u32 2102212464, %v4064
    %v4074 = vor.u32 %v4072, %v4073
    %v4075 = vshll.u32 2102212464, %v4063
    %v4076 = vshrl.u32 920167782, %v4064
    %v4077 = vor.u32 %v4075, %v4076
    %v4078 = vshll.u32 920167782, %v4063
    %v4079 = vshrl.u32 1326507024, %v4064
    %v4080 = vor.u32 %v4078, %v4079
    %vm4081 = vcmp.lt.s32.totalorder %v4062, 1
    %vm4082 = vcmp.lt.s32.totalorder %v4062, 2
    %vm4083 = vcmp.lt.s32.totalorder %v4062, 3
    %vm4084 = vcmp.lt.s32.totalorder %v4062, 4
    %v4085 = vsel %vm4081, %v4065, %v4068
    %v4086 = vsel %vm4084, %v4074, 2102212464
    %v4087 = vsel %vm4083, %v4071, %v4086
    %v4088 = vsel %vm4082, %v4085, %v4087
    %v4089 = vsel %vm4081, %v4068, %v4071
    %v4090 = vsel %vm4084, %v4077, 920167782
    %v4091 = vsel %vm4083, %v4074, %v4090
    %v4092 = vsel %vm4082, %v4089, %v4091
    %v4093 = vsel %vm4081, %v4071, %v4074
    %v4094 = vsel %vm4084, %v4080, 1326507024
    %v4095 = vsel %vm4083, %v4077, %v4094
    %v4096 = vsel %vm4082, %v4093, %v4095
    %v4097 = vshll.u32 %v4057, 8
    %v4098 = vand.u32 %v4097, 65535
    %v4099 = vshrl.u32 %v4097, 16
    %v4100 = vand.u32 %v4096, 65535
    %v4101 = vshrl.u32 %v4096, 16
    %v4102 = vmul.u32 %v4098, %v4100
    %v4103 = vmul.u32 %v4098, %v4101
    %v4104 = vmul.u32 %v4099, %v4100
    %v4105 = vmul.u32 %v4099, %v4101
    %v4106 = vshll.u32 %v4103, 16
    %v4107 = vshrl.u32 %v4103, 16
    %v4108 = vshll.u32 %v4104, 16
    %v4109 = vshrl.u32 %v4104, 16
    %vm4110 = vc.u32 %v4102, %v4106
    %v4111 = vsel %vm4110, 1, 0
    %v4112 = vadd.s32 %v4102, %v4106
    %v4113 = vadd.s32 %v4105, %v4111
    %vm4114 = vc.u32 %v4112, %v4108
    %v4115 = vsel %vm4114, 1, 0
    %v4116 = vadd.s32 %v4112, %v4108
    %v4117 = vadd.s32 %v4113, %v4115
    %v4118 = vadd.s32 %v4117, %v4107
    %v4119 = vadd.s32 %v4118, %v4109
    %v4120 = vand.u32 %v4097, 65535
    %v4121 = vshrl.u32 %v4097, 16
    %v4122 = vand.u32 %v4092, 65535
    %v4123 = vshrl.u32 %v4092, 16
    %v4124 = vmul.u32 %v4120, %v4122
    %v4125 = vmul.u32 %v4120, %v4123
    %v4126 = vmul.u32 %v4121, %v4122
    %v4127 = vmul.u32 %v4121, %v4123
    %v4128 = vshll.u32 %v4125, 16
    %v4129 = vshrl.u32 %v4125, 16
    %v4130 = vshll.u32 %v4126, 16
    %v4131 = vshrl.u32 %v4126, 16
    %vm4132 = vc.u32 %v4124, %v4128
    %v4133 = vsel %vm4132, 1, 0
    %v4134 = vadd.s32 %v4124, %v4128
    %v4135 = vadd.s32 %v4127, %v4133
    %vm4136 = vc.u32 %v4134, %v4130
    %v4137 = vsel %vm4136, 1, 0
    %v4138 = vadd.s32 %v4134, %v4130
    %v4139 = vadd.s32 %v4135, %v4137
    %v4140 = vadd.s32 %v4139, %v4129
    %v4141 = vadd.s32 %v4140, %v4131
    %v4142 = vmul.u32 %v4097, %v4088
    %v4143 = vadd.s32 %v4119, %v4138
    %vm4144 = vc.u32 %v4119, %v4138
    %v4145 = vadd.s32 %v4141, 1
    %v4146 = vsel %vm4144, %v4145, %v4141
    %v4147 = vadd.s32 %v4142, %v4146
    %v4148 = vadd.s32 %v4147, 536870912
    %v4149 = vshrl.u32 %v4148, 30
    %v4150 = vshll.u32 %v4149, 30
    %v4151 = vsub.s32 %v4147, %v4150
    %vm4152 = vcmp.lt.s32.totalorder %v4151, 0
    %v4153 = vsub.s32 0, %v4151
    %v4154 = vsel %vm4152, %v4153, %v4151
    %v4155 = vclz %v4154
    %v4156 = vsub.s32 %v4155, 2
    %vm4157 = vcmp.gt.s32.totalorder 0, %v4156
    %v4158 = vsel %vm4157, 0, %v4156
    %v4159 = vsub.s32 32, %v4158
    %v4160 = vshll.u32 %v4151, %v4158
    %v4161 = vshrl.u32 %v4143, %v4159
    %v4162 = vor.u32 %v4160, %v4161
    %v4163 = vsub.s32 4294967266, %v4158
    %v4164 = vadd.s32 %v4163, 127
    %v4165 = vshll.u32 %v4164, 23
    %v4166 = vor.u32 4788187, %v4165
    %v4167 = vand.u32 2147483647, %v4166
    %v4169 = vcvt.s32.f32 %v4162
    %v4170 = vmul.f32 %v4169, %v4167
    %v4171 = vxor.u32 %v4170, 2147483648
    %v4172 = vsel %vm4051, %v4171, %v4170
    %v4173 = vsub.s32 4, %v4149
    %v4174 = vsel %vm4051, %v4173, %v4149
    %v4175 = vsel %vm4050, %v4045, %v4172
    %v4176 = vsel %vm4050, 0, %v4174
    %v4177 = vmul.f32 %v4175, %v4175
    %v4178 = vmul.f32 %v4177, -0.001358992
    %v4179 = vadd.f32 %v4178, 0.041655596
    %v4180 = vmul.f32 %v4177, %v4179
    %v4181 = vadd.f32 %v4180, -0.4999988
    %v4182 = vmul.f32 %v4177, %v4181
    %v4183 = vadd.f32 1.0, %v4182
    %v4184 = vmul.f32 %v4175, %v4175
    %v4185 = vmul.f32 %v4184, -0.00019511016
    %v4186 = vadd.f32 %v4185, 0.008332121
    %v4187 = vmul.f32 %v4184, %v4186
    %v4188 = vadd.f32 %v4187, -0.16666654
    %v4189 = vmul.f32 %v4184, %v4188
    %v4190 = vadd.f32 %v4189, 1.0
    %v4191 = vmul.f32 %v4190, %v4175
    %vm4192 = vweird.f32 %v4045
    %v4193 = vadd.s32 %v4176, 3
    %v4194 = vand.u32 %v4193, 3
    %vm4195 = vcmp.lt.s32.totalorder %v4194, 2
    %vm4196 = vcmp.eq.s32.totalorder %v4194, 0
    %v4197 = vxor.u32 %v4191, 2147483648
    %v4198 = vsel %vm4196, %v4183, %v4197
    %vm4199 = vcmp.eq.s32.totalorder %v4194, 2
    %v4200 = vxor.u32 %v4183, 2147483648
    %v4201 = vsel %vm4199, %v4200, %v4191
    %v4202 = vsel %vm4195, %v4198, %v4201
    %v4203 = vsel %vm4192, nan, %v4202
    %v4204 = vand.u32 2147483647, %v4046
    %vm4205 = vcmp.le.f32.partialorder %v4204, 0.7853982
    %vm4206 = vcmp.lt.s32.totalorder %v4046, 0
    %v4207 = vand.u32 %v4046, 2139095040
    %v4208 = vshrl.u32 %v4207, 23
    %v4209 = vsub.s32 %v4208, 127
    %v4210 = vand.u32 2147483647, %v4046
    %v4211 = vand.u32 %v4210, 8388607
    %v4212 = vor.u32 %v4211, 8388608
    %v4213 = vsub.s32 0, %v4212
    %v4214 = vadd.s32 %v4209, 1
    %vm4215 = vcmp.gt.s32.totalorder %v4214, 0
    %v4216 = vsel %vm4215, %v4214, 0
    %v4217 = vshrl.u32 %v4216, 5
    %v4218 = vand.u32 %v4216, 31
    %v4219 = vsub.s32 32, %v4218
    %v4220 = vshrl.u32 683565275, %v4219
    %v4221 = vshll.u32 683565275, %v4218
    %v4222 = vshrl.u32 2475754826, %v4219
    %v4223 = vor.u32 %v4221, %v4222
    %v4224 = vshll.u32 2475754826, %v4218
    %v4225 = vshrl.u32 2131351028, %v4219
    %v4226 = vor.u32 %v4224, %v4225
    %v4227 = vshll.u32 2131351028, %v4218
    %v4228 = vshrl.u32 2102212464, %v4219
    %v4229 = vor.u32 %v4227, %v4228
    %v4230 = vshll.u32 2102212464, %v4218
    %v4231 = vshrl.u32 920167782, %v4219
    %v4232 = vor.u32 %v4230, %v4231
    %v4233 = vshll.u32 920167782, %v4218
    %v4234 = vshrl.u32 1326507024, %v4219
    %v4235 = vor.u32 %v4233, %v4234
    %vm4236 = vcmp.lt.s32.totalorder %v4217, 1
    %vm4237 = vcmp.lt.s32.totalorder %v4217, 2
    %vm4238 = vcmp.lt.s32.totalorder %v4217, 3
    %vm4239 = vcmp.lt.s32.totalorder %v4217, 4
    %v4240 = vsel %vm4236, %v4220, %v4223
    %v4241 = vsel %vm4239, %v4229, 2102212464
    %v4242 = vsel %vm4238, %v4226, %v4241
    %v4243 = vsel %vm4237, %v4240, %v4242
    %v4244 = vsel %vm4236, %v4223, %v4226
    %v4245 = vsel %vm4239, %v4232, 920167782
    %v4246 = vsel %vm4238, %v4229, %v4245
    %v4247 = vsel %vm4237, %v4244, %v4246
    %v4248 = vsel %vm4236, %v4226, %v4229
    %v4249 = vsel %vm4239, %v4235, 1326507024
    %v4250 = vsel %vm4238, %v4232, %v4249
    %v4251 = vsel %vm4237, %v4248, %v4250
    %v4252 = vshll.u32 %v4212, 8
    %v4253 = vand.u32 %v4252, 65535
    %v4254 = vshrl.u32 %v4252, 16
    %v4255 = vand.u32 %v4251, 65535
    %v4256 = vshrl.u32 %v4251, 16
    %v4257 = vmul.u32 %v4253, %v4255
    %v4258 = vmul.u32 %v4253, %v4256
    %v4259 = vmul.u32 %v4254, %v4255
    %v4260 = vmul.u32 %v4254, %v4256
    %v4261 = vshll.u32 %v4258, 16
    %v4262 = vshrl.u32 %v4258, 16
    %v4263 = vshll.u32 %v4259, 16
    %v4264 = vshrl.u32 %v4259, 16
    %vm4265 = vc.u32 %v4257, %v4261
    %v4266 = vsel %vm4265, 1, 0
    %v4267 = vadd.s32 %v4257, %v4261
    %v4268 = vadd.s32 %v4260, %v4266
    %vm4269 = vc.u32 %v4267, %v4263
    %v4270 = vsel %vm4269, 1, 0
    %v4271 = vadd.s32 %v4267, %v4263
    %v4272 = vadd.s32 %v4268, %v4270
    %v4273 = vadd.s32 %v4272, %v4262
    %v4274 = vadd.s32 %v4273, %v4264
    %v4275 = vand.u32 %v4252, 65535
    %v4276 = vshrl.u32 %v4252, 16
    %v4277 = vand.u32 %v4247, 65535
    %v4278 = vshrl.u32 %v4247, 16
    %v4279 = vmul.u32 %v4275, %v4277
    %v4280 = vmul.u32 %v4275, %v4278
    %v4281 = vmul.u32 %v4276, %v4277
    %v4282 = vmul.u32 %v4276, %v4278
    %v4283 = vshll.u32 %v4280, 16
    %v4284 = vshrl.u32 %v4280, 16
    %v4285 = vshll.u32 %v4281, 16
    %v4286 = vshrl.u32 %v4281, 16
    %vm4287 = vc.u32 %v4279, %v4283
    %v4288 = vsel %vm4287, 1, 0
    %v4289 = vadd.s32 %v4279, %v4283
    %v4290 = vadd.s32 %v4282, %v4288
    %vm4291 = vc.u32 %v4289, %v4285
    %v4292 = vsel %vm4291, 1, 0
    %v4293 = vadd.s32 %v4289, %v4285
    %v4294 = vadd.s32 %v4290, %v4292
    %v4295 = vadd.s32 %v4294, %v4284
    %v4296 = vadd.s32 %v4295, %v4286
    %v4297 = vmul.u32 %v4252, %v4243
    %v4298 = vadd.s32 %v4274, %v4293
    %vm4299 = vc.u32 %v4274, %v4293
    %v4300 = vadd.s32 %v4296, 1
    %v4301 = vsel %vm4299, %v4300, %v4296
    %v4302 = vadd.s32 %v4297, %v4301
    %v4303 = vadd.s32 %v4302, 536870912
    %v4304 = vshrl.u32 %v4303, 30
    %v4305 = vshll.u32 %v4304, 30
    %v4306 = vsub.s32 %v4302, %v4305
    %vm4307 = vcmp.lt.s32.totalorder %v4306, 0
    %v4308 = vsub.s32 0, %v4306
    %v4309 = vsel %vm4307, %v4308, %v4306
    %v4310 = vclz %v4309
    %v4311 = vsub.s32 %v4310, 2
    %vm4312 = vcmp.gt.s32.totalorder 0, %v4311
    %v4313 = vsel %vm4312, 0, %v4311
    %v4314 = vsub.s32 32, %v4313
    %v4315 = vshll.u32 %v4306, %v4313
    %v4316 = vshrl.u32 %v4298, %v4314
    %v4317 = vor.u32 %v4315, %v4316
    %v4318 = vsub.s32 4294967266, %v4313
    %v4319 = vadd.s32 %v4318, 127
    %v4320 = vshll.u32 %v4319, 23
    %v4321 = vor.u32 4788187, %v4320
    %v4322 = vand.u32 2147483647, %v4321
    %v4324 = vcvt.s32.f32 %v4317
    %v4325 = vmul.f32 %v4324, %v4322
    %v4326 = vxor.u32 %v4325, 2147483648
    %v4327 = vsel %vm4206, %v4326, %v4325
    %v4328 = vsub.s32 4, %v4304
    %v4329 = vsel %vm4206, %v4328, %v4304
    %v4330 = vsel %vm4205, %v4046, %v4327
    %v4331 = vsel %vm4205, 0, %v4329
    %v4332 = vmul.f32 %v4330, %v4330
    %v4333 = vmul.f32 %v4332, -0.001358992
    %v4334 = vadd.f32 %v4333, 0.041655596
    %v4335 = vmul.f32 %v4332, %v4334
    %v4336 = vadd.f32 %v4335, -0.4999988
    %v4337 = vmul.f32 %v4332, %v4336
    %v4338 = vadd.f32 1.0, %v4337
    %v4339 = vmul.f32 %v4330, %v4330
    %v4340 = vmul.f32 %v4339, -0.00019511016
    %v4341 = vadd.f32 %v4340, 0.008332121
    %v4342 = vmul.f32 %v4339, %v4341
    %v4343 = vadd.f32 %v4342, -0.16666654
    %v4344 = vmul.f32 %v4339, %v4343
    %v4345 = vadd.f32 %v4344, 1.0
    %v4346 = vmul.f32 %v4345, %v4330
    %vm4347 = vweird.f32 %v4046
    %v4348 = vadd.s32 %v4331, 3
    %v4349 = vand.u32 %v4348, 3
    %vm4350 = vcmp.lt.s32.totalorder %v4349, 2
    %vm4351 = vcmp.eq.s32.totalorder %v4349, 0
    %v4352 = vxor.u32 %v4346, 2147483648
    %v4353 = vsel %vm4351, %v4338, %v4352
    %vm4354 = vcmp.eq.s32.totalorder %v4349, 2
    %v4355 = vxor.u32 %v4338, 2147483648
    %v4356 = vsel %vm4354, %v4355, %v4346
    %v4357 = vsel %vm4350, %v4353, %v4356
    %v4358 = vsel %vm4347, nan, %v4357
    %v4359 = vand.u32 2147483647, %v4047
    %vm4360 = vcmp.le.f32.partialorder %v4359, 0.7853982
    %vm4361 = vcmp.lt.s32.totalorder %v4047, 0
    %v4362 = vand.u32 %v4047, 2139095040
    %v4363 = vshrl.u32 %v4362, 23
    %v4364 = vsub.s32 %v4363, 127
    %v4365 = vand.u32 2147483647, %v4047
    %v4366 = vand.u32 %v4365, 8388607
    %v4367 = vor.u32 %v4366, 8388608
    %v4368 = vsub.s32 0, %v4367
    %v4369 = vadd.s32 %v4364, 1
    %vm4370 = vcmp.gt.s32.totalorder %v4369, 0
    %v4371 = vsel %vm4370, %v4369, 0
    %v4372 = vshrl.u32 %v4371, 5
    %v4373 = vand.u32 %v4371, 31
    %v4374 = vsub.s32 32, %v4373
    %v4375 = vshrl.u32 683565275, %v4374
    %v4376 = vshll.u32 683565275, %v4373
    %v4377 = vshrl.u32 2475754826, %v4374
    %v4378 = vor.u32 %v4376, %v4377
    %v4379 = vshll.u32 2475754826, %v4373
    %v4380 = vshrl.u32 2131351028, %v4374
    %v4381 = vor.u32 %v4379, %v4380
    %v4382 = vshll.u32 2131351028, %v4373
    %v4383 = vshrl.u32 2102212464, %v4374
    %v4384 = vor.u32 %v4382, %v4383
    %v4385 = vshll.u32 2102212464, %v4373
    %v4386 = vshrl.u32 920167782, %v4374
    %v4387 = vor.u32 %v4385, %v4386
    %v4388 = vshll.u32 920167782, %v4373
    %v4389 = vshrl.u32 1326507024, %v4374
    %v4390 = vor.u32 %v4388, %v4389
    %vm4391 = vcmp.lt.s32.totalorder %v4372, 1
    %vm4392 = vcmp.lt.s32.totalorder %v4372, 2
    %vm4393 = vcmp.lt.s32.totalorder %v4372, 3
    %vm4394 = vcmp.lt.s32.totalorder %v4372, 4
    %v4395 = vsel %vm4391, %v4375, %v4378
    %v4396 = vsel %vm4394, %v4384, 2102212464
    %v4397 = vsel %vm4393, %v4381, %v4396
    %v4398 = vsel %vm4392, %v4395, %v4397
    %v4399 = vsel %vm4391, %v4378, %v4381
    %v4400 = vsel %vm4394, %v4387, 920167782
    %v4401 = vsel %vm4393, %v4384, %v4400
    %v4402 = vsel %vm4392, %v4399, %v4401
    %v4403 = vsel %vm4391, %v4381, %v4384
    %v4404 = vsel %vm4394, %v4390, 1326507024
    %v4405 = vsel %vm4393, %v4387, %v4404
    %v4406 = vsel %vm4392, %v4403, %v4405
    %v4407 = vshll.u32 %v4367, 8
    %v4408 = vand.u32 %v4407, 65535
    %v4409 = vshrl.u32 %v4407, 16
    %v4410 = vand.u32 %v4406, 65535
    %v4411 = vshrl.u32 %v4406, 16
    %v4412 = vmul.u32 %v4408, %v4410
    %v4413 = vmul.u32 %v4408, %v4411
    %v4414 = vmul.u32 %v4409, %v4410
    %v4415 = vmul.u32 %v4409, %v4411
    %v4416 = vshll.u32 %v4413, 16
    %v4417 = vshrl.u32 %v4413, 16
    %v4418 = vshll.u32 %v4414, 16
    %v4419 = vshrl.u32 %v4414, 16
    %vm4420 = vc.u32 %v4412, %v4416
    %v4421 = vsel %vm4420, 1, 0
    %v4422 = vadd.s32 %v4412, %v4416
    %v4423 = vadd.s32 %v4415, %v4421
    %vm4424 = vc.u32 %v4422, %v4418
    %v4425 = vsel %vm4424, 1, 0
    %v4426 = vadd.s32 %v4422, %v4418
    %v4427 = vadd.s32 %v4423, %v4425
    %v4428 = vadd.s32 %v4427, %v4417
    %v4429 = vadd.s32 %v4428, %v4419
    %v4430 = vand.u32 %v4407, 65535
    %v4431 = vshrl.u32 %v4407, 16
    %v4432 = vand.u32 %v4402, 65535
    %v4433 = vshrl.u32 %v4402, 16
    %v4434 = vmul.u32 %v4430, %v4432
    %v4435 = vmul.u32 %v4430, %v4433
    %v4436 = vmul.u32 %v4431, %v4432
    %v4437 = vmul.u32 %v4431, %v4433
    %v4438 = vshll.u32 %v4435, 16
    %v4439 = vshrl.u32 %v4435, 16
    %v4440 = vshll.u32 %v4436, 16
    %v4441 = vshrl.u32 %v4436, 16
    %vm4442 = vc.u32 %v4434, %v4438
    %v4443 = vsel %vm4442, 1, 0
    %v4444 = vadd.s32 %v4434, %v4438
    %v4445 = vadd.s32 %v4437, %v4443
    %vm4446 = vc.u32 %v4444, %v4440
    %v4447 = vsel %vm4446, 1, 0
    %v4448 = vadd.s32 %v4444, %v4440
    %v4449 = vadd.s32 %v4445, %v4447
    %v4450 = vadd.s32 %v4449, %v4439
    %v4451 = vadd.s32 %v4450, %v4441
    %v4452 = vmul.u32 %v4407, %v4398
    %v4453 = vadd.s32 %v4429, %v4448
    %vm4454 = vc.u32 %v4429, %v4448
    %v4455 = vadd.s32 %v4451, 1
    %v4456 = vsel %vm4454, %v4455, %v4451
    %v4457 = vadd.s32 %v4452, %v4456
    %v4458 = vadd.s32 %v4457, 536870912
    %v4459 = vshrl.u32 %v4458, 30
    %v4460 = vshll.u32 %v4459, 30
    %v4461 = vsub.s32 %v4457, %v4460
    %vm4462 = vcmp.lt.s32.totalorder %v4461, 0
    %v4463 = vsub.s32 0, %v4461
    %v4464 = vsel %vm4462, %v4463, %v4461
    %v4465 = vclz %v4464
    %v4466 = vsub.s32 %v4465, 2
    %vm4467 = vcmp.gt.s32.totalorder 0, %v4466
    %v4468 = vsel %vm4467, 0, %v4466
    %v4469 = vsub.s32 32, %v4468
    %v4470 = vshll.u32 %v4461, %v4468
    %v4471 = vshrl.u32 %v4453, %v4469
    %v4472 = vor.u32 %v4470, %v4471
    %v4473 = vsub.s32 4294967266, %v4468
    %v4474 = vadd.s32 %v4473, 127
    %v4475 = vshll.u32 %v4474, 23
    %v4476 = vor.u32 4788187, %v4475
    %v4477 = vand.u32 2147483647, %v4476
    %v4479 = vcvt.s32.f32 %v4472
    %v4480 = vmul.f32 %v4479, %v4477
    %v4481 = vxor.u32 %v4480, 2147483648
    %v4482 = vsel %vm4361, %v4481, %v4480
    %v4483 = vsub.s32 4, %v4459
    %v4484 = vsel %vm4361, %v4483, %v4459
    %v4485 = vsel %vm4360, %v4047, %v4482
    %v4486 = vsel %vm4360, 0, %v4484
    %v4487 = vmul.f32 %v4485, %v4485
    %v4488 = vmul.f32 %v4487, -0.001358992
    %v4489 = vadd.f32 %v4488, 0.041655596
    %v4490 = vmul.f32 %v4487, %v4489
    %v4491 = vadd.f32 %v4490, -0.4999988
    %v4492 = vmul.f32 %v4487, %v4491
    %v4493 = vadd.f32 1.0, %v4492
    %v4494 = vmul.f32 %v4485, %v4485
    %v4495 = vmul.f32 %v4494, -0.00019511016
    %v4496 = vadd.f32 %v4495, 0.008332121
    %v4497 = vmul.f32 %v4494, %v4496
    %v4498 = vadd.f32 %v4497, -0.16666654
    %v4499 = vmul.f32 %v4494, %v4498
    %v4500 = vadd.f32 %v4499, 1.0
    %v4501 = vmul.f32 %v4500, %v4485
    %vm4502 = vweird.f32 %v4047
    %v4503 = vadd.s32 %v4486, 3
    %v4504 = vand.u32 %v4503, 3
    %vm4505 = vcmp.lt.s32.totalorder %v4504, 2
    %vm4506 = vcmp.eq.s32.totalorder %v4504, 0
    %v4507 = vxor.u32 %v4501, 2147483648
    %v4508 = vsel %vm4506, %v4493, %v4507
    %vm4509 = vcmp.eq.s32.totalorder %v4504, 2
    %v4510 = vxor.u32 %v4493, 2147483648
    %v4511 = vsel %vm4509, %v4510, %v4501
    %v4512 = vsel %vm4505, %v4508, %v4511
    %v4513 = vsel %vm4502, nan, %v4512
    %v4514 = vand.u32 2147483647, %v4048
    %vm4515 = vcmp.le.f32.partialorder %v4514, 0.7853982
    %vm4516 = vcmp.lt.s32.totalorder %v4048, 0
    %v4517 = vand.u32 %v4048, 2139095040
    %v4518 = vshrl.u32 %v4517, 23
    %v4519 = vsub.s32 %v4518, 127
    %v4520 = vand.u32 2147483647, %v4048
    %v4521 = vand.u32 %v4520, 8388607
    %v4522 = vor.u32 %v4521, 8388608
    %v4523 = vsub.s32 0, %v4522
    %v4524 = vadd.s32 %v4519, 1
    %vm4525 = vcmp.gt.s32.totalorder %v4524, 0
    %v4526 = vsel %vm4525, %v4524, 0
    %v4527 = vshrl.u32 %v4526, 5
    %v4528 = vand.u32 %v4526, 31
    %v4529 = vsub.s32 32, %v4528
    %v4530 = vshrl.u32 683565275, %v4529
    %v4531 = vshll.u32 683565275, %v4528
    %v4532 = vshrl.u32 2475754826, %v4529
    %v4533 = vor.u32 %v4531, %v4532
    %v4534 = vshll.u32 2475754826, %v4528
    %v4535 = vshrl.u32 2131351028, %v4529
    %v4536 = vor.u32 %v4534, %v4535
    %v4537 = vshll.u32 2131351028, %v4528
    %v4538 = vshrl.u32 2102212464, %v4529
    %v4539 = vor.u32 %v4537, %v4538
    %v4540 = vshll.u32 2102212464, %v4528
    %v4541 = vshrl.u32 920167782, %v4529
    %v4542 = vor.u32 %v4540, %v4541
    %v4543 = vshll.u32 920167782, %v4528
    %v4544 = vshrl.u32 1326507024, %v4529
    %v4545 = vor.u32 %v4543, %v4544
    %vm4546 = vcmp.lt.s32.totalorder %v4527, 1
    %vm4547 = vcmp.lt.s32.totalorder %v4527, 2
    %vm4548 = vcmp.lt.s32.totalorder %v4527, 3
    %vm4549 = vcmp.lt.s32.totalorder %v4527, 4
    %v4550 = vsel %vm4546, %v4530, %v4533
    %v4551 = vsel %vm4549, %v4539, 2102212464
    %v4552 = vsel %vm4548, %v4536, %v4551
    %v4553 = vsel %vm4547, %v4550, %v4552
    %v4554 = vsel %vm4546, %v4533, %v4536
    %v4555 = vsel %vm4549, %v4542, 920167782
    %v4556 = vsel %vm4548, %v4539, %v4555
    %v4557 = vsel %vm4547, %v4554, %v4556
    %v4558 = vsel %vm4546, %v4536, %v4539
    %v4559 = vsel %vm4549, %v4545, 1326507024
    %v4560 = vsel %vm4548, %v4542, %v4559
    %v4561 = vsel %vm4547, %v4558, %v4560
    %v4562 = vshll.u32 %v4522, 8
    %v4563 = vand.u32 %v4562, 65535
    %v4564 = vshrl.u32 %v4562, 16
    %v4565 = vand.u32 %v4561, 65535
    %v4566 = vshrl.u32 %v4561, 16
    %v4567 = vmul.u32 %v4563, %v4565
    %v4568 = vmul.u32 %v4563, %v4566
    %v4569 = vmul.u32 %v4564, %v4565
    %v4570 = vmul.u32 %v4564, %v4566
    %v4571 = vshll.u32 %v4568, 16
    %v4572 = vshrl.u32 %v4568, 16
    %v4573 = vshll.u32 %v4569, 16
    %v4574 = vshrl.u32 %v4569, 16
    %vm4575 = vc.u32 %v4567, %v4571
    %v4576 = vsel %vm4575, 1, 0
    %v4577 = vadd.s32 %v4567, %v4571
    %v4578 = vadd.s32 %v4570, %v4576
    %vm4579 = vc.u32 %v4577, %v4573
    %v4580 = vsel %vm4579, 1, 0
    %v4581 = vadd.s32 %v4577, %v4573
    %v4582 = vadd.s32 %v4578, %v4580
    %v4583 = vadd.s32 %v4582, %v4572
    %v4584 = vadd.s32 %v4583, %v4574
    %v4585 = vand.u32 %v4562, 65535
    %v4586 = vshrl.u32 %v4562, 16
    %v4587 = vand.u32 %v4557, 65535
    %v4588 = vshrl.u32 %v4557, 16
    %v4589 = vmul.u32 %v4585, %v4587
    %v4590 = vmul.u32 %v4585, %v4588
    %v4591 = vmul.u32 %v4586, %v4587
    %v4592 = vmul.u32 %v4586, %v4588
    %v4593 = vshll.u32 %v4590, 16
    %v4594 = vshrl.u32 %v4590, 16
    %v4595 = vshll.u32 %v4591, 16
    %v4596 = vshrl.u32 %v4591, 16
    %vm4597 = vc.u32 %v4589, %v4593
    %v4598 = vsel %vm4597, 1, 0
    %v4599 = vadd.s32 %v4589, %v4593
    %v4600 = vadd.s32 %v4592, %v4598
    %vm4601 = vc.u32 %v4599, %v4595
    %v4602 = vsel %vm4601, 1, 0
    %v4603 = vadd.s32 %v4599, %v4595
    %v4604 = vadd.s32 %v4600, %v4602
    %v4605 = vadd.s32 %v4604, %v4594
    %v4606 = vadd.s32 %v4605, %v4596
    %v4607 = vmul.u32 %v4562, %v4553
    %v4608 = vadd.s32 %v4584, %v4603
    %vm4609 = vc.u32 %v4584, %v4603
    %v4610 = vadd.s32 %v4606, 1
    %v4611 = vsel %vm4609, %v4610, %v4606
    %v4612 = vadd.s32 %v4607, %v4611
    %v4613 = vadd.s32 %v4612, 536870912
    %v4614 = vshrl.u32 %v4613, 30
    %v4615 = vshll.u32 %v4614, 30
    %v4616 = vsub.s32 %v4612, %v4615
    %vm4617 = vcmp.lt.s32.totalorder %v4616, 0
    %v4618 = vsub.s32 0, %v4616
    %v4619 = vsel %vm4617, %v4618, %v4616
    %v4620 = vclz %v4619
    %v4621 = vsub.s32 %v4620, 2
    %vm4622 = vcmp.gt.s32.totalorder 0, %v4621
    %v4623 = vsel %vm4622, 0, %v4621
    %v4624 = vsub.s32 32, %v4623
    %v4625 = vshll.u32 %v4616, %v4623
    %v4626 = vshrl.u32 %v4608, %v4624
    %v4627 = vor.u32 %v4625, %v4626
    %v4628 = vsub.s32 4294967266, %v4623
    %v4629 = vadd.s32 %v4628, 127
    %v4630 = vshll.u32 %v4629, 23
    %v4631 = vor.u32 4788187, %v4630
    %v4632 = vand.u32 2147483647, %v4631
    %v4634 = vcvt.s32.f32 %v4627
    %v4635 = vmul.f32 %v4634, %v4632
    %v4636 = vxor.u32 %v4635, 2147483648
    %v4637 = vsel %vm4516, %v4636, %v4635
    %v4638 = vsub.s32 4, %v4614
    %v4639 = vsel %vm4516, %v4638, %v4614
    %v4640 = vsel %vm4515, %v4048, %v4637
    %v4641 = vsel %vm4515, 0, %v4639
    %v4642 = vmul.f32 %v4640, %v4640
    %v4643 = vmul.f32 %v4642, -0.001358992
    %v4644 = vadd.f32 %v4643, 0.041655596
    %v4645 = vmul.f32 %v4642, %v4644
    %v4646 = vadd.f32 %v4645, -0.4999988
    %v4647 = vmul.f32 %v4642, %v4646
    %v4648 = vadd.f32 1.0, %v4647
    %v4649 = vmul.f32 %v4640, %v4640
    %v4650 = vmul.f32 %v4649, -0.00019511016
    %v4651 = vadd.f32 %v4650, 0.008332121
    %v4652 = vmul.f32 %v4649, %v4651
    %v4653 = vadd.f32 %v4652, -0.16666654
    %v4654 = vmul.f32 %v4649, %v4653
    %v4655 = vadd.f32 %v4654, 1.0
    %v4656 = vmul.f32 %v4655, %v4640
    %vm4657 = vweird.f32 %v4048
    %v4658 = vadd.s32 %v4641, 3
    %v4659 = vand.u32 %v4658, 3
    %vm4660 = vcmp.lt.s32.totalorder %v4659, 2
    %vm4661 = vcmp.eq.s32.totalorder %v4659, 0
    %v4662 = vxor.u32 %v4656, 2147483648
    %v4663 = vsel %vm4661, %v4648, %v4662
    %vm4664 = vcmp.eq.s32.totalorder %v4659, 2
    %v4665 = vxor.u32 %v4648, 2147483648
    %v4666 = vsel %vm4664, %v4665, %v4656
    %v4667 = vsel %vm4660, %v4663, %v4666
    %v4668 = vsel %vm4657, nan, %v4667
    %4673 = vst [vmem:[#allocation1] ss:$2 sm:$0xff] %v4203
    %s4674 = scalar_lea.vmem [#allocation1], 16
    %4675 = vst [vmem:[%s4674] ss:$2 sm:$0xff] %v4358
    %s4676 = scalar_lea.vmem [#allocation1], 32
    %4677 = vst [vmem:[%s4676] ss:$2 sm:$0xff] %v4513
    %s4678 = scalar_lea.vmem [#allocation1], 48
    %4679 = vst [vmem:[%s4678] ss:$2 sm:$0xff] %v4668
    %v4680 = vld.sshfl [vmem:[#allocation1] sm:$0xff pattern:$0x75316420]
    %v4681 = vld.sshfl [vmem:[#allocation1 + $0x8] sm:$0xff pattern:$0x75316420]
    %v4682 = vld.sshfl [vmem:[#allocation1 + $0x10] sm:$0xff pattern:$0x75316420]
    %v4683 = vld.sshfl [vmem:[#allocation1 + $0x18] sm:$0xff pattern:$0x75316420]
    %v4684 = vld.sshfl [vmem:[#allocation1 + $0x20] sm:$0xff pattern:$0x75316420]
    %v4685 = vld.sshfl [vmem:[#allocation1 + $0x28] sm:$0xff pattern:$0x75316420]
    %v4686 = vld.sshfl [vmem:[#allocation1 + $0x30] sm:$0xff pattern:$0x75316420]
    %v4687 = vld.sshfl [vmem:[#allocation1 + $0x38] sm:$0xff pattern:$0x75316420]
    %v4688 = vrot.slane %v4680, 3
    %v4689 = vrot.slane %v4681, 3
    %v4690 = vrot.slane %v4682, 3
    %v4691 = vrot.slane %v4683, 3
    %v4692 = vrot.slane %v4684, 3
    %v4693 = vrot.slane %v4685, 3
    %v4694 = vrot.slane %v4686, 3
    %v4695 = vrot.slane %v4687, 3
    %4704 = vst [vmem:[#allocation5 + $0x80] sm:$0xe0] %v4688
    %4705 = vst [vmem:[#allocation5 + $0x88] sm:$0xe0] %v4689
    %4706 = vst [vmem:[#allocation5 + $0x90] sm:$0xe0] %v4690
    %4707 = vst [vmem:[#allocation5 + $0x98] sm:$0xe0] %v4691
    %4708 = vst [vmem:[#allocation5 + $0xa0] sm:$0xe0] %v4692
    %4709 = vst [vmem:[#allocation5 + $0xa8] sm:$0xe0] %v4693
    %4710 = vst [vmem:[#allocation5 + $0xb0] sm:$0xe0] %v4694
    %4711 = vst [vmem:[#allocation5 + $0xb8] sm:$0xe0] %v4695
    %v4712 = vand.u32 2147483647, %v4045
    %vm4713 = vcmp.le.f32.partialorder %v4712, 0.7853982
    %vm4714 = vcmp.lt.s32.totalorder %v4045, 0
    %v4715 = vand.u32 %v4045, 2139095040
    %v4716 = vshrl.u32 %v4715, 23
    %v4717 = vsub.s32 %v4716, 127
    %v4718 = vand.u32 2147483647, %v4045
    %v4719 = vand.u32 %v4718, 8388607
    %v4720 = vor.u32 %v4719, 8388608
    %v4721 = vsub.s32 0, %v4720
    %v4722 = vadd.s32 %v4717, 1
    %vm4723 = vcmp.gt.s32.totalorder %v4722, 0
    %v4724 = vsel %vm4723, %v4722, 0
    %v4725 = vshrl.u32 %v4724, 5
    %v4726 = vand.u32 %v4724, 31
    %v4727 = vsub.s32 32, %v4726
    %v4728 = vshrl.u32 683565275, %v4727
    %v4729 = vshll.u32 683565275, %v4726
    %v4730 = vshrl.u32 2475754826, %v4727
    %v4731 = vor.u32 %v4729, %v4730
    %v4732 = vshll.u32 2475754826, %v4726
    %v4733 = vshrl.u32 2131351028, %v4727
    %v4734 = vor.u32 %v4732, %v4733
    %v4735 = vshll.u32 2131351028, %v4726
    %v4736 = vshrl.u32 2102212464, %v4727
    %v4737 = vor.u32 %v4735, %v4736
    %v4738 = vshll.u32 2102212464, %v4726
    %v4739 = vshrl.u32 920167782, %v4727
    %v4740 = vor.u32 %v4738, %v4739
    %v4741 = vshll.u32 920167782, %v4726
    %v4742 = vshrl.u32 1326507024, %v4727
    %v4743 = vor.u32 %v4741, %v4742
    %vm4744 = vcmp.lt.s32.totalorder %v4725, 1
    %vm4745 = vcmp.lt.s32.totalorder %v4725, 2
    %vm4746 = vcmp.lt.s32.totalorder %v4725, 3
    %vm4747 = vcmp.lt.s32.totalorder %v4725, 4
    %v4748 = vsel %vm4744, %v4728, %v4731
    %v4749 = vsel %vm4747, %v4737, 2102212464
    %v4750 = vsel %vm4746, %v4734, %v4749
    %v4751 = vsel %vm4745, %v4748, %v4750
    %v4752 = vsel %vm4744, %v4731, %v4734
    %v4753 = vsel %vm4747, %v4740, 920167782
    %v4754 = vsel %vm4746, %v4737, %v4753
    %v4755 = vsel %vm4745, %v4752, %v4754
    %v4756 = vsel %vm4744, %v4734, %v4737
    %v4757 = vsel %vm4747, %v4743, 1326507024
    %v4758 = vsel %vm4746, %v4740, %v4757
    %v4759 = vsel %vm4745, %v4756, %v4758
    %v4760 = vshll.u32 %v4720, 8
    %v4761 = vand.u32 %v4760, 65535
    %v4762 = vshrl.u32 %v4760, 16
    %v4763 = vand.u32 %v4759, 65535
    %v4764 = vshrl.u32 %v4759, 16
    %v4765 = vmul.u32 %v4761, %v4763
    %v4766 = vmul.u32 %v4761, %v4764
    %v4767 = vmul.u32 %v4762, %v4763
    %v4768 = vmul.u32 %v4762, %v4764
    %v4769 = vshll.u32 %v4766, 16
    %v4770 = vshrl.u32 %v4766, 16
    %v4771 = vshll.u32 %v4767, 16
    %v4772 = vshrl.u32 %v4767, 16
    %vm4773 = vc.u32 %v4765, %v4769
    %v4774 = vsel %vm4773, 1, 0
    %v4775 = vadd.s32 %v4765, %v4769
    %v4776 = vadd.s32 %v4768, %v4774
    %vm4777 = vc.u32 %v4775, %v4771
    %v4778 = vsel %vm4777, 1, 0
    %v4779 = vadd.s32 %v4775, %v4771
    %v4780 = vadd.s32 %v4776, %v4778
    %v4781 = vadd.s32 %v4780, %v4770
    %v4782 = vadd.s32 %v4781, %v4772
    %v4783 = vand.u32 %v4760, 65535
    %v4784 = vshrl.u32 %v4760, 16
    %v4785 = vand.u32 %v4755, 65535
    %v4786 = vshrl.u32 %v4755, 16
    %v4787 = vmul.u32 %v4783, %v4785
    %v4788 = vmul.u32 %v4783, %v4786
    %v4789 = vmul.u32 %v4784, %v4785
    %v4790 = vmul.u32 %v4784, %v4786
    %v4791 = vshll.u32 %v4788, 16
    %v4792 = vshrl.u32 %v4788, 16
    %v4793 = vshll.u32 %v4789, 16
    %v4794 = vshrl.u32 %v4789, 16
    %vm4795 = vc.u32 %v4787, %v4791
    %v4796 = vsel %vm4795, 1, 0
    %v4797 = vadd.s32 %v4787, %v4791
    %v4798 = vadd.s32 %v4790, %v4796
    %vm4799 = vc.u32 %v4797, %v4793
    %v4800 = vsel %vm4799, 1, 0
    %v4801 = vadd.s32 %v4797, %v4793
    %v4802 = vadd.s32 %v4798, %v4800
    %v4803 = vadd.s32 %v4802, %v4792
    %v4804 = vadd.s32 %v4803, %v4794
    %v4805 = vmul.u32 %v4760, %v4751
    %v4806 = vadd.s32 %v4782, %v4801
    %vm4807 = vc.u32 %v4782, %v4801
    %v4808 = vadd.s32 %v4804, 1
    %v4809 = vsel %vm4807, %v4808, %v4804
    %v4810 = vadd.s32 %v4805, %v4809
    %v4811 = vadd.s32 %v4810, 536870912
    %v4812 = vshrl.u32 %v4811, 30
    %v4813 = vshll.u32 %v4812, 30
    %v4814 = vsub.s32 %v4810, %v4813
    %vm4815 = vcmp.lt.s32.totalorder %v4814, 0
    %v4816 = vsub.s32 0, %v4814
    %v4817 = vsel %vm4815, %v4816, %v4814
    %v4818 = vclz %v4817
    %v4819 = vsub.s32 %v4818, 2
    %vm4820 = vcmp.gt.s32.totalorder 0, %v4819
    %v4821 = vsel %vm4820, 0, %v4819
    %v4822 = vsub.s32 32, %v4821
    %v4823 = vshll.u32 %v4814, %v4821
    %v4824 = vshrl.u32 %v4806, %v4822
    %v4825 = vor.u32 %v4823, %v4824
    %v4826 = vsub.s32 4294967266, %v4821
    %v4827 = vadd.s32 %v4826, 127
    %v4828 = vshll.u32 %v4827, 23
    %v4829 = vor.u32 4788187, %v4828
    %v4830 = vand.u32 2147483647, %v4829
    %v4832 = vcvt.s32.f32 %v4825
    %v4833 = vmul.f32 %v4832, %v4830
    %v4834 = vxor.u32 %v4833, 2147483648
    %v4835 = vsel %vm4714, %v4834, %v4833
    %v4836 = vsub.s32 4, %v4812
    %v4837 = vsel %vm4714, %v4836, %v4812
    %v4838 = vsel %vm4713, %v4045, %v4835
    %v4839 = vsel %vm4713, 0, %v4837
    %v4840 = vmul.f32 %v4838, %v4838
    %v4841 = vmul.f32 %v4840, -0.001358992
    %v4842 = vadd.f32 %v4841, 0.041655596
    %v4843 = vmul.f32 %v4840, %v4842
    %v4844 = vadd.f32 %v4843, -0.4999988
    %v4845 = vmul.f32 %v4840, %v4844
    %v4846 = vadd.f32 1.0, %v4845
    %v4847 = vmul.f32 %v4838, %v4838
    %v4848 = vmul.f32 %v4847, -0.00019511016
    %v4849 = vadd.f32 %v4848, 0.008332121
    %v4850 = vmul.f32 %v4847, %v4849
    %v4851 = vadd.f32 %v4850, -0.16666654
    %v4852 = vmul.f32 %v4847, %v4851
    %v4853 = vadd.f32 %v4852, 1.0
    %v4854 = vmul.f32 %v4853, %v4838
    %vm4855 = vweird.f32 %v4045
    %v4856 = vand.u32 %v4839, 3
    %vm4857 = vcmp.lt.s32.totalorder %v4856, 2
    %vm4858 = vcmp.eq.s32.totalorder %v4856, 0
    %v4859 = vxor.u32 %v4854, 2147483648
    %v4860 = vsel %vm4858, %v4846, %v4859
    %vm4861 = vcmp.eq.s32.totalorder %v4856, 2
    %v4862 = vxor.u32 %v4846, 2147483648
    %v4863 = vsel %vm4861, %v4862, %v4854
    %v4864 = vsel %vm4857, %v4860, %v4863
    %v4865 = vsel %vm4855, nan, %v4864
    %v4866 = vand.u32 2147483647, %v4046
    %vm4867 = vcmp.le.f32.partialorder %v4866, 0.7853982
    %vm4868 = vcmp.lt.s32.totalorder %v4046, 0
    %v4869 = vand.u32 %v4046, 2139095040
    %v4870 = vshrl.u32 %v4869, 23
    %v4871 = vsub.s32 %v4870, 127
    %v4872 = vand.u32 2147483647, %v4046
    %v4873 = vand.u32 %v4872, 8388607
    %v4874 = vor.u32 %v4873, 8388608
    %v4875 = vsub.s32 0, %v4874
    %v4876 = vadd.s32 %v4871, 1
    %vm4877 = vcmp.gt.s32.totalorder %v4876, 0
    %v4878 = vsel %vm4877, %v4876, 0
    %v4879 = vshrl.u32 %v4878, 5
    %v4880 = vand.u32 %v4878, 31
    %v4881 = vsub.s32 32, %v4880
    %v4882 = vshrl.u32 683565275, %v4881
    %v4883 = vshll.u32 683565275, %v4880
    %v4884 = vshrl.u32 2475754826, %v4881
    %v4885 = vor.u32 %v4883, %v4884
    %v4886 = vshll.u32 2475754826, %v4880
    %v4887 = vshrl.u32 2131351028, %v4881
    %v4888 = vor.u32 %v4886, %v4887
    %v4889 = vshll.u32 2131351028, %v4880
    %v4890 = vshrl.u32 2102212464, %v4881
    %v4891 = vor.u32 %v4889, %v4890
    %v4892 = vshll.u32 2102212464, %v4880
    %v4893 = vshrl.u32 920167782, %v4881
    %v4894 = vor.u32 %v4892, %v4893
    %v4895 = vshll.u32 920167782, %v4880
    %v4896 = vshrl.u32 1326507024, %v4881
    %v4897 = vor.u32 %v4895, %v4896
    %vm4898 = vcmp.lt.s32.totalorder %v4879, 1
    %vm4899 = vcmp.lt.s32.totalorder %v4879, 2
    %vm4900 = vcmp.lt.s32.totalorder %v4879, 3
    %vm4901 = vcmp.lt.s32.totalorder %v4879, 4
    %v4902 = vsel %vm4898, %v4882, %v4885
    %v4903 = vsel %vm4901, %v4891, 2102212464
    %v4904 = vsel %vm4900, %v4888, %v4903
    %v4905 = vsel %vm4899, %v4902, %v4904
    %v4906 = vsel %vm4898, %v4885, %v4888
    %v4907 = vsel %vm4901, %v4894, 920167782
    %v4908 = vsel %vm4900, %v4891, %v4907
    %v4909 = vsel %vm4899, %v4906, %v4908
    %v4910 = vsel %vm4898, %v4888, %v4891
    %v4911 = vsel %vm4901, %v4897, 1326507024
    %v4912 = vsel %vm4900, %v4894, %v4911
    %v4913 = vsel %vm4899, %v4910, %v4912
    %v4914 = vshll.u32 %v4874, 8
    %v4915 = vand.u32 %v4914, 65535
    %v4916 = vshrl.u32 %v4914, 16
    %v4917 = vand.u32 %v4913, 65535
    %v4918 = vshrl.u32 %v4913, 16
    %v4919 = vmul.u32 %v4915, %v4917
    %v4920 = vmul.u32 %v4915, %v4918
    %v4921 = vmul.u32 %v4916, %v4917
    %v4922 = vmul.u32 %v4916, %v4918
    %v4923 = vshll.u32 %v4920, 16
    %v4924 = vshrl.u32 %v4920, 16
    %v4925 = vshll.u32 %v4921, 16
    %v4926 = vshrl.u32 %v4921, 16
    %vm4927 = vc.u32 %v4919, %v4923
    %v4928 = vsel %vm4927, 1, 0
    %v4929 = vadd.s32 %v4919, %v4923
    %v4930 = vadd.s32 %v4922, %v4928
    %vm4931 = vc.u32 %v4929, %v4925
    %v4932 = vsel %vm4931, 1, 0
    %v4933 = vadd.s32 %v4929, %v4925
    %v4934 = vadd.s32 %v4930, %v4932
    %v4935 = vadd.s32 %v4934, %v4924
    %v4936 = vadd.s32 %v4935, %v4926
    %v4937 = vand.u32 %v4914, 65535
    %v4938 = vshrl.u32 %v4914, 16
    %v4939 = vand.u32 %v4909, 65535
    %v4940 = vshrl.u32 %v4909, 16
    %v4941 = vmul.u32 %v4937, %v4939
    %v4942 = vmul.u32 %v4937, %v4940
    %v4943 = vmul.u32 %v4938, %v4939
    %v4944 = vmul.u32 %v4938, %v4940
    %v4945 = vshll.u32 %v4942, 16
    %v4946 = vshrl.u32 %v4942, 16
    %v4947 = vshll.u32 %v4943, 16
    %v4948 = vshrl.u32 %v4943, 16
    %vm4949 = vc.u32 %v4941, %v4945
    %v4950 = vsel %vm4949, 1, 0
    %v4951 = vadd.s32 %v4941, %v4945
    %v4952 = vadd.s32 %v4944, %v4950
    %vm4953 = vc.u32 %v4951, %v4947
    %v4954 = vsel %vm4953, 1, 0
    %v4955 = vadd.s32 %v4951, %v4947
    %v4956 = vadd.s32 %v4952, %v4954
    %v4957 = vadd.s32 %v4956, %v4946
    %v4958 = vadd.s32 %v4957, %v4948
    %v4959 = vmul.u32 %v4914, %v4905
    %v4960 = vadd.s32 %v4936, %v4955
    %vm4961 = vc.u32 %v4936, %v4955
    %v4962 = vadd.s32 %v4958, 1
    %v4963 = vsel %vm4961, %v4962, %v4958
    %v4964 = vadd.s32 %v4959, %v4963
    %v4965 = vadd.s32 %v4964, 536870912
    %v4966 = vshrl.u32 %v4965, 30
    %v4967 = vshll.u32 %v4966, 30
    %v4968 = vsub.s32 %v4964, %v4967
    %vm4969 = vcmp.lt.s32.totalorder %v4968, 0
    %v4970 = vsub.s32 0, %v4968
    %v4971 = vsel %vm4969, %v4970, %v4968
    %v4972 = vclz %v4971
    %v4973 = vsub.s32 %v4972, 2
    %vm4974 = vcmp.gt.s32.totalorder 0, %v4973
    %v4975 = vsel %vm4974, 0, %v4973
    %v4976 = vsub.s32 32, %v4975
    %v4977 = vshll.u32 %v4968, %v4975
    %v4978 = vshrl.u32 %v4960, %v4976
    %v4979 = vor.u32 %v4977, %v4978
    %v4980 = vsub.s32 4294967266, %v4975
    %v4981 = vadd.s32 %v4980, 127
    %v4982 = vshll.u32 %v4981, 23
    %v4983 = vor.u32 4788187, %v4982
    %v4984 = vand.u32 2147483647, %v4983
    %v4986 = vcvt.s32.f32 %v4979
    %v4987 = vmul.f32 %v4986, %v4984
    %v4988 = vxor.u32 %v4987, 2147483648
    %v4989 = vsel %vm4868, %v4988, %v4987
    %v4990 = vsub.s32 4, %v4966
    %v4991 = vsel %vm4868, %v4990, %v4966
    %v4992 = vsel %vm4867, %v4046, %v4989
    %v4993 = vsel %vm4867, 0, %v4991
    %v4994 = vmul.f32 %v4992, %v4992
    %v4995 = vmul.f32 %v4994, -0.001358992
    %v4996 = vadd.f32 %v4995, 0.041655596
    %v4997 = vmul.f32 %v4994, %v4996
    %v4998 = vadd.f32 %v4997, -0.4999988
    %v4999 = vmul.f32 %v4994, %v4998
    %v5000 = vadd.f32 1.0, %v4999
    %v5001 = vmul.f32 %v4992, %v4992
    %v5002 = vmul.f32 %v5001, -0.00019511016
    %v5003 = vadd.f32 %v5002, 0.008332121
    %v5004 = vmul.f32 %v5001, %v5003
    %v5005 = vadd.f32 %v5004, -0.16666654
    %v5006 = vmul.f32 %v5001, %v5005
    %v5007 = vadd.f32 %v5006, 1.0
    %v5008 = vmul.f32 %v5007, %v4992
    %vm5009 = vweird.f32 %v4046
    %v5010 = vand.u32 %v4993, 3
    %vm5011 = vcmp.lt.s32.totalorder %v5010, 2
    %vm5012 = vcmp.eq.s32.totalorder %v5010, 0
    %v5013 = vxor.u32 %v5008, 2147483648
    %v5014 = vsel %vm5012, %v5000, %v5013
    %vm5015 = vcmp.eq.s32.totalorder %v5010, 2
    %v5016 = vxor.u32 %v5000, 2147483648
    %v5017 = vsel %vm5015, %v5016, %v5008
    %v5018 = vsel %vm5011, %v5014, %v5017
    %v5019 = vsel %vm5009, nan, %v5018
    %v5020 = vand.u32 2147483647, %v4047
    %vm5021 = vcmp.le.f32.partialorder %v5020, 0.7853982
    %vm5022 = vcmp.lt.s32.totalorder %v4047, 0
    %v5023 = vand.u32 %v4047, 2139095040
    %v5024 = vshrl.u32 %v5023, 23
    %v5025 = vsub.s32 %v5024, 127
    %v5026 = vand.u32 2147483647, %v4047
    %v5027 = vand.u32 %v5026, 8388607
    %v5028 = vor.u32 %v5027, 8388608
    %v5029 = vsub.s32 0, %v5028
    %v5030 = vadd.s32 %v5025, 1
    %vm5031 = vcmp.gt.s32.totalorder %v5030, 0
    %v5032 = vsel %vm5031, %v5030, 0
    %v5033 = vshrl.u32 %v5032, 5
    %v5034 = vand.u32 %v5032, 31
    %v5035 = vsub.s32 32, %v5034
    %v5036 = vshrl.u32 683565275, %v5035
    %v5037 = vshll.u32 683565275, %v5034
    %v5038 = vshrl.u32 2475754826, %v5035
    %v5039 = vor.u32 %v5037, %v5038
    %v5040 = vshll.u32 2475754826, %v5034
    %v5041 = vshrl.u32 2131351028, %v5035
    %v5042 = vor.u32 %v5040, %v5041
    %v5043 = vshll.u32 2131351028, %v5034
    %v5044 = vshrl.u32 2102212464, %v5035
    %v5045 = vor.u32 %v5043, %v5044
    %v5046 = vshll.u32 2102212464, %v5034
    %v5047 = vshrl.u32 920167782, %v5035
    %v5048 = vor.u32 %v5046, %v5047
    %v5049 = vshll.u32 920167782, %v5034
    %v5050 = vshrl.u32 1326507024, %v5035
    %v5051 = vor.u32 %v5049, %v5050
    %vm5052 = vcmp.lt.s32.totalorder %v5033, 1
    %vm5053 = vcmp.lt.s32.totalorder %v5033, 2
    %vm5054 = vcmp.lt.s32.totalorder %v5033, 3
    %vm5055 = vcmp.lt.s32.totalorder %v5033, 4
    %v5056 = vsel %vm5052, %v5036, %v5039
    %v5057 = vsel %vm5055, %v5045, 2102212464
    %v5058 = vsel %vm5054, %v5042, %v5057
    %v5059 = vsel %vm5053, %v5056, %v5058
    %v5060 = vsel %vm5052, %v5039, %v5042
    %v5061 = vsel %vm5055, %v5048, 920167782
    %v5062 = vsel %vm5054, %v5045, %v5061
    %v5063 = vsel %vm5053, %v5060, %v5062
    %v5064 = vsel %vm5052, %v5042, %v5045
    %v5065 = vsel %vm5055, %v5051, 1326507024
    %v5066 = vsel %vm5054, %v5048, %v5065
    %v5067 = vsel %vm5053, %v5064, %v5066
    %v5068 = vshll.u32 %v5028, 8
    %v5069 = vand.u32 %v5068, 65535
    %v5070 = vshrl.u32 %v5068, 16
    %v5071 = vand.u32 %v5067, 65535
    %v5072 = vshrl.u32 %v5067, 16
    %v5073 = vmul.u32 %v5069, %v5071
    %v5074 = vmul.u32 %v5069, %v5072
    %v5075 = vmul.u32 %v5070, %v5071
    %v5076 = vmul.u32 %v5070, %v5072
    %v5077 = vshll.u32 %v5074, 16
    %v5078 = vshrl.u32 %v5074, 16
    %v5079 = vshll.u32 %v5075, 16
    %v5080 = vshrl.u32 %v5075, 16
    %vm5081 = vc.u32 %v5073, %v5077
    %v5082 = vsel %vm5081, 1, 0
    %v5083 = vadd.s32 %v5073, %v5077
    %v5084 = vadd.s32 %v5076, %v5082
    %vm5085 = vc.u32 %v5083, %v5079
    %v5086 = vsel %vm5085, 1, 0
    %v5087 = vadd.s32 %v5083, %v5079
    %v5088 = vadd.s32 %v5084, %v5086
    %v5089 = vadd.s32 %v5088, %v5078
    %v5090 = vadd.s32 %v5089, %v5080
    %v5091 = vand.u32 %v5068, 65535
    %v5092 = vshrl.u32 %v5068, 16
    %v5093 = vand.u32 %v5063, 65535
    %v5094 = vshrl.u32 %v5063, 16
    %v5095 = vmul.u32 %v5091, %v5093
    %v5096 = vmul.u32 %v5091, %v5094
    %v5097 = vmul.u32 %v5092, %v5093
    %v5098 = vmul.u32 %v5092, %v5094
    %v5099 = vshll.u32 %v5096, 16
    %v5100 = vshrl.u32 %v5096, 16
    %v5101 = vshll.u32 %v5097, 16
    %v5102 = vshrl.u32 %v5097, 16
    %vm5103 = vc.u32 %v5095, %v5099
    %v5104 = vsel %vm5103, 1, 0
    %v5105 = vadd.s32 %v5095, %v5099
    %v5106 = vadd.s32 %v5098, %v5104
    %vm5107 = vc.u32 %v5105, %v5101
    %v5108 = vsel %vm5107, 1, 0
    %v5109 = vadd.s32 %v5105, %v5101
    %v5110 = vadd.s32 %v5106, %v5108
    %v5111 = vadd.s32 %v5110, %v5100
    %v5112 = vadd.s32 %v5111, %v5102
    %v5113 = vmul.u32 %v5068, %v5059
    %v5114 = vadd.s32 %v5090, %v5109
    %vm5115 = vc.u32 %v5090, %v5109
    %v5116 = vadd.s32 %v5112, 1
    %v5117 = vsel %vm5115, %v5116, %v5112
    %v5118 = vadd.s32 %v5113, %v5117
    %v5119 = vadd.s32 %v5118, 536870912
    %v5120 = vshrl.u32 %v5119, 30
    %v5121 = vshll.u32 %v5120, 30
    %v5122 = vsub.s32 %v5118, %v5121
    %vm5123 = vcmp.lt.s32.totalorder %v5122, 0
    %v5124 = vsub.s32 0, %v5122
    %v5125 = vsel %vm5123, %v5124, %v5122
    %v5126 = vclz %v5125
    %v5127 = vsub.s32 %v5126, 2
    %vm5128 = vcmp.gt.s32.totalorder 0, %v5127
    %v5129 = vsel %vm5128, 0, %v5127
    %v5130 = vsub.s32 32, %v5129
    %v5131 = vshll.u32 %v5122, %v5129
    %v5132 = vshrl.u32 %v5114, %v5130
    %v5133 = vor.u32 %v5131, %v5132
    %v5134 = vsub.s32 4294967266, %v5129
    %v5135 = vadd.s32 %v5134, 127
    %v5136 = vshll.u32 %v5135, 23
    %v5137 = vor.u32 4788187, %v5136
    %v5138 = vand.u32 2147483647, %v5137
    %v5140 = vcvt.s32.f32 %v5133
    %v5141 = vmul.f32 %v5140, %v5138
    %v5142 = vxor.u32 %v5141, 2147483648
    %v5143 = vsel %vm5022, %v5142, %v5141
    %v5144 = vsub.s32 4, %v5120
    %v5145 = vsel %vm5022, %v5144, %v5120
    %v5146 = vsel %vm5021, %v4047, %v5143
    %v5147 = vsel %vm5021, 0, %v5145
    %v5148 = vmul.f32 %v5146, %v5146
    %v5149 = vmul.f32 %v5148, -0.001358992
    %v5150 = vadd.f32 %v5149, 0.041655596
    %v5151 = vmul.f32 %v5148, %v5150
    %v5152 = vadd.f32 %v5151, -0.4999988
    %v5153 = vmul.f32 %v5148, %v5152
    %v5154 = vadd.f32 1.0, %v5153
    %v5155 = vmul.f32 %v5146, %v5146
    %v5156 = vmul.f32 %v5155, -0.00019511016
    %v5157 = vadd.f32 %v5156, 0.008332121
    %v5158 = vmul.f32 %v5155, %v5157
    %v5159 = vadd.f32 %v5158, -0.16666654
    %v5160 = vmul.f32 %v5155, %v5159
    %v5161 = vadd.f32 %v5160, 1.0
    %v5162 = vmul.f32 %v5161, %v5146
    %vm5163 = vweird.f32 %v4047
    %v5164 = vand.u32 %v5147, 3
    %vm5165 = vcmp.lt.s32.totalorder %v5164, 2
    %vm5166 = vcmp.eq.s32.totalorder %v5164, 0
    %v5167 = vxor.u32 %v5162, 2147483648
    %v5168 = vsel %vm5166, %v5154, %v5167
    %vm5169 = vcmp.eq.s32.totalorder %v5164, 2
    %v5170 = vxor.u32 %v5154, 2147483648
    %v5171 = vsel %vm5169, %v5170, %v5162
    %v5172 = vsel %vm5165, %v5168, %v5171
    %v5173 = vsel %vm5163, nan, %v5172
    %v5174 = vand.u32 2147483647, %v4048
    %vm5175 = vcmp.le.f32.partialorder %v5174, 0.7853982
    %vm5176 = vcmp.lt.s32.totalorder %v4048, 0
    %v5177 = vand.u32 %v4048, 2139095040
    %v5178 = vshrl.u32 %v5177, 23
    %v5179 = vsub.s32 %v5178, 127
    %v5180 = vand.u32 2147483647, %v4048
    %v5181 = vand.u32 %v5180, 8388607
    %v5182 = vor.u32 %v5181, 8388608
    %v5183 = vsub.s32 0, %v5182
    %v5184 = vadd.s32 %v5179, 1
    %vm5185 = vcmp.gt.s32.totalorder %v5184, 0
    %v5186 = vsel %vm5185, %v5184, 0
    %v5187 = vshrl.u32 %v5186, 5
    %v5188 = vand.u32 %v5186, 31
    %v5189 = vsub.s32 32, %v5188
    %v5190 = vshrl.u32 683565275, %v5189
    %v5191 = vshll.u32 683565275, %v5188
    %v5192 = vshrl.u32 2475754826, %v5189
    %v5193 = vor.u32 %v5191, %v5192
    %v5194 = vshll.u32 2475754826, %v5188
    %v5195 = vshrl.u32 2131351028, %v5189
    %v5196 = vor.u32 %v5194, %v5195
    %v5197 = vshll.u32 2131351028, %v5188
    %v5198 = vshrl.u32 2102212464, %v5189
    %v5199 = vor.u32 %v5197, %v5198
    %v5200 = vshll.u32 2102212464, %v5188
    %v5201 = vshrl.u32 920167782, %v5189
    %v5202 = vor.u32 %v5200, %v5201
    %v5203 = vshll.u32 920167782, %v5188
    %v5204 = vshrl.u32 1326507024, %v5189
    %v5205 = vor.u32 %v5203, %v5204
    %vm5206 = vcmp.lt.s32.totalorder %v5187, 1
    %vm5207 = vcmp.lt.s32.totalorder %v5187, 2
    %vm5208 = vcmp.lt.s32.totalorder %v5187, 3
    %vm5209 = vcmp.lt.s32.totalorder %v5187, 4
    %v5210 = vsel %vm5206, %v5190, %v5193
    %v5211 = vsel %vm5209, %v5199, 2102212464
    %v5212 = vsel %vm5208, %v5196, %v5211
    %v5213 = vsel %vm5207, %v5210, %v5212
    %v5214 = vsel %vm5206, %v5193, %v5196
    %v5215 = vsel %vm5209, %v5202, 920167782
    %v5216 = vsel %vm5208, %v5199, %v5215
    %v5217 = vsel %vm5207, %v5214, %v5216
    %v5218 = vsel %vm5206, %v5196, %v5199
    %v5219 = vsel %vm5209, %v5205, 1326507024
    %v5220 = vsel %vm5208, %v5202, %v5219
    %v5221 = vsel %vm5207, %v5218, %v5220
    %v5222 = vshll.u32 %v5182, 8
    %v5223 = vand.u32 %v5222, 65535
    %v5224 = vshrl.u32 %v5222, 16
    %v5225 = vand.u32 %v5221, 65535
    %v5226 = vshrl.u32 %v5221, 16
    %v5227 = vmul.u32 %v5223, %v5225
    %v5228 = vmul.u32 %v5223, %v5226
    %v5229 = vmul.u32 %v5224, %v5225
    %v5230 = vmul.u32 %v5224, %v5226
    %v5231 = vshll.u32 %v5228, 16
    %v5232 = vshrl.u32 %v5228, 16
    %v5233 = vshll.u32 %v5229, 16
    %v5234 = vshrl.u32 %v5229, 16
    %vm5235 = vc.u32 %v5227, %v5231
    %v5236 = vsel %vm5235, 1, 0
    %v5237 = vadd.s32 %v5227, %v5231
    %v5238 = vadd.s32 %v5230, %v5236
    %vm5239 = vc.u32 %v5237, %v5233
    %v5240 = vsel %vm5239, 1, 0
    %v5241 = vadd.s32 %v5237, %v5233
    %v5242 = vadd.s32 %v5238, %v5240
    %v5243 = vadd.s32 %v5242, %v5232
    %v5244 = vadd.s32 %v5243, %v5234
    %v5245 = vand.u32 %v5222, 65535
    %v5246 = vshrl.u32 %v5222, 16
    %v5247 = vand.u32 %v5217, 65535
    %v5248 = vshrl.u32 %v5217, 16
    %v5249 = vmul.u32 %v5245, %v5247
    %v5250 = vmul.u32 %v5245, %v5248
    %v5251 = vmul.u32 %v5246, %v5247
    %v5252 = vmul.u32 %v5246, %v5248
    %v5253 = vshll.u32 %v5250, 16
    %v5254 = vshrl.u32 %v5250, 16
    %v5255 = vshll.u32 %v5251, 16
    %v5256 = vshrl.u32 %v5251, 16
    %vm5257 = vc.u32 %v5249, %v5253
    %v5258 = vsel %vm5257, 1, 0
    %v5259 = vadd.s32 %v5249, %v5253
    %v5260 = vadd.s32 %v5252, %v5258
    %vm5261 = vc.u32 %v5259, %v5255
    %v5262 = vsel %vm5261, 1, 0
    %v5263 = vadd.s32 %v5259, %v5255
    %v5264 = vadd.s32 %v5260, %v5262
    %v5265 = vadd.s32 %v5264, %v5254
    %v5266 = vadd.s32 %v5265, %v5256
    %v5267 = vmul.u32 %v5222, %v5213
    %v5268 = vadd.s32 %v5244, %v5263
    %vm5269 = vc.u32 %v5244, %v5263
    %v5270 = vadd.s32 %v5266, 1
    %v5271 = vsel %vm5269, %v5270, %v5266
    %v5272 = vadd.s32 %v5267, %v5271
    %v5273 = vadd.s32 %v5272, 536870912
    %v5274 = vshrl.u32 %v5273, 30
    %v5275 = vshll.u32 %v5274, 30
    %v5276 = vsub.s32 %v5272, %v5275
    %vm5277 = vcmp.lt.s32.totalorder %v5276, 0
    %v5278 = vsub.s32 0, %v5276
    %v5279 = vsel %vm5277, %v5278, %v5276
    %v5280 = vclz %v5279
    %v5281 = vsub.s32 %v5280, 2
    %vm5282 = vcmp.gt.s32.totalorder 0, %v5281
    %v5283 = vsel %vm5282, 0, %v5281
    %v5284 = vsub.s32 32, %v5283
    %v5285 = vshll.u32 %v5276, %v5283
    %v5286 = vshrl.u32 %v5268, %v5284
    %v5287 = vor.u32 %v5285, %v5286
    %v5288 = vsub.s32 4294967266, %v5283
    %v5289 = vadd.s32 %v5288, 127
    %v5290 = vshll.u32 %v5289, 23
    %v5291 = vor.u32 4788187, %v5290
    %v5292 = vand.u32 2147483647, %v5291
    %v5294 = vcvt.s32.f32 %v5287
    %v5295 = vmul.f32 %v5294, %v5292
    %v5296 = vxor.u32 %v5295, 2147483648
    %v5297 = vsel %vm5176, %v5296, %v5295
    %v5298 = vsub.s32 4, %v5274
    %v5299 = vsel %vm5176, %v5298, %v5274
    %v5300 = vsel %vm5175, %v4048, %v5297
    %v5301 = vsel %vm5175, 0, %v5299
    %v5302 = vmul.f32 %v5300, %v5300
    %v5303 = vmul.f32 %v5302, -0.001358992
    %v5304 = vadd.f32 %v5303, 0.041655596
    %v5305 = vmul.f32 %v5302, %v5304
    %v5306 = vadd.f32 %v5305, -0.4999988
    %v5307 = vmul.f32 %v5302, %v5306
    %v5308 = vadd.f32 1.0, %v5307
    %v5309 = vmul.f32 %v5300, %v5300
    %v5310 = vmul.f32 %v5309, -0.00019511016
    %v5311 = vadd.f32 %v5310, 0.008332121
    %v5312 = vmul.f32 %v5309, %v5311
    %v5313 = vadd.f32 %v5312, -0.16666654
    %v5314 = vmul.f32 %v5309, %v5313
    %v5315 = vadd.f32 %v5314, 1.0
    %v5316 = vmul.f32 %v5315, %v5300
    %vm5317 = vweird.f32 %v4048
    %v5318 = vand.u32 %v5301, 3
    %vm5319 = vcmp.lt.s32.totalorder %v5318, 2
    %vm5320 = vcmp.eq.s32.totalorder %v5318, 0
    %v5321 = vxor.u32 %v5316, 2147483648
    %v5322 = vsel %vm5320, %v5308, %v5321
    %vm5323 = vcmp.eq.s32.totalorder %v5318, 2
    %v5324 = vxor.u32 %v5308, 2147483648
    %v5325 = vsel %vm5323, %v5324, %v5316
    %v5326 = vsel %vm5319, %v5322, %v5325
    %v5327 = vsel %vm5317, nan, %v5326
    %5332 = vst [vmem:[#allocation1] ss:$2 sm:$0xff] %v4865
    %s5333 = scalar_lea.vmem [#allocation1], 16
    %5334 = vst [vmem:[%s5333] ss:$2 sm:$0xff] %v5019
    %s5335 = scalar_lea.vmem [#allocation1], 32
    %5336 = vst [vmem:[%s5335] ss:$2 sm:$0xff] %v5173
    %s5337 = scalar_lea.vmem [#allocation1], 48
    %5338 = vst [vmem:[%s5337] ss:$2 sm:$0xff] %v5327
    %v5339 = vld.sshfl [vmem:[#allocation1] sm:$0xff pattern:$0x75316420]
    %v5340 = vld.sshfl [vmem:[#allocation1 + $0x8] sm:$0xff pattern:$0x75316420]
    %v5341 = vld.sshfl [vmem:[#allocation1 + $0x10] sm:$0xff pattern:$0x75316420]
    %v5342 = vld.sshfl [vmem:[#allocation1 + $0x18] sm:$0xff pattern:$0x75316420]
    %v5343 = vld.sshfl [vmem:[#allocation1 + $0x20] sm:$0xff pattern:$0x75316420]
    %v5344 = vld.sshfl [vmem:[#allocation1 + $0x28] sm:$0xff pattern:$0x75316420]
    %v5345 = vld.sshfl [vmem:[#allocation1 + $0x30] sm:$0xff pattern:$0x75316420]
    %v5346 = vld.sshfl [vmem:[#allocation1 + $0x38] sm:$0xff pattern:$0x75316420]
    %5355 = vst [vmem:[#allocation5 + $0xc0] sm:$0x7] %v5339
    %5356 = vst [vmem:[#allocation5 + $0xc8] sm:$0x7] %v5340
    %5357 = vst [vmem:[#allocation5 + $0xd0] sm:$0x7] %v5341
    %5358 = vst [vmem:[#allocation5 + $0xd8] sm:$0x7] %v5342
    %5359 = vst [vmem:[#allocation5 + $0xe0] sm:$0x7] %v5343
    %5360 = vst [vmem:[#allocation5 + $0xe8] sm:$0x7] %v5344
    %5361 = vst [vmem:[#allocation5 + $0xf0] sm:$0x7] %v5345
    %5362 = vst [vmem:[#allocation5 + $0xf8] sm:$0x7] %v5346
    // Predicated region
    $region10: #{_lambda_.1} parent=1 // pred_check
      _
    $region11: #{_lambda_.1} parent=1 // pred_check_branch
      %5364 = sbr.rel (0) target = $region13
    $region12: #{_lambda_.1} parent=1 // pred_region
      %5366 = vsyncadd [#allocation4], 0
      %s5367 = sshll.u32 [#allocation5], 4
      %s5368 = int_to_ptr.vmem [resolvable:$true] %s5367
      %s5369 = sshll.u32 %s1, 4
      %s5370 = int_to_ptr.hbm [resolvable:$true] %s5369
      %5375 = dma.vmem_to_hbm [thread:$0]  %s5368, 4096, %s5370, [#allocation4], 1024, 1024, 64
    $region13: #{_lambda_.1} parent=1 // pred_fallthru
      _
    // Predicated region
    $region14: #{_lambda_.1} parent=1 // pred_check
      _
    $region15: #{_lambda_.1} parent=1 // pred_check_branch
      %5377 = sbr.rel (0) target = $region17
    $region16: #{_lambda_.1} parent=1 // pred_region
      %5379 = dma.done [#allocation4], 4096
    $region17: #{_lambda_.1} parent=1 // pred_fallthru
      _
    %5380 = vsyncpa [#allocation3], 1
    %5381 = vsyncpa [#allocation4], 1

</llo_original>
